<compile_context>
chip_gen: v5e
topology: v5e:2x2
jax: 0.10.0
libtpu: 0.0.40
codegen_flags: <defaults>
</compile_context>

<pallas_src>
import jax
import jax.numpy as jnp
from jax.experimental import pallas as pl
from jax.experimental.pallas import tpu as pltpu


def _sigmoid(x):
    return 1.0 / (1.0 + jnp.exp(-x))


# ---------------------------------------------------------------------------
# Kernel 1: embedding lookup (one-hot matmul) fused with conds concat
# ---------------------------------------------------------------------------
def _embed_concat_kernel(ids_ref, emb_ref, conds_ref, out_ref):
    n = ids_ref.shape[0]
    v, e = emb_ref.shape
    c = conds_ref.shape[-1]
    onehot = (ids_ref[...] ==
              jax.lax.broadcasted_iota(jnp.int32, (n, v), 1)).astype(jnp.float32)
    out_ref[:, 0:e] = jnp.dot(onehot, emb_ref[...],
                              preferred_element_type=jnp.float32)
    out_ref[:, e:e + c] = conds_ref[...]


def embed_concat(ids_n1, emb_table, conds_nc):
    n = ids_n1.shape[0]
    v, e = emb_table.shape
    c = conds_nc.shape[-1]
    return pl.pallas_call(
        _embed_concat_kernel,
        out_shape=jax.ShapeDtypeStruct((n, e + c), jnp.float32),
        in_specs=[pl.BlockSpec(memory_space=pltpu.MemorySpace.VMEM)
                  for _ in range(3)],
        out_specs=pl.BlockSpec(memory_space=pltpu.MemorySpace.VMEM),
    )(ids_n1, emb_table, conds_nc)


# ---------------------------------------------------------------------------
# Kernel 2: one LSTM layer, one direction; grid over time, h/c in VMEM scratch
# ---------------------------------------------------------------------------
def _lstm_step_kernel(x_ref, wih_ref, whh_ref, b_ref, y_ref, h_scr, c_scr):
    h = whh_ref.shape[0]

    @pl.when(pl.program_id(0) == 0)
    def _init():
        h_scr[...] = jnp.zeros_like(h_scr)
        c_scr[...] = jnp.zeros_like(c_scr)

    x_t = x_ref[0]                                               # (B, D)
    gates = (jnp.dot(x_t, wih_ref[...], preferred_element_type=jnp.float32)
             + jnp.dot(h_scr[...], whh_ref[...],
                       preferred_element_type=jnp.float32)
             + b_ref[...])                                       # (B, 4H) i|f|g|o
    i_g = _sigmoid(gates[:, 0 * h:1 * h])
    f_g = _sigmoid(gates[:, 1 * h:2 * h])
    g_g = jnp.tanh(gates[:, 2 * h:3 * h])
    o_g = _sigmoid(gates[:, 3 * h:4 * h])
    c_new = f_g * c_scr[...] + i_g * g_g
    h_new = o_g * jnp.tanh(c_new)
    c_scr[...] = c_new
    h_scr[...] = h_new
    y_ref[0] = h_new


def lstm_direction(x_sbd, w_ih, w_hh, b, *, reverse):
    s, bsz, d = x_sbd.shape
    h = w_hh.shape[0]
    if reverse:
        t_map = lambda t: (s - 1 - t, 0, 0)
    else:
        t_map = lambda t: (t, 0, 0)
    return pl.pallas_call(
        _lstm_step_kernel,
        out_shape=jax.ShapeDtypeStruct((s, bsz, h), jnp.float32),
        grid=(s,),
        in_specs=[
            pl.BlockSpec((1, bsz, d), t_map),
            pl.BlockSpec((d, 4 * h), lambda t: (0, 0)),
            pl.BlockSpec((h, 4 * h), lambda t: (0, 0)),
            pl.BlockSpec((1, 4 * h), lambda t: (0, 0)),
        ],
        out_specs=pl.BlockSpec((1, bsz, h), t_map),
        scratch_shapes=[pltpu.VMEM((bsz, h), jnp.float32),
                        pltpu.VMEM((bsz, h), jnp.float32)],
        compiler_params=pltpu.CompilerParams(
            dimension_semantics=("arbitrary",)),
    )(x_sbd, w_ih, w_hh, b)


# ---------------------------------------------------------------------------
# Kernel 3: fused MLP head (lin1 -> lin2 -> lin3 -> out_lin, each + ReLU)
# ---------------------------------------------------------------------------
def _mlp_head_kernel(x_ref, w1_ref, b1_ref, w2_ref, b2_ref,
                     w3_ref, b3_ref, w4_ref, b4_ref, out_ref):
    def dense_relu(val, w_ref, b_ref):
        return jnp.maximum(
            jnp.dot(val, w_ref[...], preferred_element_type=jnp.float32)
            + b_ref[...], 0.0)

    val = x_ref[...]
    val = dense_relu(val, w1_ref, b1_ref)    # lin1 (Dropout = identity at eval)
    val = dense_relu(val, w2_ref, b2_ref)    # lin2
    val = dense_relu(val, w3_ref, b3_ref)    # lin3
    out_ref[...] = dense_relu(val, w4_ref, b4_ref)   # out_lin


def mlp_head(x, w1, b1, w2, b2, w3, b3, w4, b4):
    n = x.shape[0]
    o = w4.shape[-1]
    return pl.pallas_call(
        _mlp_head_kernel,
        out_shape=jax.ShapeDtypeStruct((n, o), jnp.float32),
        in_specs=[pl.BlockSpec(memory_space=pltpu.MemorySpace.VMEM)
                  for _ in range(9)],
        out_specs=pl.BlockSpec(memory_space=pltpu.MemorySpace.VMEM),
    )(x, w1, b1, w2, b2, w3, b3, w4, b4)


# ---------------------------------------------------------------------------
# Full forward pass (Pallas kernels glued by tiny layout ops)
# ---------------------------------------------------------------------------
def bilstm_forward(params, src_ids, conds):
    bsz, s = src_ids.shape
    c = conds.shape[-1]
    hid = params["lstm"][0][0]["w_hh"].shape[0]

    # time-major layout so the LSTM grid indexes the leading (time) axis
    ids_flat = jnp.transpose(src_ids, (1, 0)).reshape(s * bsz, 1).astype(jnp.int32)
    conds_flat = jnp.transpose(conds, (1, 0, 2)).reshape(s * bsz, c)
    conds_flat = conds_flat.astype(jnp.float32)

    x = embed_concat(ids_flat, params["emb"], conds_flat).reshape(s, bsz, -1)

    for layer in params["lstm"]:
        fwd = lstm_direction(x, layer[0]["w_ih"], layer[0]["w_hh"],
                             layer[0]["b"], reverse=False)
        bwd = lstm_direction(x, layer[1]["w_ih"], layer[1]["w_hh"],
                             layer[1]["b"], reverse=True)
        x = jnp.concatenate([fwd, bwd], axis=-1)                 # (S, B, 2H)
        # TODO(synk): LSTM inter-layer dropout and nn.Dropout in lin1..lin3 are
        # inference no-ops here; training-mode stochastic dropout not implemented.

    m = params["mlp"]
    y = mlp_head(x.reshape(s * bsz, 2 * hid),
                 m["w1"], m["b1"], m["w2"], m["b2"],
                 m["w3"], m["b3"], m["w4"], m["b4"])             # (S*B, O)
    o = y.shape[-1]
    return jnp.transpose(y.reshape(s, bsz, o), (1, 0, 2))        # (B, S, O)


# ---------------------------------------------------------------------------
# Deterministic parameter construction + pure-JAX reference
# ---------------------------------------------------------------------------
def init_params(key, *, vocab=64, emb_dim=256, cond_dim, hidden_dim,
                n_layers, output_dim):
    keys = iter(jax.random.split(key, 32))

    def nrm(shape, scale):
        return jax.random.normal(next(keys), shape, jnp.float32) * scale

    params = {"emb": nrm((vocab, emb_dim), 0.5)}
    input_dim = emb_dim + cond_dim
    lstm = []
    for l in range(n_layers):
        d_in = input_dim if l == 0 else 2 * hidden_dim
        layer = []
        for _direction in range(2):   # forward, backward
            layer.append(dict(
                w_ih=nrm((d_in, 4 * hidden_dim), 0.1),
                w_hh=nrm((hidden_dim, 4 * hidden_dim), 0.1),
                b=nrm((1, 4 * hidden_dim), 0.1),
            ))
        lstm.append(layer)
    params["lstm"] = lstm
    params["mlp"] = dict(
        w1=nrm((2 * hidden_dim, 256), 0.2), b1=nrm((1, 256), 0.1),
        w2=nrm((256, 128), 0.2), b2=nrm((1, 128), 0.1),
        w3=nrm((128, 64), 0.2), b3=nrm((1, 64), 0.1),
        w4=nrm((64, output_dim), 0.2), b4=nrm((1, output_dim), 0.1),
    )
    return params


def reference_forward(params, src_ids, conds):
    hi = jax.lax.Precision.HIGHEST
    bsz, s = src_ids.shape
    hid = params["lstm"][0][0]["w_hh"].shape[0]
    emb = params["emb"][src_ids]                                 # (B, S, E)
    x = jnp.concatenate([emb, conds.astype(jnp.float32)], axis=2)
    x = jnp.transpose(x, (1, 0, 2))                              # (S, B, D)
    for layer in params["lstm"]:
        outs = []
        for d, rev in ((0, False), (1, True)):
            w_ih, w_hh, b = layer[d]["w_ih"], layer[d]["w_hh"], layer[d]["b"]
            h = jnp.zeros((bsz, hid), jnp.float32)
            c = jnp.zeros((bsz, hid), jnp.float32)
            ys = [None] * s
            order = range(s - 1, -1, -1) if rev else range(s)
            for t in order:
                g = (jnp.dot(x[t], w_ih, precision=hi)
                     + jnp.dot(h, w_hh, precision=hi) + b)
                i_g = _sigmoid(g[:, 0 * hid:1 * hid])
                f_g = _sigmoid(g[:, 1 * hid:2 * hid])
                g_g = jnp.tanh(g[:, 2 * hid:3 * hid])
                o_g = _sigmoid(g[:, 3 * hid:4 * hid])
                c = f_g * c + i_g * g_g
                h = o_g * jnp.tanh(c)
                ys[t] = h
            outs.append(jnp.stack(ys, axis=0))
        x = jnp.concatenate(outs, axis=-1)                       # (S, B, 2H)
    m = params["mlp"]
    h = x.reshape(s * bsz, 2 * hid)
    h = jnp.maximum(jnp.dot(h, m["w1"], precision=hi) + m["b1"], 0.0)
    h = jnp.maximum(jnp.dot(h, m["w2"], precision=hi) + m["b2"], 0.0)
    h = jnp.maximum(jnp.dot(h, m["w3"], precision=hi) + m["b3"], 0.0)
    h = jnp.maximum(jnp.dot(h, m["w4"], precision=hi) + m["b4"], 0.0)
    o = h.shape[-1]
    return jnp.transpose(h.reshape(s, bsz, o), (1, 0, 2))


if __name__ == "__main__":
    # Small shapes implied by the module: batch=2, seq=8, hidden=32, 2 layers,
    # bidirectional; Embedding(64, 256); cond features = 8 -> input_dim = 264.
    B, S = 2, 8
    hidden_dim, n_layers, cond_dim, output_dim = 32, 2, 8, 1

    key = jax.random.PRNGKey(0)
    kp, kids, kconds = jax.random.split(key, 3)
    params = init_params(kp, cond_dim=cond_dim, hidden_dim=hidden_dim,
                         n_layers=n_layers, output_dim=output_dim)
    src = jax.random.randint(kids, (B, S), 0, 64, dtype=jnp.int32)
    conds_fin = jax.random.normal(kconds, (B, S, cond_dim), jnp.float32)

    out = jax.jit(bilstm_forward)(params, src, conds_fin)
    out = jax.block_until_ready(out)

    ref = reference_forward(params, src, conds_fin)
    assert out.shape == (B, S, output_dim), out.shape
    max_err = float(jnp.max(jnp.abs(out - ref)))
    assert jnp.allclose(out, ref, rtol=1e-2, atol=1e-2), f"max_abs_err={max_err}"
    print("KERNEL_OK")
</pallas_src>

<mosaic_0001>
module attributes {stable_mosaic.version = 11 : i64} {
  func.func @_embed_concat_kernel(%arg0: memref<16x1xi32, #tpu.memory_space<vmem>>, %arg1: memref<64x256xf32, #tpu.memory_space<vmem>>, %arg2: memref<16x8xf32, #tpu.memory_space<vmem>>, %arg3: memref<16x264xf32, #tpu.memory_space<vmem>>) attributes {dimension_semantics = [], scalar_prefetch = 0 : i64, scratch_operands = 0 : i64, tpu.core_type = #tpu.core_type<tc>} {
    %c0 = arith.constant 0 : index
    %c0_0 = arith.constant 0 : index
    %0 = vector.load %arg0[%c0, %c0_0] : memref<16x1xi32, #tpu.memory_space<vmem>>, vector<16x1xi32>
    %1 = tpu.iota {dimensions = array<i32: 1>} : vector<16x64xi32>
    %2 = vector.broadcast %0 : vector<16x1xi32> to vector<16x64xi32>
    %3 = arith.cmpi eq, %2, %1 : vector<16x64xi32>
    %4 = arith.extui %3 : vector<16x64xi1> to vector<16x64xi32>
    %5 = arith.sitofp %4 : vector<16x64xi32> to vector<16x64xf32>
    %c0_1 = arith.constant 0 : index
    %c0_2 = arith.constant 0 : index
    %6 = vector.load %arg1[%c0_1, %c0_2] : memref<64x256xf32, #tpu.memory_space<vmem>>, vector<64x256xf32>
    %cst = arith.constant dense<0.000000e+00> : vector<16x256xf32>
    %7 = tpu.matmul %5, %6, %cst {dimension_numbers = #tpu.dot_dimension_numbers<[1], [0], [0], [1], [0, 0, 1, 1], [], []>} : vector<16x64xf32>, vector<64x256xf32>, vector<16x256xf32> -> vector<16x256xf32>
    %c0_3 = arith.constant 0 : index
    %c0_4 = arith.constant 0 : index
    %8 = vector.load %arg3[%c0_3, %c0_4] : memref<16x264xf32, #tpu.memory_space<vmem>>, vector<16x256xf32>
    tpu.vector_store %arg3[%c0_3, %c0_4], %7 {strides = array<i32>} : memref<16x264xf32, #tpu.memory_space<vmem>>, vector<16x256xf32>,
    %c0_5 = arith.constant 0 : index
    %c0_6 = arith.constant 0 : index
    %9 = vector.load %arg2[%c0_5, %c0_6] : memref<16x8xf32, #tpu.memory_space<vmem>>, vector<16x8xf32>
    %c0_7 = arith.constant 0 : index
    %c256 = arith.constant 256 : index
    %10 = vector.load %arg3[%c0_7, %c256] : memref<16x264xf32, #tpu.memory_space<vmem>>, vector<16x8xf32>
    tpu.vector_store %arg3[%c0_7, %c256], %9 {strides = array<i32>} : memref<16x264xf32, #tpu.memory_space<vmem>>, vector<16x8xf32>,
    return
  }
}

module attributes {stable_mosaic.version = 11 : i64} {
  func.func @_lstm_step_kernel(%arg0: i32, %arg1: memref<1x2x264xf32, #tpu.memory_space<vmem>>, %arg2: memref<264x128xf32, #tpu.memory_space<vmem>>, %arg3: memref<32x128xf32, #tpu.memory_space<vmem>>, %arg4: memref<1x128xf32, #tpu.memory_space<vmem>>, %arg5: memref<1x2x32xf32, #tpu.memory_space<vmem>>, %arg6: memref<2x32xf32, #tpu.memory_space<vmem>>, %arg7: memref<2x32xf32, #tpu.memory_space<vmem>>) attributes {dimension_semantics = [#tpu.dimension_semantics<arbitrary>], iteration_bounds = array<i64: 8>, scalar_prefetch = 0 : i64, scratch_operands = 2 : i64, tpu.core_type = #tpu.core_type<tc>, window_params = [{transform_indices = @transform_0, window_bounds = array<i64: 1, 2, 264>}, {pipeline_mode = #tpu.pipeline_mode<synchronous>, transform_indices = @transform_1, window_bounds = array<i64: 264, 128>}, {pipeline_mode = #tpu.pipeline_mode<synchronous>, transform_indices = @transform_2, window_bounds = array<i64: 32, 128>}, {pipeline_mode = #tpu.pipeline_mode<synchronous>, transform_indices = @transform_3, window_bounds = array<i64: 1, 128>}, {transform_indices = @transform_4, window_bounds = array<i64: 1, 2, 32>}]} {
    %c0_i32 = arith.constant 0 : i32
    %0 = arith.cmpi eq, %arg0, %c0_i32 : i32
    %1 = arith.extui %0 : i1 to i32
    %c0_i32_0 = arith.constant 0 : i32
    %2 = arith.cmpi ne, %1, %c0_i32_0 : i32
    scf.if %2 {
      %cst_30 = arith.constant 0.000000e+00 : f32
      %51 = vector.broadcast %cst_30 : f32 to vector<2x32xf32>
      %c0_31 = arith.constant 0 : index
      %c0_32 = arith.constant 0 : index
      %52 = vector.load %arg6[%c0_31, %c0_32] : memref<2x32xf32, #tpu.memory_space<vmem>>, vector<2x32xf32>
      tpu.vector_store %arg6[%c0_31, %c0_32], %51 {strides = array<i32>} : memref<2x32xf32, #tpu.memory_space<vmem>>, vector<2x32xf32>,
      %cst_33 = arith.constant 0.000000e+00 : f32
      %53 = vector.broadcast %cst_33 : f32 to vector<2x32xf32>
      %c0_34 = arith.constant 0 : index
      %c0_35 = arith.constant 0 : index
      %54 = vector.load %arg7[%c0_34, %c0_35] : memref<2x32xf32, #tpu.memory_space<vmem>>, vector<2x32xf32>
      tpu.vector_store %arg7[%c0_34, %c0_35], %53 {strides = array<i32>} : memref<2x32xf32, #tpu.memory_space<vmem>>, vector<2x32xf32>,
    } else {
    }
    %c0 = arith.constant 0 : index
    %c0_1 = arith.constant 0 : index
    %c0_2 = arith.constant 0 : index
    %3 = vector.load %arg1[%c0, %c0_1, %c0_2] : memref<1x2x264xf32, #tpu.memory_space<vmem>>, vector<1x2x264xf32>
    %4 = vector.shape_cast %3 : vector<1x2x264xf32> to vector<2x264xf32>
    %c0_3 = arith.constant 0 : index
    %c0_4 = arith.constant 0 : index
    %5 = vector.load %arg2[%c0_3, %c0_4] : memref<264x128xf32, #tpu.memory_space<vmem>>, vector<264x128xf32>
    %cst = arith.constant dense<0.000000e+00> : vector<2x128xf32>
    %6 = tpu.matmul %4, %5, %cst {dimension_numbers = #tpu.dot_dimension_numbers<[1], [0], [0], [1], [0, 0, 1, 1], [], []>} : vector<2x264xf32>, vector<264x128xf32>, vector<2x128xf32> -> vector<2x128xf32>
    %c0_5 = arith.constant 0 : index
    %c0_6 = arith.constant 0 : index
    %7 = vector.load %arg6[%c0_5, %c0_6] : memref<2x32xf32, #tpu.memory_space<vmem>>, vector<2x32xf32>
    %c0_7 = arith.constant 0 : index
    %c0_8 = arith.constant 0 : index
    %8 = vector.load %arg3[%c0_7, %c0_8] : memref<32x128xf32, #tpu.memory_space<vmem>>, vector<32x128xf32>
    %cst_9 = arith.constant dense<0.000000e+00> : vector<2x128xf32>
    %9 = tpu.matmul %7, %8, %cst_9 {dimension_numbers = #tpu.dot_dimension_numbers<[1], [0], [0], [1], [0, 0, 1, 1], [], []>} : vector<2x32xf32>, vector<32x128xf32>, vector<2x128xf32> -> vector<2x128xf32>
    %10 = arith.addf %6, %9 : vector<2x128xf32>
    %c0_10 = arith.constant 0 : index
    %c0_11 = arith.constant 0 : index
    %11 = vector.load %arg4[%c0_10, %c0_11] : memref<1x128xf32, #tpu.memory_space<vmem>>, vector<1x128xf32>
    %12 = vector.broadcast %11 : vector<1x128xf32> to vector<2x128xf32>
    %13 = arith.addf %10, %12 : vector<2x128xf32>
    %14 = vector.extract_strided_slice %13 {offsets = [0, 0], sizes = [2, 32], strides = [1, 1]} : vector<2x128xf32> to vector<2x32xf32>
    %cst_12 = arith.constant 0.000000e+00 : f32
    %15 = vector.broadcast %cst_12 : f32 to vector<2x32xf32>
    %16 = arith.subf %15, %14 : vector<2x32xf32>
    %17 = math.exp %16 : vector<2x32xf32>
    %cst_13 = arith.constant 1.000000e+00 : f32
    %18 = vector.broadcast %cst_13 : f32 to vector<2x32xf32>
    %19 = arith.addf %18, %17 : vector<2x32xf32>
    %cst_14 = arith.constant 1.000000e+00 : f32
    %20 = vector.broadcast %cst_14 : f32 to vector<2x32xf32>
    %21 = arith.divf %20, %19 : vector<2x32xf32>
    %22 = vector.extract_strided_slice %13 {offsets = [0, 32], sizes = [2, 32], strides = [1, 1]} : vector<2x128xf32> to vector<2x32xf32>
    %cst_15 = arith.constant 0.000000e+00 : f32
    %23 = vector.broadcast %cst_15 : f32 to vector<2x32xf32>
    %24 = arith.subf %23, %22 : vector<2x32xf32>
    %25 = math.exp %24 : vector<2x32xf32>
    %cst_16 = arith.constant 1.000000e+00 : f32
    %26 = vector.broadcast %cst_16 : f32 to vector<2x32xf32>
    %27 = arith.addf %26, %25 : vector<2x32xf32>
    %cst_17 = arith.constant 1.000000e+00 : f32
    %28 = vector.broadcast %cst_17 : f32 to vector<2x32xf32>
    %29 = arith.divf %28, %27 : vector<2x32xf32>
    %30 = vector.extract_strided_slice %13 {offsets = [0, 64], sizes = [2, 32], strides = [1, 1]} : vector<2x128xf32> to vector<2x32xf32>
    %31 = math.tanh %30 : vector<2x32xf32>
    %32 = vector.extract_strided_slice %13 {offsets = [0, 96], sizes = [2, 32], strides = [1, 1]} : vector<2x128xf32> to vector<2x32xf32>
    %cst_18 = arith.constant 0.000000e+00 : f32
    %33 = vector.broadcast %cst_18 : f32 to vector<2x32xf32>
    %34 = arith.subf %33, %32 : vector<2x32xf32>
    %35 = math.exp %34 : vector<2x32xf32>
    %cst_19 = arith.constant 1.000000e+00 : f32
    %36 = vector.broadcast %cst_19 : f32 to vector<2x32xf32>
    %37 = arith.addf %36, %35 : vector<2x32xf32>
    %cst_20 = arith.constant 1.000000e+00 : f32
    %38 = vector.broadcast %cst_20 : f32 to vector<2x32xf32>
    %39 = arith.divf %38, %37 : vector<2x32xf32>
    %c0_21 = arith.constant 0 : index
    %c0_22 = arith.constant 0 : index
    %40 = vector.load %arg7[%c0_21, %c0_22] : memref<2x32xf32, #tpu.memory_space<vmem>>, vector<2x32xf32>
    %41 = arith.mulf %29, %40 : vector<2x32xf32>
    %42 = arith.mulf %21, %31 : vector<2x32xf32>
    %43 = arith.addf %41, %42 : vector<2x32xf32>
    %44 = math.tanh %43 : vector<2x32xf32>
    %45 = arith.mulf %39, %44 : vector<2x32xf32>
    %c0_23 = arith.constant 0 : index
    %c0_24 = arith.constant 0 : index
    %46 = vector.load %arg7[%c0_23, %c0_24] : memref<2x32xf32, #tpu.memory_space<vmem>>, vector<2x32xf32>
    tpu.vector_store %arg7[%c0_23, %c0_24], %43 {strides = array<i32>} : memref<2x32xf32, #tpu.memory_space<vmem>>, vector<2x32xf32>,
    %c0_25 = arith.constant 0 : index
    %c0_26 = arith.constant 0 : index
    %47 = vector.load %arg6[%c0_25, %c0_26] : memref<2x32xf32, #tpu.memory_space<vmem>>, vector<2x32xf32>
    tpu.vector_store %arg6[%c0_25, %c0_26], %45 {strides = array<i32>} : memref<2x32xf32, #tpu.memory_space<vmem>>, vector<2x32xf32>,
    %c0_27 = arith.constant 0 : index
    %c0_28 = arith.constant 0 : index
    %c0_29 = arith.constant 0 : index
    %48 = vector.load %arg5[%c0_27, %c0_28, %c0_29] : memref<1x2x32xf32, #tpu.memory_space<vmem>>, vector<1x2x32xf32>
    %49 = vector.shape_cast %48 : vector<1x2x32xf32> to vector<2x32xf32>
    %50 = vector.shape_cast %45 : vector<2x32xf32> to vector<1x2x32xf32>
    tpu.vector_store %arg5[%c0_27, %c0_28, %c0_29], %50 {strides = array<i32>} : memref<1x2x32xf32, #tpu.memory_space<vmem>>, vector<1x2x32xf32>,
    return
  }
  func.func @transform_0(%arg0: i32) -> (i32, i32, i32) {
    %c7_i32 = arith.constant 7 : i32
    %0 = arith.subi %c7_i32, %arg0 : i32
    %c0_i32 = arith.constant 0 : i32
    %c0_i32_0 = arith.constant 0 : i32
    %c0_i32_1 = arith.constant 0 : i32
    return %0, %c0_i32, %c0_i32_0 : i32, i32, i32
  }
  func.func @transform_1(%arg0: i32) -> (i32, i32) {
    %c0_i32 = arith.constant 0 : i32
    %c0_i32_0 = arith.constant 0 : i32
    %c0_i32_1 = arith.constant 0 : i32
    return %c0_i32, %c0_i32_0 : i32, i32
  }
  func.func @transform_2(%arg0: i32) -> (i32, i32) {
    %c0_i32 = arith.constant 0 : i32
    %c0_i32_0 = arith.constant 0 : i32
    %c0_i32_1 = arith.constant 0 : i32
    return %c0_i32, %c0_i32_0 : i32, i32
  }
  func.func @transform_3(%arg0: i32) -> (i32, i32) {
    %c0_i32 = arith.constant 0 : i32
    %c0_i32_0 = arith.constant 0 : i32
    %c0_i32_1 = arith.constant 0 : i32
    return %c0_i32, %c0_i32_0 : i32, i32
  }
  func.func @transform_4(%arg0: i32) -> (i32, i32, i32) {
    %c7_i32 = arith.constant 7 : i32
    %0 = arith.subi %c7_i32, %arg0 : i32
    %c0_i32 = arith.constant 0 : i32
    %c0_i32_0 = arith.constant 0 : i32
    %c0_i32_1 = arith.constant 0 : i32
    return %0, %c0_i32, %c0_i32_0 : i32, i32, i32
  }
}

module attributes {stable_mosaic.version = 11 : i64} {
  func.func @_lstm_step_kernel(%arg0: i32, %arg1: memref<1x2x264xf32, #tpu.memory_space<vmem>>, %arg2: memref<264x128xf32, #tpu.memory_space<vmem>>, %arg3: memref<32x128xf32, #tpu.memory_space<vmem>>, %arg4: memref<1x128xf32, #tpu.memory_space<vmem>>, %arg5: memref<1x2x32xf32, #tpu.memory_space<vmem>>, %arg6: memref<2x32xf32, #tpu.memory_space<vmem>>, %arg7: memref<2x32xf32, #tpu.memory_space<vmem>>) attributes {dimension_semantics = [#tpu.dimension_semantics<arbitrary>], iteration_bounds = array<i64: 8>, scalar_prefetch = 0 : i64, scratch_operands = 2 : i64, tpu.core_type = #tpu.core_type<tc>, window_params = [{transform_indices = @transform_0, window_bounds = array<i64: 1, 2, 264>}, {pipeline_mode = #tpu.pipeline_mode<synchronous>, transform_indices = @transform_1, window_bounds = array<i64: 264, 128>}, {pipeline_mode = #tpu.pipeline_mode<synchronous>, transform_indices = @transform_2, window_bounds = array<i64: 32, 128>}, {pipeline_mode = #tpu.pipeline_mode<synchronous>, transform_indices = @transform_3, window_bounds = array<i64: 1, 128>}, {transform_indices = @transform_4, window_bounds = array<i64: 1, 2, 32>}]} {
    %c0_i32 = arith.constant 0 : i32
    %0 = arith.cmpi eq, %arg0, %c0_i32 : i32
    %1 = arith.extui %0 : i1 to i32
    %c0_i32_0 = arith.constant 0 : i32
    %2 = arith.cmpi ne, %1, %c0_i32_0 : i32
    scf.if %2 {
      %cst_30 = arith.constant 0.000000e+00 : f32
      %51 = vector.broadcast %cst_30 : f32 to vector<2x32xf32>
      %c0_31 = arith.constant 0 : index
      %c0_32 = arith.constant 0 : index
      %52 = vector.load %arg6[%c0_31, %c0_32] : memref<2x32xf32, #tpu.memory_space<vmem>>, vector<2x32xf32>
      tpu.vector_store %arg6[%c0_31, %c0_32], %51 {strides = array<i32>} : memref<2x32xf32, #tpu.memory_space<vmem>>, vector<2x32xf32>,
      %cst_33 = arith.constant 0.000000e+00 : f32
      %53 = vector.broadcast %cst_33 : f32 to vector<2x32xf32>
      %c0_34 = arith.constant 0 : index
      %c0_35 = arith.constant 0 : index
      %54 = vector.load %arg7[%c0_34, %c0_35] : memref<2x32xf32, #tpu.memory_space<vmem>>, vector<2x32xf32>
      tpu.vector_store %arg7[%c0_34, %c0_35], %53 {strides = array<i32>} : memref<2x32xf32, #tpu.memory_space<vmem>>, vector<2x32xf32>,
    } else {
    }
    %c0 = arith.constant 0 : index
    %c0_1 = arith.constant 0 : index
    %c0_2 = arith.constant 0 : index
    %3 = vector.load %arg1[%c0, %c0_1, %c0_2] : memref<1x2x264xf32, #tpu.memory_space<vmem>>, vector<1x2x264xf32>
    %4 = vector.shape_cast %3 : vector<1x2x264xf32> to vector<2x264xf32>
    %c0_3 = arith.constant 0 : index
    %c0_4 = arith.constant 0 : index
    %5 = vector.load %arg2[%c0_3, %c0_4] : memref<264x128xf32, #tpu.memory_space<vmem>>, vector<264x128xf32>
    %cst = arith.constant dense<0.000000e+00> : vector<2x128xf32>
    %6 = tpu.matmul %4, %5, %cst {dimension_numbers = #tpu.dot_dimension_numbers<[1], [0], [0], [1], [0, 0, 1, 1], [], []>} : vector<2x264xf32>, vector<264x128xf32>, vector<2x128xf32> -> vector<2x128xf32>
    %c0_5 = arith.constant 0 : index
    %c0_6 = arith.constant 0 : index
    %7 = vector.load %arg6[%c0_5, %c0_6] : memref<2x32xf32, #tpu.memory_space<vmem>>, vector<2x32xf32>
    %c0_7 = arith.constant 0 : index
    %c0_8 = arith.constant 0 : index
    %8 = vector.load %arg3[%c0_7, %c0_8] : memref<32x128xf32, #tpu.memory_space<vmem>>, vector<32x128xf32>
    %cst_9 = arith.constant dense<0.000000e+00> : vector<2x128xf32>
    %9 = tpu.matmul %7, %8, %cst_9 {dimension_numbers = #tpu.dot_dimension_numbers<[1], [0], [0], [1], [0, 0, 1, 1], [], []>} : vector<2x32xf32>, vector<32x128xf32>, vector<2x128xf32> -> vector<2x128xf32>
    %10 = arith.addf %6, %9 : vector<2x128xf32>
    %c0_10 = arith.constant 0 : index
    %c0_11 = arith.constant 0 : index
    %11 = vector.load %arg4[%c0_10, %c0_11] : memref<1x128xf32, #tpu.memory_space<vmem>>, vector<1x128xf32>
    %12 = vector.broadcast %11 : vector<1x128xf32> to vector<2x128xf32>
    %13 = arith.addf %10, %12 : vector<2x128xf32>
    %14 = vector.extract_strided_slice %13 {offsets = [0, 0], sizes = [2, 32], strides = [1, 1]} : vector<2x128xf32> to vector<2x32xf32>
    %cst_12 = arith.constant 0.000000e+00 : f32
    %15 = vector.broadcast %cst_12 : f32 to vector<2x32xf32>
    %16 = arith.subf %15, %14 : vector<2x32xf32>
    %17 = math.exp %16 : vector<2x32xf32>
    %cst_13 = arith.constant 1.000000e+00 : f32
    %18 = vector.broadcast %cst_13 : f32 to vector<2x32xf32>
    %19 = arith.addf %18, %17 : vector<2x32xf32>
    %cst_14 = arith.constant 1.000000e+00 : f32
    %20 = vector.broadcast %cst_14 : f32 to vector<2x32xf32>
    %21 = arith.divf %20, %19 : vector<2x32xf32>
    %22 = vector.extract_strided_slice %13 {offsets = [0, 32], sizes = [2, 32], strides = [1, 1]} : vector<2x128xf32> to vector<2x32xf32>
    %cst_15 = arith.constant 0.000000e+00 : f32
    %23 = vector.broadcast %cst_15 : f32 to vector<2x32xf32>
    %24 = arith.subf %23, %22 : vector<2x32xf32>
    %25 = math.exp %24 : vector<2x32xf32>
    %cst_16 = arith.constant 1.000000e+00 : f32
    %26 = vector.broadcast %cst_16 : f32 to vector<2x32xf32>
    %27 = arith.addf %26, %25 : vector<2x32xf32>
    %cst_17 = arith.constant 1.000000e+00 : f32
    %28 = vector.broadcast %cst_17 : f32 to vector<2x32xf32>
    %29 = arith.divf %28, %27 : vector<2x32xf32>
    %30 = vector.extract_strided_slice %13 {offsets = [0, 64], sizes = [2, 32], strides = [1, 1]} : vector<2x128xf32> to vector<2x32xf32>
    %31 = math.tanh %30 : vector<2x32xf32>
    %32 = vector.extract_strided_slice %13 {offsets = [0, 96], sizes = [2, 32], strides = [1, 1]} : vector<2x128xf32> to vector<2x32xf32>
    %cst_18 = arith.constant 0.000000e+00 : f32
    %33 = vector.broadcast %cst_18 : f32 to vector<2x32xf32>
    %34 = arith.subf %33, %32 : vector<2x32xf32>
    %35 = math.exp %34 : vector<2x32xf32>
    %cst_19 = arith.constant 1.000000e+00 : f32
    %36 = vector.broadcast %cst_19 : f32 to vector<2x32xf32>
    %37 = arith.addf %36, %35 : vector<2x32xf32>
    %cst_20 = arith.constant 1.000000e+00 : f32
    %38 = vector.broadcast %cst_20 : f32 to vector<2x32xf32>
    %39 = arith.divf %38, %37 : vector<2x32xf32>
    %c0_21 = arith.constant 0 : index
    %c0_22 = arith.constant 0 : index
    %40 = vector.load %arg7[%c0_21, %c0_22] : memref<2x32xf32, #tpu.memory_space<vmem>>, vector<2x32xf32>
    %41 = arith.mulf %29, %40 : vector<2x32xf32>
    %42 = arith.mulf %21, %31 : vector<2x32xf32>
    %43 = arith.addf %41, %42 : vector<2x32xf32>
    %44 = math.tanh %43 : vector<2x32xf32>
    %45 = arith.mulf %39, %44 : vector<2x32xf32>
    %c0_23 = arith.constant 0 : index
    %c0_24 = arith.constant 0 : index
    %46 = vector.load %arg7[%c0_23, %c0_24] : memref<2x32xf32, #tpu.memory_space<vmem>>, vector<2x32xf32>
    tpu.vector_store %arg7[%c0_23, %c0_24], %43 {strides = array<i32>} : memref<2x32xf32, #tpu.memory_space<vmem>>, vector<2x32xf32>,
    %c0_25 = arith.constant 0 : index
    %c0_26 = arith.constant 0 : index
    %47 = vector.load %arg6[%c0_25, %c0_26] : memref<2x32xf32, #tpu.memory_space<vmem>>, vector<2x32xf32>
    tpu.vector_store %arg6[%c0_25, %c0_26], %45 {strides = array<i32>} : memref<2x32xf32, #tpu.memory_space<vmem>>, vector<2x32xf32>,
    %c0_27 = arith.constant 0 : index
    %c0_28 = arith.constant 0 : index
    %c0_29 = arith.constant 0 : index
    %48 = vector.load %arg5[%c0_27, %c0_28, %c0_29] : memref<1x2x32xf32, #tpu.memory_space<vmem>>, vector<1x2x32xf32>
    %49 = vector.shape_cast %48 : vector<1x2x32xf32> to vector<2x32xf32>
    %50 = vector.shape_cast %45 : vector<2x32xf32> to vector<1x2x32xf32>
    tpu.vector_store %arg5[%c0_27, %c0_28, %c0_29], %50 {strides = array<i32>} : memref<1x2x32xf32, #tpu.memory_space<vmem>>, vector<1x2x32xf32>,
    return
  }
  func.func @transform_0(%arg0: i32) -> (i32, i32, i32) {
    %c0_i32 = arith.constant 0 : i32
    %c0_i32_0 = arith.constant 0 : i32
    %c0_i32_1 = arith.constant 0 : i32
    return %arg0, %c0_i32, %c0_i32_0 : i32, i32, i32
  }
  func.func @transform_1(%arg0: i32) -> (i32, i32) {
    %c0_i32 = arith.constant 0 : i32
    %c0_i32_0 = arith.constant 0 : i32
    %c0_i32_1 = arith.constant 0 : i32
    return %c0_i32, %c0_i32_0 : i32, i32
  }
  func.func @transform_2(%arg0: i32) -> (i32, i32) {
    %c0_i32 = arith.constant 0 : i32
    %c0_i32_0 = arith.constant 0 : i32
    %c0_i32_1 = arith.constant 0 : i32
    return %c0_i32, %c0_i32_0 : i32, i32
  }
  func.func @transform_3(%arg0: i32) -> (i32, i32) {
    %c0_i32 = arith.constant 0 : i32
    %c0_i32_0 = arith.constant 0 : i32
    %c0_i32_1 = arith.constant 0 : i32
    return %c0_i32, %c0_i32_0 : i32, i32
  }
  func.func @transform_4(%arg0: i32) -> (i32, i32, i32) {
    %c0_i32 = arith.constant 0 : i32
    %c0_i32_0 = arith.constant 0 : i32
    %c0_i32_1 = arith.constant 0 : i32
    return %arg0, %c0_i32, %c0_i32_0 : i32, i32, i32
  }
}

module attributes {stable_mosaic.version = 11 : i64} {
  func.func @_lstm_step_kernel(%arg0: i32, %arg1: memref<1x2x64xf32, #tpu.memory_space<vmem>>, %arg2: memref<64x128xf32, #tpu.memory_space<vmem>>, %arg3: memref<32x128xf32, #tpu.memory_space<vmem>>, %arg4: memref<1x128xf32, #tpu.memory_space<vmem>>, %arg5: memref<1x2x32xf32, #tpu.memory_space<vmem>>, %arg6: memref<2x32xf32, #tpu.memory_space<vmem>>, %arg7: memref<2x32xf32, #tpu.memory_space<vmem>>) attributes {dimension_semantics = [#tpu.dimension_semantics<arbitrary>], iteration_bounds = array<i64: 8>, scalar_prefetch = 0 : i64, scratch_operands = 2 : i64, tpu.core_type = #tpu.core_type<tc>, window_params = [{transform_indices = @transform_0, window_bounds = array<i64: 1, 2, 64>}, {pipeline_mode = #tpu.pipeline_mode<synchronous>, transform_indices = @transform_1, window_bounds = array<i64: 64, 128>}, {pipeline_mode = #tpu.pipeline_mode<synchronous>, transform_indices = @transform_2, window_bounds = array<i64: 32, 128>}, {pipeline_mode = #tpu.pipeline_mode<synchronous>, transform_indices = @transform_3, window_bounds = array<i64: 1, 128>}, {transform_indices = @transform_4, window_bounds = array<i64: 1, 2, 32>}]} {
    %c0_i32 = arith.constant 0 : i32
    %0 = arith.cmpi eq, %arg0, %c0_i32 : i32
    %1 = arith.extui %0 : i1 to i32
    %c0_i32_0 = arith.constant 0 : i32
    %2 = arith.cmpi ne, %1, %c0_i32_0 : i32
    scf.if %2 {
      %cst_30 = arith.constant 0.000000e+00 : f32
      %51 = vector.broadcast %cst_30 : f32 to vector<2x32xf32>
      %c0_31 = arith.constant 0 : index
      %c0_32 = arith.constant 0 : index
      %52 = vector.load %arg6[%c0_31, %c0_32] : memref<2x32xf32, #tpu.memory_space<vmem>>, vector<2x32xf32>
      tpu.vector_store %arg6[%c0_31, %c0_32], %51 {strides = array<i32>} : memref<2x32xf32, #tpu.memory_space<vmem>>, vector<2x32xf32>,
      %cst_33 = arith.constant 0.000000e+00 : f32
      %53 = vector.broadcast %cst_33 : f32 to vector<2x32xf32>
      %c0_34 = arith.constant 0 : index
      %c0_35 = arith.constant 0 : index
      %54 = vector.load %arg7[%c0_34, %c0_35] : memref<2x32xf32, #tpu.memory_space<vmem>>, vector<2x32xf32>
      tpu.vector_store %arg7[%c0_34, %c0_35], %53 {strides = array<i32>} : memref<2x32xf32, #tpu.memory_space<vmem>>, vector<2x32xf32>,
    } else {
    }
    %c0 = arith.constant 0 : index
    %c0_1 = arith.constant 0 : index
    %c0_2 = arith.constant 0 : index
    %3 = vector.load %arg1[%c0, %c0_1, %c0_2] : memref<1x2x64xf32, #tpu.memory_space<vmem>>, vector<1x2x64xf32>
    %4 = vector.shape_cast %3 : vector<1x2x64xf32> to vector<2x64xf32>
    %c0_3 = arith.constant 0 : index
    %c0_4 = arith.constant 0 : index
    %5 = vector.load %arg2[%c0_3, %c0_4] : memref<64x128xf32, #tpu.memory_space<vmem>>, vector<64x128xf32>
    %cst = arith.constant dense<0.000000e+00> : vector<2x128xf32>
    %6 = tpu.matmul %4, %5, %cst {dimension_numbers = #tpu.dot_dimension_numbers<[1], [0], [0], [1], [0, 0, 1, 1], [], []>} : vector<2x64xf32>, vector<64x128xf32>, vector<2x128xf32> -> vector<2x128xf32>
    %c0_5 = arith.constant 0 : index
    %c0_6 = arith.constant 0 : index
    %7 = vector.load %arg6[%c0_5, %c0_6] : memref<2x32xf32, #tpu.memory_space<vmem>>, vector<2x32xf32>
    %c0_7 = arith.constant 0 : index
    %c0_8 = arith.constant 0 : index
    %8 = vector.load %arg3[%c0_7, %c0_8] : memref<32x128xf32, #tpu.memory_space<vmem>>, vector<32x128xf32>
    %cst_9 = arith.constant dense<0.000000e+00> : vector<2x128xf32>
    %9 = tpu.matmul %7, %8, %cst_9 {dimension_numbers = #tpu.dot_dimension_numbers<[1], [0], [0], [1], [0, 0, 1, 1], [], []>} : vector<2x32xf32>, vector<32x128xf32>, vector<2x128xf32> -> vector<2x128xf32>
    %10 = arith.addf %6, %9 : vector<2x128xf32>
    %c0_10 = arith.constant 0 : index
    %c0_11 = arith.constant 0 : index
    %11 = vector.load %arg4[%c0_10, %c0_11] : memref<1x128xf32, #tpu.memory_space<vmem>>, vector<1x128xf32>
    %12 = vector.broadcast %11 : vector<1x128xf32> to vector<2x128xf32>
    %13 = arith.addf %10, %12 : vector<2x128xf32>
    %14 = vector.extract_strided_slice %13 {offsets = [0, 0], sizes = [2, 32], strides = [1, 1]} : vector<2x128xf32> to vector<2x32xf32>
    %cst_12 = arith.constant 0.000000e+00 : f32
    %15 = vector.broadcast %cst_12 : f32 to vector<2x32xf32>
    %16 = arith.subf %15, %14 : vector<2x32xf32>
    %17 = math.exp %16 : vector<2x32xf32>
    %cst_13 = arith.constant 1.000000e+00 : f32
    %18 = vector.broadcast %cst_13 : f32 to vector<2x32xf32>
    %19 = arith.addf %18, %17 : vector<2x32xf32>
    %cst_14 = arith.constant 1.000000e+00 : f32
    %20 = vector.broadcast %cst_14 : f32 to vector<2x32xf32>
    %21 = arith.divf %20, %19 : vector<2x32xf32>
    %22 = vector.extract_strided_slice %13 {offsets = [0, 32], sizes = [2, 32], strides = [1, 1]} : vector<2x128xf32> to vector<2x32xf32>
    %cst_15 = arith.constant 0.000000e+00 : f32
    %23 = vector.broadcast %cst_15 : f32 to vector<2x32xf32>
    %24 = arith.subf %23, %22 : vector<2x32xf32>
    %25 = math.exp %24 : vector<2x32xf32>
    %cst_16 = arith.constant 1.000000e+00 : f32
    %26 = vector.broadcast %cst_16 : f32 to vector<2x32xf32>
    %27 = arith.addf %26, %25 : vector<2x32xf32>
    %cst_17 = arith.constant 1.000000e+00 : f32
    %28 = vector.broadcast %cst_17 : f32 to vector<2x32xf32>
    %29 = arith.divf %28, %27 : vector<2x32xf32>
    %30 = vector.extract_strided_slice %13 {offsets = [0, 64], sizes = [2, 32], strides = [1, 1]} : vector<2x128xf32> to vector<2x32xf32>
    %31 = math.tanh %30 : vector<2x32xf32>
    %32 = vector.extract_strided_slice %13 {offsets = [0, 96], sizes = [2, 32], strides = [1, 1]} : vector<2x128xf32> to vector<2x32xf32>
    %cst_18 = arith.constant 0.000000e+00 : f32
    %33 = vector.broadcast %cst_18 : f32 to vector<2x32xf32>
    %34 = arith.subf %33, %32 : vector<2x32xf32>
    %35 = math.exp %34 : vector<2x32xf32>
    %cst_19 = arith.constant 1.000000e+00 : f32
    %36 = vector.broadcast %cst_19 : f32 to vector<2x32xf32>
    %37 = arith.addf %36, %35 : vector<2x32xf32>
    %cst_20 = arith.constant 1.000000e+00 : f32
    %38 = vector.broadcast %cst_20 : f32 to vector<2x32xf32>
    %39 = arith.divf %38, %37 : vector<2x32xf32>
    %c0_21 = arith.constant 0 : index
    %c0_22 = arith.constant 0 : index
    %40 = vector.load %arg7[%c0_21, %c0_22] : memref<2x32xf32, #tpu.memory_space<vmem>>, vector<2x32xf32>
    %41 = arith.mulf %29, %40 : vector<2x32xf32>
    %42 = arith.mulf %21, %31 : vector<2x32xf32>
    %43 = arith.addf %41, %42 : vector<2x32xf32>
    %44 = math.tanh %43 : vector<2x32xf32>
    %45 = arith.mulf %39, %44 : vector<2x32xf32>
    %c0_23 = arith.constant 0 : index
    %c0_24 = arith.constant 0 : index
    %46 = vector.load %arg7[%c0_23, %c0_24] : memref<2x32xf32, #tpu.memory_space<vmem>>, vector<2x32xf32>
    tpu.vector_store %arg7[%c0_23, %c0_24], %43 {strides = array<i32>} : memref<2x32xf32, #tpu.memory_space<vmem>>, vector<2x32xf32>,
    %c0_25 = arith.constant 0 : index
    %c0_26 = arith.constant 0 : index
    %47 = vector.load %arg6[%c0_25, %c0_26] : memref<2x32xf32, #tpu.memory_space<vmem>>, vector<2x32xf32>
    tpu.vector_store %arg6[%c0_25, %c0_26], %45 {strides = array<i32>} : memref<2x32xf32, #tpu.memory_space<vmem>>, vector<2x32xf32>,
    %c0_27 = arith.constant 0 : index
    %c0_28 = arith.constant 0 : index
    %c0_29 = arith.constant 0 : index
    %48 = vector.load %arg5[%c0_27, %c0_28, %c0_29] : memref<1x2x32xf32, #tpu.memory_space<vmem>>, vector<1x2x32xf32>
    %49 = vector.shape_cast %48 : vector<1x2x32xf32> to vector<2x32xf32>
    %50 = vector.shape_cast %45 : vector<2x32xf32> to vector<1x2x32xf32>
    tpu.vector_store %arg5[%c0_27, %c0_28, %c0_29], %50 {strides = array<i32>} : memref<1x2x32xf32, #tpu.memory_space<vmem>>, vector<1x2x32xf32>,
    return
  }
  func.func @transform_0(%arg0: i32) -> (i32, i32, i32) {
    %c7_i32 = arith.constant 7 : i32
    %0 = arith.subi %c7_i32, %arg0 : i32
    %c0_i32 = arith.constant 0 : i32
    %c0_i32_0 = arith.constant 0 : i32
    %c0_i32_1 = arith.constant 0 : i32
    return %0, %c0_i32, %c0_i32_0 : i32, i32, i32
  }
  func.func @transform_1(%arg0: i32) -> (i32, i32) {
    %c0_i32 = arith.constant 0 : i32
    %c0_i32_0 = arith.constant 0 : i32
    %c0_i32_1 = arith.constant 0 : i32
    return %c0_i32, %c0_i32_0 : i32, i32
  }
  func.func @transform_2(%arg0: i32) -> (i32, i32) {
    %c0_i32 = arith.constant 0 : i32
    %c0_i32_0 = arith.constant 0 : i32
    %c0_i32_1 = arith.constant 0 : i32
    return %c0_i32, %c0_i32_0 : i32, i32
  }
  func.func @transform_3(%arg0: i32) -> (i32, i32) {
    %c0_i32 = arith.constant 0 : i32
    %c0_i32_0 = arith.constant 0 : i32
    %c0_i32_1 = arith.constant 0 : i32
    return %c0_i32, %c0_i32_0 : i32, i32
  }
  func.func @transform_4(%arg0: i32) -> (i32, i32, i32) {
    %c7_i32 = arith.constant 7 : i32
    %0 = arith.subi %c7_i32, %arg0 : i32
    %c0_i32 = arith.constant 0 : i32
    %c0_i32_0 = arith.constant 0 : i32
    %c0_i32_1 = arith.constant 0 : i32
    return %0, %c0_i32, %c0_i32_0 : i32, i32, i32
  }
}

module attributes {stable_mosaic.version = 11 : i64} {
  func.func @_lstm_step_kernel(%arg0: i32, %arg1: memref<1x2x64xf32, #tpu.memory_space<vmem>>, %arg2: memref<64x128xf32, #tpu.memory_space<vmem>>, %arg3: memref<32x128xf32, #tpu.memory_space<vmem>>, %arg4: memref<1x128xf32, #tpu.memory_space<vmem>>, %arg5: memref<1x2x32xf32, #tpu.memory_space<vmem>>, %arg6: memref<2x32xf32, #tpu.memory_space<vmem>>, %arg7: memref<2x32xf32, #tpu.memory_space<vmem>>) attributes {dimension_semantics = [#tpu.dimension_semantics<arbitrary>], iteration_bounds = array<i64: 8>, scalar_prefetch = 0 : i64, scratch_operands = 2 : i64, tpu.core_type = #tpu.core_type<tc>, window_params = [{transform_indices = @transform_0, window_bounds = array<i64: 1, 2, 64>}, {pipeline_mode = #tpu.pipeline_mode<synchronous>, transform_indices = @transform_1, window_bounds = array<i64: 64, 128>}, {pipeline_mode = #tpu.pipeline_mode<synchronous>, transform_indices = @transform_2, window_bounds = array<i64: 32, 128>}, {pipeline_mode = #tpu.pipeline_mode<synchronous>, transform_indices = @transform_3, window_bounds = array<i64: 1, 128>}, {transform_indices = @transform_4, window_bounds = array<i64: 1, 2, 32>}]} {
    %c0_i32 = arith.constant 0 : i32
    %0 = arith.cmpi eq, %arg0, %c0_i32 : i32
    %1 = arith.extui %0 : i1 to i32
    %c0_i32_0 = arith.constant 0 : i32
    %2 = arith.cmpi ne, %1, %c0_i32_0 : i32
    scf.if %2 {
      %cst_30 = arith.constant 0.000000e+00 : f32
      %51 = vector.broadcast %cst_30 : f32 to vector<2x32xf32>
      %c0_31 = arith.constant 0 : index
      %c0_32 = arith.constant 0 : index
      %52 = vector.load %arg6[%c0_31, %c0_32] : memref<2x32xf32, #tpu.memory_space<vmem>>, vector<2x32xf32>
      tpu.vector_store %arg6[%c0_31, %c0_32], %51 {strides = array<i32>} : memref<2x32xf32, #tpu.memory_space<vmem>>, vector<2x32xf32>,
      %cst_33 = arith.constant 0.000000e+00 : f32
      %53 = vector.broadcast %cst_33 : f32 to vector<2x32xf32>
      %c0_34 = arith.constant 0 : index
      %c0_35 = arith.constant 0 : index
      %54 = vector.load %arg7[%c0_34, %c0_35] : memref<2x32xf32, #tpu.memory_space<vmem>>, vector<2x32xf32>
      tpu.vector_store %arg7[%c0_34, %c0_35], %53 {strides = array<i32>} : memref<2x32xf32, #tpu.memory_space<vmem>>, vector<2x32xf32>,
    } else {
    }
    %c0 = arith.constant 0 : index
    %c0_1 = arith.constant 0 : index
    %c0_2 = arith.constant 0 : index
    %3 = vector.load %arg1[%c0, %c0_1, %c0_2] : memref<1x2x64xf32, #tpu.memory_space<vmem>>, vector<1x2x64xf32>
    %4 = vector.shape_cast %3 : vector<1x2x64xf32> to vector<2x64xf32>
    %c0_3 = arith.constant 0 : index
    %c0_4 = arith.constant 0 : index
    %5 = vector.load %arg2[%c0_3, %c0_4] : memref<64x128xf32, #tpu.memory_space<vmem>>, vector<64x128xf32>
    %cst = arith.constant dense<0.000000e+00> : vector<2x128xf32>
    %6 = tpu.matmul %4, %5, %cst {dimension_numbers = #tpu.dot_dimension_numbers<[1], [0], [0], [1], [0, 0, 1, 1], [], []>} : vector<2x64xf32>, vector<64x128xf32>, vector<2x128xf32> -> vector<2x128xf32>
    %c0_5 = arith.constant 0 : index
    %c0_6 = arith.constant 0 : index
    %7 = vector.load %arg6[%c0_5, %c0_6] : memref<2x32xf32, #tpu.memory_space<vmem>>, vector<2x32xf32>
    %c0_7 = arith.constant 0 : index
    %c0_8 = arith.constant 0 : index
    %8 = vector.load %arg3[%c0_7, %c0_8] : memref<32x128xf32, #tpu.memory_space<vmem>>, vector<32x128xf32>
    %cst_9 = arith.constant dense<0.000000e+00> : vector<2x128xf32>
    %9 = tpu.matmul %7, %8, %cst_9 {dimension_numbers = #tpu.dot_dimension_numbers<[1], [0], [0], [1], [0, 0, 1, 1], [], []>} : vector<2x32xf32>, vector<32x128xf32>, vector<2x128xf32> -> vector<2x128xf32>
    %10 = arith.addf %6, %9 : vector<2x128xf32>
    %c0_10 = arith.constant 0 : index
    %c0_11 = arith.constant 0 : index
    %11 = vector.load %arg4[%c0_10, %c0_11] : memref<1x128xf32, #tpu.memory_space<vmem>>, vector<1x128xf32>
    %12 = vector.broadcast %11 : vector<1x128xf32> to vector<2x128xf32>
    %13 = arith.addf %10, %12 : vector<2x128xf32>
    %14 = vector.extract_strided_slice %13 {offsets = [0, 0], sizes = [2, 32], strides = [1, 1]} : vector<2x128xf32> to vector<2x32xf32>
    %cst_12 = arith.constant 0.000000e+00 : f32
    %15 = vector.broadcast %cst_12 : f32 to vector<2x32xf32>
    %16 = arith.subf %15, %14 : vector<2x32xf32>
    %17 = math.exp %16 : vector<2x32xf32>
    %cst_13 = arith.constant 1.000000e+00 : f32
    %18 = vector.broadcast %cst_13 : f32 to vector<2x32xf32>
    %19 = arith.addf %18, %17 : vector<2x32xf32>
    %cst_14 = arith.constant 1.000000e+00 : f32
    %20 = vector.broadcast %cst_14 : f32 to vector<2x32xf32>
    %21 = arith.divf %20, %19 : vector<2x32xf32>
    %22 = vector.extract_strided_slice %13 {offsets = [0, 32], sizes = [2, 32], strides = [1, 1]} : vector<2x128xf32> to vector<2x32xf32>
    %cst_15 = arith.constant 0.000000e+00 : f32
    %23 = vector.broadcast %cst_15 : f32 to vector<2x32xf32>
    %24 = arith.subf %23, %22 : vector<2x32xf32>
    %25 = math.exp %24 : vector<2x32xf32>
    %cst_16 = arith.constant 1.000000e+00 : f32
    %26 = vector.broadcast %cst_16 : f32 to vector<2x32xf32>
    %27 = arith.addf %26, %25 : vector<2x32xf32>
    %cst_17 = arith.constant 1.000000e+00 : f32
    %28 = vector.broadcast %cst_17 : f32 to vector<2x32xf32>
    %29 = arith.divf %28, %27 : vector<2x32xf32>
    %30 = vector.extract_strided_slice %13 {offsets = [0, 64], sizes = [2, 32], strides = [1, 1]} : vector<2x128xf32> to vector<2x32xf32>
    %31 = math.tanh %30 : vector<2x32xf32>
    %32 = vector.extract_strided_slice %13 {offsets = [0, 96], sizes = [2, 32], strides = [1, 1]} : vector<2x128xf32> to vector<2x32xf32>
    %cst_18 = arith.constant 0.000000e+00 : f32
    %33 = vector.broadcast %cst_18 : f32 to vector<2x32xf32>
    %34 = arith.subf %33, %32 : vector<2x32xf32>
    %35 = math.exp %34 : vector<2x32xf32>
    %cst_19 = arith.constant 1.000000e+00 : f32
    %36 = vector.broadcast %cst_19 : f32 to vector<2x32xf32>
    %37 = arith.addf %36, %35 : vector<2x32xf32>
    %cst_20 = arith.constant 1.000000e+00 : f32
    %38 = vector.broadcast %cst_20 : f32 to vector<2x32xf32>
    %39 = arith.divf %38, %37 : vector<2x32xf32>
    %c0_21 = arith.constant 0 : index
    %c0_22 = arith.constant 0 : index
    %40 = vector.load %arg7[%c0_21, %c0_22] : memref<2x32xf32, #tpu.memory_space<vmem>>, vector<2x32xf32>
    %41 = arith.mulf %29, %40 : vector<2x32xf32>
    %42 = arith.mulf %21, %31 : vector<2x32xf32>
    %43 = arith.addf %41, %42 : vector<2x32xf32>
    %44 = math.tanh %43 : vector<2x32xf32>
    %45 = arith.mulf %39, %44 : vector<2x32xf32>
    %c0_23 = arith.constant 0 : index
    %c0_24 = arith.constant 0 : index
    %46 = vector.load %arg7[%c0_23, %c0_24] : memref<2x32xf32, #tpu.memory_space<vmem>>, vector<2x32xf32>
    tpu.vector_store %arg7[%c0_23, %c0_24], %43 {strides = array<i32>} : memref<2x32xf32, #tpu.memory_space<vmem>>, vector<2x32xf32>,
    %c0_25 = arith.constant 0 : index
    %c0_26 = arith.constant 0 : index
    %47 = vector.load %arg6[%c0_25, %c0_26] : memref<2x32xf32, #tpu.memory_space<vmem>>, vector<2x32xf32>
    tpu.vector_store %arg6[%c0_25, %c0_26], %45 {strides = array<i32>} : memref<2x32xf32, #tpu.memory_space<vmem>>, vector<2x32xf32>,
    %c0_27 = arith.constant 0 : index
    %c0_28 = arith.constant 0 : index
    %c0_29 = arith.constant 0 : index
    %48 = vector.load %arg5[%c0_27, %c0_28, %c0_29] : memref<1x2x32xf32, #tpu.memory_space<vmem>>, vector<1x2x32xf32>
    %49 = vector.shape_cast %48 : vector<1x2x32xf32> to vector<2x32xf32>
    %50 = vector.shape_cast %45 : vector<2x32xf32> to vector<1x2x32xf32>
    tpu.vector_store %arg5[%c0_27, %c0_28, %c0_29], %50 {strides = array<i32>} : memref<1x2x32xf32, #tpu.memory_space<vmem>>, vector<1x2x32xf32>,
    return
  }
  func.func @transform_0(%arg0: i32) -> (i32, i32, i32) {
    %c0_i32 = arith.constant 0 : i32
    %c0_i32_0 = arith.constant 0 : i32
    %c0_i32_1 = arith.constant 0 : i32
    return %arg0, %c0_i32, %c0_i32_0 : i32, i32, i32
  }
  func.func @transform_1(%arg0: i32) -> (i32, i32) {
    %c0_i32 = arith.constant 0 : i32
    %c0_i32_0 = arith.constant 0 : i32
    %c0_i32_1 = arith.constant 0 : i32
    return %c0_i32, %c0_i32_0 : i32, i32
  }
  func.func @transform_2(%arg0: i32) -> (i32, i32) {
    %c0_i32 = arith.constant 0 : i32
    %c0_i32_0 = arith.constant 0 : i32
    %c0_i32_1 = arith.constant 0 : i32
    return %c0_i32, %c0_i32_0 : i32, i32
  }
  func.func @transform_3(%arg0: i32) -> (i32, i32) {
    %c0_i32 = arith.constant 0 : i32
    %c0_i32_0 = arith.constant 0 : i32
    %c0_i32_1 = arith.constant 0 : i32
    return %c0_i32, %c0_i32_0 : i32, i32
  }
  func.func @transform_4(%arg0: i32) -> (i32, i32, i32) {
    %c0_i32 = arith.constant 0 : i32
    %c0_i32_0 = arith.constant 0 : i32
    %c0_i32_1 = arith.constant 0 : i32
    return %arg0, %c0_i32, %c0_i32_0 : i32, i32, i32
  }
}

module attributes {stable_mosaic.version = 11 : i64} {
  func.func @_mlp_head_kernel(%arg0: memref<16x64xf32, #tpu.memory_space<vmem>>, %arg1: memref<64x256xf32, #tpu.memory_space<vmem>>, %arg2: memref<1x256xf32, #tpu.memory_space<vmem>>, %arg3: memref<256x128xf32, #tpu.memory_space<vmem>>, %arg4: memref<1x128xf32, #tpu.memory_space<vmem>>, %arg5: memref<128x64xf32, #tpu.memory_space<vmem>>, %arg6: memref<1x64xf32, #tpu.memory_space<vmem>>, %arg7: memref<64x1xf32, #tpu.memory_space<vmem>>, %arg8: memref<1x1xf32, #tpu.memory_space<vmem>>, %arg9: memref<16x1xf32, #tpu.memory_space<vmem>>) attributes {dimension_semantics = [], scalar_prefetch = 0 : i64, scratch_operands = 0 : i64, tpu.core_type = #tpu.core_type<tc>} {
    %c0 = arith.constant 0 : index
    %c0_0 = arith.constant 0 : index
    %0 = vector.load %arg0[%c0, %c0_0] : memref<16x64xf32, #tpu.memory_space<vmem>>, vector<16x64xf32>
    %c0_1 = arith.constant 0 : index
    %c0_2 = arith.constant 0 : index
    %1 = vector.load %arg1[%c0_1, %c0_2] : memref<64x256xf32, #tpu.memory_space<vmem>>, vector<64x256xf32>
    %cst = arith.constant dense<0.000000e+00> : vector<16x256xf32>
    %2 = tpu.matmul %0, %1, %cst {dimension_numbers = #tpu.dot_dimension_numbers<[1], [0], [0], [1], [0, 0, 1, 1], [], []>} : vector<16x64xf32>, vector<64x256xf32>, vector<16x256xf32> -> vector<16x256xf32>
    %c0_3 = arith.constant 0 : index
    %c0_4 = arith.constant 0 : index
    %3 = vector.load %arg2[%c0_3, %c0_4] : memref<1x256xf32, #tpu.memory_space<vmem>>, vector<1x256xf32>
    %4 = vector.broadcast %3 : vector<1x256xf32> to vector<16x256xf32>
    %5 = arith.addf %2, %4 : vector<16x256xf32>
    %cst_5 = arith.constant 0.000000e+00 : f32
    %6 = vector.broadcast %cst_5 : f32 to vector<16x256xf32>
    %7 = arith.maximumf %5, %6 : vector<16x256xf32>
    %c0_6 = arith.constant 0 : index
    %c0_7 = arith.constant 0 : index
    %8 = vector.load %arg3[%c0_6, %c0_7] : memref<256x128xf32, #tpu.memory_space<vmem>>, vector<256x128xf32>
    %cst_8 = arith.constant dense<0.000000e+00> : vector<16x128xf32>
    %9 = tpu.matmul %7, %8, %cst_8 {dimension_numbers = #tpu.dot_dimension_numbers<[1], [0], [0], [1], [0, 0, 1, 1], [], []>} : vector<16x256xf32>, vector<256x128xf32>, vector<16x128xf32> -> vector<16x128xf32>
    %c0_9 = arith.constant 0 : index
    %c0_10 = arith.constant 0 : index
    %10 = vector.load %arg4[%c0_9, %c0_10] : memref<1x128xf32, #tpu.memory_space<vmem>>, vector<1x128xf32>
    %11 = vector.broadcast %10 : vector<1x128xf32> to vector<16x128xf32>
    %12 = arith.addf %9, %11 : vector<16x128xf32>
    %cst_11 = arith.constant 0.000000e+00 : f32
    %13 = vector.broadcast %cst_11 : f32 to vector<16x128xf32>
    %14 = arith.maximumf %12, %13 : vector<16x128xf32>
    %c0_12 = arith.constant 0 : index
    %c0_13 = arith.constant 0 : index
    %15 = vector.load %arg5[%c0_12, %c0_13] : memref<128x64xf32, #tpu.memory_space<vmem>>, vector<128x64xf32>
    %cst_14 = arith.constant dense<0.000000e+00> : vector<16x64xf32>
    %16 = tpu.matmul %14, %15, %cst_14 {dimension_numbers = #tpu.dot_dimension_numbers<[1], [0], [0], [1], [0, 0, 1, 1], [], []>} : vector<16x128xf32>, vector<128x64xf32>, vector<16x64xf32> -> vector<16x64xf32>
    %c0_15 = arith.constant 0 : index
    %c0_16 = arith.constant 0 : index
    %17 = vector.load %arg6[%c0_15, %c0_16] : memref<1x64xf32, #tpu.memory_space<vmem>>, vector<1x64xf32>
    %18 = vector.broadcast %17 : vector<1x64xf32> to vector<16x64xf32>
    %19 = arith.addf %16, %18 : vector<16x64xf32>
    %cst_17 = arith.constant 0.000000e+00 : f32
    %20 = vector.broadcast %cst_17 : f32 to vector<16x64xf32>
    %21 = arith.maximumf %19, %20 : vector<16x64xf32>
    %c0_18 = arith.constant 0 : index
    %c0_19 = arith.constant 0 : index
    %22 = vector.load %arg7[%c0_18, %c0_19] : memref<64x1xf32, #tpu.memory_space<vmem>>, vector<64x1xf32>
    %cst_20 = arith.constant dense<0.000000e+00> : vector<16x1xf32>
    %23 = tpu.matmul %21, %22, %cst_20 {dimension_numbers = #tpu.dot_dimension_numbers<[1], [0], [0], [1], [0, 0, 1, 1], [], []>} : vector<16x64xf32>, vector<64x1xf32>, vector<16x1xf32> -> vector<16x1xf32>
    %c0_21 = arith.constant 0 : index
    %c0_22 = arith.constant 0 : index
    %24 = vector.load %arg8[%c0_21, %c0_22] : memref<1x1xf32, #tpu.memory_space<vmem>>, vector<1x1xf32>
    %25 = vector.broadcast %24 : vector<1x1xf32> to vector<16x1xf32>
    %26 = arith.addf %23, %25 : vector<16x1xf32>
    %cst_23 = arith.constant 0.000000e+00 : f32
    %27 = vector.broadcast %cst_23 : f32 to vector<16x1xf32>
    %28 = arith.maximumf %26, %27 : vector<16x1xf32>
    %c0_24 = arith.constant 0 : index
    %c0_25 = arith.constant 0 : index
    %29 = vector.load %arg9[%c0_24, %c0_25] : memref<16x1xf32, #tpu.memory_space<vmem>>, vector<16x1xf32>
    tpu.vector_store %arg9[%c0_24, %c0_25], %28 {strides = array<i32>} : memref<16x1xf32, #tpu.memory_space<vmem>>, vector<16x1xf32>,
    return
  }
}

</mosaic_0001>

<llo_original>
// kernel: bilstm_forward.6
$region0: #{bilstm_forward.6}
  #allocation0 [shape = 'u32[]', space=smem, size = 0x4, offset = 0x4, fixed_abs, tag = 'smem constant byte address 0x4 - core index']
  #allocation1 [shape = 'u32[72,128]{1,0:T(1,128)}', space=vmem, size = 0x9000, scoped, tag = 'internal scratch']
  %s0 = inlined_call_operand.vmem [shape: s32[16,1], index: 0, kind: input, shape index: {}]
  %s1 = inlined_call_operand.hbm [shape: f32[64,256], index: 1, kind: input, shape index: {}]
  %s2 = inlined_call_operand.vmem [shape: f32[16,8], index: 2, kind: input, shape index: {}]
  %s3 = inlined_call_operand.vmem [shape: f32[16,264], index: 3, kind: output, shape index: {}]
  %s4 = sld [smem:[#allocation0]]
  $region26: #{bilstm_forward.6} parent=0
    _
  %s6 = ssub.s32 1, %s4
  %s7 = scalar_select 0, %s6, %s4
  $region1: #{bilstm_forward.6} parent=0
    #allocation2 [shape = 'u8[65536]{0}', space=vmem, size = 0x10000, scoped, tag = 'input window, operand 1, single buffered']
    #allocation3 [shape = 's32[1]{0}', space=sflag, size = 0x4, scoped, tag = 'scoped memory for bilstm_forward.6']
    %8 = vsyncpa [#allocation3], 0
    // Predicated region
    $region2: #{bilstm_forward.6} parent=1 // pred_check
      _
    $region3: #{bilstm_forward.6} parent=1 // pred_check_branch
      %10 = sbr.rel (0) target = $region5
    $region4: #{bilstm_forward.6} parent=1 // pred_region
      _
    $region5: #{bilstm_forward.6} parent=1 // pred_fallthru
      _
    // Predicated region
    $region6: #{bilstm_forward.6} parent=1 // pred_check
      _
    $region7: #{bilstm_forward.6} parent=1 // pred_check_branch
      %12 = sbr.rel (0) target = $region9
    $region8: #{bilstm_forward.6} parent=1 // pred_region
      %14 = vsyncadd [#allocation3], 0
      %s15 = sshll.u32 %s1, 4
      %s16 = int_to_ptr.hbm [resolvable:$true] %s15
      %s17 = sshll.u32 [#allocation2], 4
      %s18 = int_to_ptr.vmem [resolvable:$true] %s17
      %23 = dma.hbm_to_vmem [thread:$0]  %s16, 2048, %s18, [#allocation3], 256, 256, 16
    $region9: #{bilstm_forward.6} parent=1 // pred_fallthru
      _
    // Predicated region
    $region10: #{bilstm_forward.6} parent=1 // pred_check
      _
    $region11: #{bilstm_forward.6} parent=1 // pred_check_branch
      %25 = sbr.rel (0) target = $region13
    $region12: #{bilstm_forward.6} parent=1 // pred_region
      _
    $region13: #{bilstm_forward.6} parent=1 // pred_fallthru
      _
    // Predicated region
    $region14: #{bilstm_forward.6} parent=1 // pred_check
      _
    $region15: #{bilstm_forward.6} parent=1 // pred_check_branch
      %27 = sbr.rel (0) target = $region17
    $region16: #{bilstm_forward.6} parent=1 // pred_region
      %29 = dma.done [#allocation3], 2048
    $region17: #{bilstm_forward.6} parent=1 // pred_fallthru
      _
    %v30 = vld [vmem:[%s0] sm:$0xff]
    %v31 = vld [vmem:[%s0 + $0x8] sm:$0xff]
    %v32 = vlaneseq
    %v33 = vand.u32 %v32, 127
    %34 = vset.pattern.permute.xlu0 0
    %35 = vperm.xlu0 %34, %v30
    %v36 = vpop.permute.xlu0 %35
    %37 = vset.pattern.permute.xlu0 0
    %38 = vperm.xlu0 %37, %v31
    %v39 = vpop.permute.xlu0 %38
    %vm40 = vcmp.eq.s32.totalorder %v36, %v33
    %vm41 = vcmp.eq.s32.totalorder %v39, %v33
    %v42 = vsel %vm40, 1, 0
    %v43 = vsel %vm41, 1, 0
    %v44 = vcvt.s32.f32 %v42
    %v45 = vcvt.s32.f32 %v43
    %v46 = vld [vmem:[#allocation2] sm:$0xff]
    %v47 = vld [vmem:[#allocation2 + $0x8] sm:$0xff]
    %v48 = vld [vmem:[#allocation2 + $0x10] sm:$0xff]
    %v49 = vld [vmem:[#allocation2 + $0x18] sm:$0xff]
    %v50 = vld [vmem:[#allocation2 + $0x20] sm:$0xff]
    %v51 = vld [vmem:[#allocation2 + $0x28] sm:$0xff]
    %v52 = vld [vmem:[#allocation2 + $0x30] sm:$0xff]
    %v53 = vld [vmem:[#allocation2 + $0x38] sm:$0xff]
    %v54 = vld [vmem:[#allocation2 + $0x40] sm:$0xff]
    %v55 = vld [vmem:[#allocation2 + $0x48] sm:$0xff]
    %v56 = vld [vmem:[#allocation2 + $0x50] sm:$0xff]
    %v57 = vld [vmem:[#allocation2 + $0x58] sm:$0xff]
    %v58 = vld [vmem:[#allocation2 + $0x60] sm:$0xff]
    %v59 = vld [vmem:[#allocation2 + $0x68] sm:$0xff]
    %v60 = vld [vmem:[#allocation2 + $0x70] sm:$0xff]
    %v61 = vld [vmem:[#allocation2 + $0x78] sm:$0xff]
    %vm62 = vcmask 523264
    %v64 = vsel %vm62, %v44, 0
    %v67 = vsel %vm62, %v45, 0
    %69 = vmatpush.msra.mxu0 0.0
    %70 = vmatpush.msra.mxu0 0.0
    %71 = vmatpush.msra.mxu0 0.0
    %72 = vmatpush.msra.mxu0 0.0
    %73 = vmatpush.msra.mxu0 0.0
    %74 = vmatpush.msra.mxu0 0.0
    %75 = vmatpush.msra.mxu0 0.0
    %76 = vmatpush.msra.mxu0 0.0
    %77 = vmatpush.msra.mxu0 %v60
    %78 = vmatpush.msra.mxu0 %v58
    %79 = vmatpush.msra.mxu0 %v56
    %80 = vmatpush.msra.mxu0 %v54
    %81 = vmatpush.msra.mxu0 %v52
    %82 = vmatpush.msra.mxu0 %v50
    %83 = vmatpush.msra.mxu0 %v48
    %84 = vmatpush.msra.mxu0 %v46
    %85 = vmatmul.f32.gmra.mxu0 %v64
    %v86 = vpop.f32.mrf.mxu0
    %v87 = vadd.f32 0.0, %v86
    %88 = vmatmul.f32.gmra.mxu0 %v67
    %v89 = vpop.f32.mrf.mxu0
    %v90 = vadd.f32 0.0, %v89
    %91 = vdwg.mxu0
    %92 = vmatpush.msra.mxu0 0.0
    %93 = vmatpush.msra.mxu0 0.0
    %94 = vmatpush.msra.mxu0 0.0
    %95 = vmatpush.msra.mxu0 0.0
    %96 = vmatpush.msra.mxu0 0.0
    %97 = vmatpush.msra.mxu0 0.0
    %98 = vmatpush.msra.mxu0 0.0
    %99 = vmatpush.msra.mxu0 0.0
    %100 = vmatpush.msra.mxu0 %v61
    %101 = vmatpush.msra.mxu0 %v59
    %102 = vmatpush.msra.mxu0 %v57
    %103 = vmatpush.msra.mxu0 %v55
    %104 = vmatpush.msra.mxu0 %v53
    %105 = vmatpush.msra.mxu0 %v51
    %106 = vmatpush.msra.mxu0 %v49
    %107 = vmatpush.msra.mxu0 %v47
    %108 = vmatmul.f32.gmra.mxu0 %v64
    %v109 = vpop.f32.mrf.mxu0
    %v110 = vadd.f32 0.0, %v109
    %111 = vmatmul.f32.gmra.mxu0 %v67
    %v112 = vpop.f32.mrf.mxu0
    %v113 = vadd.f32 0.0, %v112
    %114 = vdwg.mxu0
    %115 = vst [vmem:[%s3] sm:$0xff] %v87
    %116 = vst [vmem:[%s3 + $0x8] sm:$0xff] %v110
    %117 = vst [vmem:[%s3 + $0x18] sm:$0xff] %v90
    %118 = vst [vmem:[%s3 + $0x20] sm:$0xff] %v113
    %v119 = vld [vmem:[%s2] sm:$0xff]
    %v120 = vld [vmem:[%s2 + $0x8] sm:$0xff]
    %vm121 = vcmask 64512
    %122 = vst.msk [vmem:[%s3 + $0x10] sm:$0xff] %vm121, %v119
    %123 = vst.msk [vmem:[%s3 + $0x28] sm:$0xff] %vm121, %v120
    // Predicated region
    $region18: #{bilstm_forward.6} parent=1 // pred_check
      _
    $region19: #{bilstm_forward.6} parent=1 // pred_check_branch
      %125 = sbr.rel (0) target = $region21
    $region20: #{bilstm_forward.6} parent=1 // pred_region
      _
    $region21: #{bilstm_forward.6} parent=1 // pred_fallthru
      _
    // Predicated region
    $region22: #{bilstm_forward.6} parent=1 // pred_check
      _
    $region23: #{bilstm_forward.6} parent=1 // pred_check_branch
      %127 = sbr.rel (0) target = $region25
    $region24: #{bilstm_forward.6} parent=1 // pred_region
      _
    $region25: #{bilstm_forward.6} parent=1 // pred_fallthru
      _
    %128 = vsyncpa [#allocation3], 1

// kernel: bilstm_forward.7
$region0: #{bilstm_forward.7}
  #allocation0 [shape = 'u32[]', space=smem, size = 0x4, offset = 0x4, fixed_abs, tag = 'smem constant byte address 0x4 - core index']
  #allocation1 [shape = 'u32[72,128]{1,0:T(1,128)}', space=vmem, size = 0x9000, scoped, tag = 'internal scratch']
  #allocation2 [shape = 'f32[2,32]{1,0:T(2,128)}', space=vmem, size = 0x400, scoped, tag = 'scratch operand']
  #allocation3 [shape = 'f32[2,32]{1,0:T(2,128)}', space=vmem, size = 0x400, scoped, tag = 'scratch operand']
  %s0 = inlined_call_operand.vmem [shape: f32[8,2,264], index: 0, kind: input, shape index: {}]
  %s1 = inlined_call_operand.hbm [shape: f32[264,128], index: 1, kind: input, shape index: {}]
  %s2 = inlined_call_operand.vmem [shape: f32[32,128], index: 2, kind: input, shape index: {}]
  %s3 = inlined_call_operand.vmem [shape: f32[1,128], index: 3, kind: input, shape index: {}]
  %s4 = inlined_call_operand.vmem [shape: f32[8,2,32], index: 4, kind: output, shape index: {}]
  %s5 = sld [smem:[#allocation0]]
  $region57: #{bilstm_forward.7} parent=0
    _
  %s7 = ssub.s32 1, %s5
  %s8 = scalar_select 0, %s7, %s5
  $region1: #{bilstm_forward.7} parent=0
    #allocation4 [shape = 'u8[135168]{0}', space=vmem, size = 0x21000, scoped, tag = 'input window, operand 1, single buffered']
    #allocation5 [shape = 's32[2]{0}', space=sflag, size = 0x8, scoped, tag = 'scoped memory for bilstm_forward.7']
    %9 = vsyncpa [#allocation5], 0
    loop: start=0, step=1, limit=10
    $region2: #{bilstm_forward.7} parent=1 // loop_pre_header
      _
    $region3: #{bilstm_forward.7} parent=1 // loop_header
      %s11 = sphi 0, %s15
      %p12 = scmp.ge.s32.totalorder %s11, 10
      %s21 = sphi 0, %s23
      %s24 = sphi 0, %s21
      %s25 = sphi 0, %s24
      %s41 = sphi 0, %s25
      %s45 = sphi 0, %s45
      %s47 = sphi 0, %s45
      %s48 = sphi 0, %s47
      %s62 = sphi 0, %s48
      %s66 = sphi 0, %s66
      %s68 = sphi 0, %s66
      %s69 = sphi 0, %s68
      %s83 = sphi 0, %s69
      %s87 = sphi 0, %s87
      %s89 = sphi 0, %s87
      %s90 = sphi 0, %s89
      %s104 = sphi 0, %s90
      %s110 = sphi 0, %s112
      %s113 = sphi 0, %s110
      %s114 = sphi 0, %s113
      %s130 = sphi 0, %s114
    $region4: #{bilstm_forward.7} parent=1 // loop_header_branch
      %14 = sbr.rel (%p12) target = $region8
    $region5: #{bilstm_forward.7} parent=1 // loop_body
      %s16 = ssub.s32 %s11, 1
      %s17 = ssub.s32 %s11, 2
      %s18 = sadd.s32 %s11, 1
      %s19 = ssub.s32 %s11, %s18
      %p20 = scmp.eq.s32.totalorder %s19, 0
      %s22 = sadd.s32 %s21, 1
      %s23 = scalar_select %p20, %s21, %s22
      %p26 = pneg %p20
      %p27 = scmp.eq.s32.totalorder %s11, 7
      %p28 = por %p26, %p27
      %p29 = scmp.ne.s32.totalorder %s21, %s24
      %p30 = scmp.eq.s32.totalorder %s11, 0
      %p31 = por %p29, %p30
      %p32 = scmp.ne.s32.totalorder %s21, %s24
      %p33 = scmp.eq.s32.totalorder %s16, 7
      %p34 = por %p32, %p33
      %p35 = scmp.ne.s32.totalorder %s24, %s25
      %p36 = scmp.eq.s32.totalorder %s16, 0
      %p37 = por %p35, %p36
      %p38 = scmp.ne.s32.totalorder %s24, %s25
      %p39 = scmp.eq.s32.totalorder %s17, 7
      %p40 = por %p38, %p39
      %p42 = scmp.ne.s32.totalorder %s25, %s41
      %p43 = scmp.eq.s32.totalorder %s17, 0
      %p44 = por %p42, %p43
      %s46 = sadd.s32 %s45, 1
      %p49 = scmp.eq.s32.totalorder %s11, 7
      %p50 = scmp.ne.s32.totalorder %s45, %s47
      %p51 = scmp.eq.s32.totalorder %s11, 0
      %p52 = por %p50, %p51
      %p53 = scmp.ne.s32.totalorder %s45, %s47
      %p54 = scmp.eq.s32.totalorder %s16, 7
      %p55 = por %p53, %p54
      %p56 = scmp.ne.s32.totalorder %s47, %s48
      %p57 = scmp.eq.s32.totalorder %s16, 0
      %p58 = por %p56, %p57
      %p59 = scmp.ne.s32.totalorder %s47, %s48
      %p60 = scmp.eq.s32.totalorder %s17, 7
      %p61 = por %p59, %p60
      %p63 = scmp.ne.s32.totalorder %s48, %s62
      %p64 = scmp.eq.s32.totalorder %s17, 0
      %p65 = por %p63, %p64
      %s67 = sadd.s32 %s66, 1
      %p70 = scmp.eq.s32.totalorder %s11, 7
      %p71 = scmp.ne.s32.totalorder %s66, %s68
      %p72 = scmp.eq.s32.totalorder %s11, 0
      %p73 = por %p71, %p72
      %p74 = scmp.ne.s32.totalorder %s66, %s68
      %p75 = scmp.eq.s32.totalorder %s16, 7
      %p76 = por %p74, %p75
      %p77 = scmp.ne.s32.totalorder %s68, %s69
      %p78 = scmp.eq.s32.totalorder %s16, 0
      %p79 = por %p77, %p78
      %p80 = scmp.ne.s32.totalorder %s68, %s69
      %p81 = scmp.eq.s32.totalorder %s17, 7
      %p82 = por %p80, %p81
      %p84 = scmp.ne.s32.totalorder %s69, %s83
      %p85 = scmp.eq.s32.totalorder %s17, 0
      %p86 = por %p84, %p85
      %s88 = sadd.s32 %s87, 1
      %p91 = scmp.eq.s32.totalorder %s11, 7
      %p92 = scmp.ne.s32.totalorder %s87, %s89
      %p93 = scmp.eq.s32.totalorder %s11, 0
      %p94 = por %p92, %p93
      %p95 = scmp.ne.s32.totalorder %s87, %s89
      %p96 = scmp.eq.s32.totalorder %s16, 7
      %p97 = por %p95, %p96
      %p98 = scmp.ne.s32.totalorder %s89, %s90
      %p99 = scmp.eq.s32.totalorder %s16, 0
      %p100 = por %p98, %p99
      %p101 = scmp.ne.s32.totalorder %s89, %s90
      %p102 = scmp.eq.s32.totalorder %s17, 7
      %p103 = por %p101, %p102
      %p105 = scmp.ne.s32.totalorder %s90, %s104
      %p106 = scmp.eq.s32.totalorder %s17, 0
      %p107 = por %p105, %p106
      %s108 = ssub.s32 %s11, %s18
      %p109 = scmp.eq.s32.totalorder %s108, 0
      %s111 = sadd.s32 %s110, 1
      %s112 = scalar_select %p109, %s110, %s111
      %p115 = pneg %p109
      %p116 = scmp.eq.s32.totalorder %s11, 7
      %p117 = por %p115, %p116
      %p118 = scmp.ne.s32.totalorder %s110, %s113
      %p119 = scmp.eq.s32.totalorder %s11, 0
      %p120 = por %p118, %p119
      %p121 = scmp.ne.s32.totalorder %s110, %s113
      %p122 = scmp.eq.s32.totalorder %s16, 7
      %p123 = por %p121, %p122
      %p124 = scmp.ne.s32.totalorder %s113, %s114
      %p125 = scmp.eq.s32.totalorder %s16, 0
      %p126 = por %p124, %p125
      %p127 = scmp.ne.s32.totalorder %s113, %s114
      %p128 = scmp.eq.s32.totalorder %s17, 7
      %p129 = por %p127, %p128
      %p131 = scmp.ne.s32.totalorder %s114, %s130
      %p132 = scmp.eq.s32.totalorder %s17, 0
      %p133 = por %p131, %p132
      %p134 = scmp.le.s32.totalorder 1, %s11
      %p135 = scmp.lt.s32.totalorder %s11, 9
      %p136 = pnand %p134, %p135
      %p137 = pneg %p136
      // Predicated region
      $region9: #{bilstm_forward.7} parent=5 // pred_check
        _
      $region10: #{bilstm_forward.7} parent=5 // pred_check_branch
        %139 = sbr.rel (%p136) target = $region12
      $region11: #{bilstm_forward.7} parent=5 // pred_region
        %s140 = ssub.s32 %s11, 1
        // Predicated region
        $region13: #{bilstm_forward.7} parent=11 // pred_check
          %p141 = pneg %p58
        $region14: #{bilstm_forward.7} parent=11 // pred_check_branch
          %143 = sbr.rel (%p141) target = $region16
        $region15: #{bilstm_forward.7} parent=11 // pred_region
          %145 = vsyncadd [#allocation5], 0
          %s146 = sshll.u32 %s1, 4
          %s147 = int_to_ptr.hbm [resolvable:$true] %s146
          %s148 = sshll.u32 [#allocation4], 4
          %s149 = int_to_ptr.vmem [resolvable:$true] %s148
          %154 = dma.hbm_to_vmem [thread:$0]  %s147, 4224, %s149, [#allocation5], 128, 128, 8
        $region16: #{bilstm_forward.7} parent=11 // pred_fallthru
          _
        // Predicated region
        $region17: #{bilstm_forward.7} parent=11 // pred_check
          %p155 = pneg %p79
        $region18: #{bilstm_forward.7} parent=11 // pred_check_branch
          %157 = sbr.rel (%p155) target = $region20
        $region19: #{bilstm_forward.7} parent=11 // pred_region
          _
        $region20: #{bilstm_forward.7} parent=11 // pred_fallthru
          _
        // Predicated region
        $region21: #{bilstm_forward.7} parent=11 // pred_check
          %p158 = pneg %p100
        $region22: #{bilstm_forward.7} parent=11 // pred_check_branch
          %160 = sbr.rel (%p158) target = $region24
        $region23: #{bilstm_forward.7} parent=11 // pred_region
          _
        $region24: #{bilstm_forward.7} parent=11 // pred_fallthru
          _
      $region12: #{bilstm_forward.7} parent=5 // pred_fallthru
        _
      %p161 = scmp.lt.s32.totalorder %s11, 8
      // Predicated region
      $region25: #{bilstm_forward.7} parent=5 // pred_check
        %p162 = pneg %p161
      $region26: #{bilstm_forward.7} parent=5 // pred_check_branch
        %164 = sbr.rel (%p162) target = $region28
      $region27: #{bilstm_forward.7} parent=5 // pred_region
        // Predicated region
        $region29: #{bilstm_forward.7} parent=27 // pred_check
          %p165 = pneg %p31
        $region30: #{bilstm_forward.7} parent=27 // pred_check_branch
          %167 = sbr.rel (%p165) target = $region32
        $region31: #{bilstm_forward.7} parent=27 // pred_region
          %p168 = scmp.lt.s32.totalorder %s11, 7
          %s169 = scalar_select %p168, %s11, 7
          %s170 = smul.addr %s169, 3
          %s171 = smul.addr %s170, 2
          %s172 = scalar_lea.vmem %s0, %s171
        $region32: #{bilstm_forward.7} parent=27 // pred_fallthru
          _
      $region28: #{bilstm_forward.7} parent=5 // pred_fallthru
        _
      %p173 = scmp.le.s32.totalorder 1, %s11
      %p174 = scmp.lt.s32.totalorder %s11, 9
      %p175 = pnand %p173, %p174
      %p176 = pneg %p175
      // Predicated region
      $region33: #{bilstm_forward.7} parent=5 // pred_check
        _
      $region34: #{bilstm_forward.7} parent=5 // pred_check_branch
        %178 = sbr.rel (%p175) target = $region36
      $region35: #{bilstm_forward.7} parent=5 // pred_region
        %s179 = ssub.s32 %s11, 1
        // Predicated region
        $region37: #{bilstm_forward.7} parent=35 // pred_check
          %p180 = pneg %p58
        $region38: #{bilstm_forward.7} parent=35 // pred_check_branch
          %182 = sbr.rel (%p180) target = $region40
        $region39: #{bilstm_forward.7} parent=35 // pred_region
          %184 = dma.done [#allocation5], 4224
        $region40: #{bilstm_forward.7} parent=35 // pred_fallthru
          _
        %p185 = scmp.lt.s32.totalorder %s16, 7
        %s186 = scalar_select %p185, %s16, 7
        %s187 = smul.addr %s186, 3
        %s188 = smul.addr %s187, 2
        %s189 = scalar_lea.vmem %s0, %s188
        %p190 = pneg %p37
        %p191 = pneg %p34
        %p192 = pneg %p58
        %p193 = pneg %p55
        %p194 = pneg %p79
        %p195 = pneg %p76
        %p196 = pneg %p100
        %p197 = pneg %p97
        %p198 = pneg %p126
        %p199 = pneg %p123
        %p200 = scmp.lt.s32.totalorder %s16, 7
        %s201 = scalar_select %p200, %s16, 7
        %s202 = smul.addr %s201, 2
        %s203 = scalar_lea.vmem %s4, %s202
        %p204 = scmp.lt.s32.totalorder %s16, 7
        %s205 = scalar_select %p204, %s16, 7
        %s206 = smul.addr %s205, 3
        %s207 = smul.addr %s206, 2
        %s208 = scalar_lea.vmem %s0, %s207
        %p209 = scmp.lt.s32.totalorder %s16, 7
        %s210 = scalar_select %p209, %s16, 7
        %s211 = smul.addr %s210, 2
        %s212 = scalar_lea.vmem %s4, %s211
        %p213 = scmp.eq.s32.totalorder %s16, 0
        // Predicated region
        $region41: #{bilstm_forward.7} parent=35 // pred_check
          %p214 = pneg %p213
        $region42: #{bilstm_forward.7} parent=35 // pred_check_branch
          %216 = sbr.rel (%p214) target = $region44
        $region43: #{bilstm_forward.7} parent=35 // pred_region
          %vm217 = vcmask 254976
          %218 = vst.msk [vmem:[#allocation2] sm:$0x3] %vm217, 0.0
          %219 = vst.msk [vmem:[#allocation3] sm:$0x3] %vm217, 0.0
        $region44: #{bilstm_forward.7} parent=35 // pred_fallthru
          _
        %v220 = vld [vmem:[%s208] sm:$0x3f]
        %v221 = vld [vmem:[#allocation4] sm:$0xff]
        %v222 = vld [vmem:[#allocation4 + $0x8] sm:$0xff]
        %v223 = vld [vmem:[#allocation4 + $0x10] sm:$0xff]
        %v224 = vld [vmem:[#allocation4 + $0x18] sm:$0xff]
        %v225 = vld [vmem:[#allocation4 + $0x20] sm:$0xff]
        %v226 = vld [vmem:[#allocation4 + $0x28] sm:$0xff]
        %v227 = vld [vmem:[#allocation4 + $0x30] sm:$0xff]
        %v228 = vld [vmem:[#allocation4 + $0x38] sm:$0xff]
        %v229 = vld [vmem:[#allocation4 + $0x40] sm:$0xff]
        %v230 = vld [vmem:[#allocation4 + $0x48] sm:$0xff]
        %v231 = vld [vmem:[#allocation4 + $0x50] sm:$0xff]
        %v232 = vld [vmem:[#allocation4 + $0x58] sm:$0xff]
        %v233 = vld [vmem:[#allocation4 + $0x60] sm:$0xff]
        %v234 = vld [vmem:[#allocation4 + $0x68] sm:$0xff]
        %v235 = vld [vmem:[#allocation4 + $0x70] sm:$0xff]
        %v236 = vld [vmem:[#allocation4 + $0x78] sm:$0xff]
        %v237 = vld [vmem:[#allocation4 + $0x80] sm:$0xff]
        %v238 = vld [vmem:[#allocation4 + $0x88] sm:$0xff]
        %v239 = vld [vmem:[#allocation4 + $0x90] sm:$0xff]
        %v240 = vld [vmem:[#allocation4 + $0x98] sm:$0xff]
        %v241 = vld [vmem:[#allocation4 + $0xa0] sm:$0xff]
        %v242 = vld [vmem:[#allocation4 + $0xa8] sm:$0xff]
        %v243 = vld [vmem:[#allocation4 + $0xb0] sm:$0xff]
        %v244 = vld [vmem:[#allocation4 + $0xb8] sm:$0xff]
        %v245 = vld [vmem:[#allocation4 + $0xc0] sm:$0xff]
        %v246 = vld [vmem:[#allocation4 + $0xc8] sm:$0xff]
        %v247 = vld [vmem:[#allocation4 + $0xd0] sm:$0xff]
        %v248 = vld [vmem:[#allocation4 + $0xd8] sm:$0xff]
        %v249 = vld [vmem:[#allocation4 + $0xe0] sm:$0xff]
        %v250 = vld [vmem:[#allocation4 + $0xe8] sm:$0xff]
        %v251 = vld [vmem:[#allocation4 + $0xf0] sm:$0xff]
        %v252 = vld [vmem:[#allocation4 + $0xf8] sm:$0xff]
        %v253 = vld [vmem:[#allocation4 + $0x100] sm:$0xff]
        %v254 = vld [vmem:[#allocation2] sm:$0x3]
        %v255 = vld [vmem:[%s2] sm:$0xff]
        %v256 = vld [vmem:[%s2 + $0x8] sm:$0xff]
        %v257 = vld [vmem:[%s2 + $0x10] sm:$0xff]
        %v258 = vld [vmem:[%s2 + $0x18] sm:$0xff]
        %vm259 = vcmask 261120
        %v261 = vsel %vm259, %v254, 0
        %263 = vmatpush.msra.mxu0 0.0
        %264 = vmatpush.msra.mxu0 0.0
        %265 = vmatpush.msra.mxu0 0.0
        %266 = vmatpush.msra.mxu0 0.0
        %267 = vmatpush.msra.mxu0 0.0
        %268 = vmatpush.msra.mxu0 0.0
        %269 = vmatpush.msra.mxu0 0.0
        %270 = vmatpush.msra.mxu0 0.0
        %271 = vmatpush.msra.mxu0 0.0
        %272 = vmatpush.msra.mxu0 0.0
        %273 = vmatpush.msra.mxu0 0.0
        %274 = vmatpush.msra.mxu0 0.0
        %275 = vmatpush.msra.mxu0 %v258
        %276 = vmatpush.msra.mxu0 %v257
        %277 = vmatpush.msra.mxu0 %v256
        %278 = vmatpush.msra.mxu0 %v255
        %279 = vmatmul.f32.gmra.mxu0 %v261
        %v280 = vpop.f32.mrf.mxu0
        %v281 = vadd.f32 0.0, %v280
        %282 = vdwg.mxu0
        %284 = vst [vmem:[#allocation1] ss:$4 sm:$0xff] %v220
        %v285 = vld.sshfl [vmem:[#allocation1] sm:$0xff pattern:$0x73625140]
        %v286 = vld.sshfl [vmem:[#allocation1 + $0x8] sm:$0xff pattern:$0x73625140]
        %v287 = vld.sshfl [vmem:[#allocation1 + $0x10] sm:$0xff pattern:$0x73625140]
        %vm290 = vcmask 64512
        %v291 = vsel %vm290, %v287, 0
        %293 = vmatpush.msra.mxu0 %v236
        %294 = vmatpush.msra.mxu0 %v235
        %295 = vmatpush.msra.mxu0 %v234
        %296 = vmatpush.msra.mxu0 %v233
        %297 = vmatpush.msra.mxu0 %v232
        %298 = vmatpush.msra.mxu0 %v231
        %299 = vmatpush.msra.mxu0 %v230
        %300 = vmatpush.msra.mxu0 %v229
        %301 = vmatpush.msra.mxu0 %v228
        %302 = vmatpush.msra.mxu0 %v227
        %303 = vmatpush.msra.mxu0 %v226
        %304 = vmatpush.msra.mxu0 %v225
        %305 = vmatpush.msra.mxu0 %v224
        %306 = vmatpush.msra.mxu0 %v223
        %307 = vmatpush.msra.mxu0 %v222
        %308 = vmatpush.msra.mxu0 %v221
        %309 = vmatmul.f32.gmra.mxu0 %v285
        %v310 = vpop.f32.mrf.mxu0
        %v311 = vadd.f32 %v281, %v310
        %312 = vdwg.mxu0
        %313 = vmatpush.msra.mxu0 %v252
        %314 = vmatpush.msra.mxu0 %v251
        %315 = vmatpush.msra.mxu0 %v250
        %316 = vmatpush.msra.mxu0 %v249
        %317 = vmatpush.msra.mxu0 %v248
        %318 = vmatpush.msra.mxu0 %v247
        %319 = vmatpush.msra.mxu0 %v246
        %320 = vmatpush.msra.mxu0 %v245
        %321 = vmatpush.msra.mxu0 %v244
        %322 = vmatpush.msra.mxu0 %v243
        %323 = vmatpush.msra.mxu0 %v242
        %324 = vmatpush.msra.mxu0 %v241
        %325 = vmatpush.msra.mxu0 %v240
        %326 = vmatpush.msra.mxu0 %v239
        %327 = vmatpush.msra.mxu0 %v238
        %328 = vmatpush.msra.mxu0 %v237
        %329 = vmatmul.f32.gmra.mxu0 %v286
        %v330 = vpop.f32.mrf.mxu0
        %v331 = vadd.f32 %v311, %v330
        %332 = vdwg.mxu0
        %333 = vmatpush.msra.mxu0 0.0
        %334 = vmatpush.msra.mxu0 0.0
        %335 = vmatpush.msra.mxu0 0.0
        %336 = vmatpush.msra.mxu0 0.0
        %337 = vmatpush.msra.mxu0 0.0
        %338 = vmatpush.msra.mxu0 0.0
        %339 = vmatpush.msra.mxu0 0.0
        %340 = vmatpush.msra.mxu0 0.0
        %341 = vmatpush.msra.mxu0 0.0
        %342 = vmatpush.msra.mxu0 0.0
        %343 = vmatpush.msra.mxu0 0.0
        %344 = vmatpush.msra.mxu0 0.0
        %345 = vmatpush.msra.mxu0 0.0
        %346 = vmatpush.msra.mxu0 0.0
        %347 = vmatpush.msra.mxu0 0.0
        %348 = vmatpush.msra.mxu0 %v253
        %349 = vmatmul.f32.gmra.mxu0 %v291
        %v350 = vpop.f32.mrf.mxu0
        %v351 = vadd.f32 %v331, %v350
        %352 = vdwg.mxu0
        %v353 = vld [vmem:[%s3] sm:$0x1]
        %v355 = vperm.slane %v353, 0
        %v357 = vadd.f32 %v351, %v355
        %v358 = vsub.f32 0.0, %v357
        %v359 = vmul.f32 %v358, 1.442695
        %v360 = vpow.pop %v359
        %v361 = vadd.f32 %v360, 1.0
        %v362 = vrcp.pop %v361
        %v363 = vmul.f32 %v361, %v362
        %v364 = vsub.f32 1.0, %v363
        %v365 = vmul.f32 %v362, %v364
        %v366 = vadd.f32 %v362, %v365
        %vm367 = vweird.f32 %v361
        %vm368 = vweird.f32 %v362
        %vm369 = vmor %vm367, %vm368
        %v370 = vsel %vm369, %v362, %v366
        %v371 = vand.u32 2147483647, %v361
        %vm372 = vcmp.eq.f32.partialorder %v371, 8.507059e+37
        %v373 = vand.u32 %v361, 2147483648
        %v374 = vor.u32 1.1754944e-38, %v373
        %v375 = vsel %vm372, %v374, %v370
        %v376 = vmul.f32 1.0, %v375
        %v377 = vtanh.pop %v357
        %v378 = vld [vmem:[#allocation3] sm:$0x3]
        %380 = vrot.lane.b32.xlu0 %v378, 32
        %v381 = vpop.permute.xlu0 %380
        %v383 = vmul.f32 %v376, %v381
        %385 = vrot.lane.b32.xlu0 %v377, 64
        %v386 = vpop.permute.xlu0 %385
        %v388 = vmul.f32 %v376, %v386
        %390 = vrot.lane.b32.xlu0 %v388, 32
        %v391 = vpop.permute.xlu0 %390
        %v393 = vadd.f32 %v383, %v391
        %v394 = vtanh.pop %v393
        %396 = vrot.lane.b32.xlu0 %v394, 64
        %v397 = vpop.permute.xlu0 %396
        %v399 = vmul.f32 %v376, %v397
        %401 = vrot.lane.b32.xlu0 %v393, 96
        %v402 = vpop.permute.xlu0 %401
        %vm404 = vcmask 254976
        %405 = vst.msk [vmem:[#allocation3] sm:$0x3] %vm404, %v402
        %407 = vrot.lane.b32.xlu0 %v399, 32
        %v408 = vpop.permute.xlu0 %407
        %410 = vst.msk [vmem:[#allocation2] sm:$0x3] %vm404, %v408
        %411 = vst.msk [vmem:[%s212] sm:$0x3] %vm404, %v408
        %p412 = scmp.lt.s32.totalorder %s16, 7
        %s413 = scalar_select %p412, %s16, 7
        %s414 = smul.addr %s413, 2
        %s415 = scalar_lea.vmem %s4, %s414
        // Predicated region
        $region45: #{bilstm_forward.7} parent=35 // pred_check
          %p416 = pneg %p123
        $region46: #{bilstm_forward.7} parent=35 // pred_check_branch
          %418 = sbr.rel (%p416) target = $region48
        $region47: #{bilstm_forward.7} parent=35 // pred_region
          _
        $region48: #{bilstm_forward.7} parent=35 // pred_fallthru
          _
      $region36: #{bilstm_forward.7} parent=5 // pred_fallthru
        _
      %p419 = scmp.le.s32.totalorder 2, %s11
      // Predicated region
      $region49: #{bilstm_forward.7} parent=5 // pred_check
        %p420 = pneg %p419
      $region50: #{bilstm_forward.7} parent=5 // pred_check_branch
        %422 = sbr.rel (%p420) target = $region52
      $region51: #{bilstm_forward.7} parent=5 // pred_region
        %s423 = ssub.s32 %s11, 2
        // Predicated region
        $region53: #{bilstm_forward.7} parent=51 // pred_check
          %p424 = pneg %p129
        $region54: #{bilstm_forward.7} parent=51 // pred_check_branch
          %426 = sbr.rel (%p424) target = $region56
        $region55: #{bilstm_forward.7} parent=51 // pred_region
          %p427 = scmp.lt.s32.totalorder %s17, 7
          %s428 = scalar_select %p427, %s17, 7
          %s429 = smul.addr %s428, 2
          %s430 = scalar_lea.vmem %s4, %s429
        $region56: #{bilstm_forward.7} parent=51 // pred_fallthru
          _
      $region52: #{bilstm_forward.7} parent=5 // pred_fallthru
        _
    $region6: #{bilstm_forward.7} parent=1 // loop_footer
      %s15 = sadd.s32 1, %s11
    $region7: #{bilstm_forward.7} parent=1 // loop_footer_branch
      %10 = sbr.rel target = $region3
    $region8: #{bilstm_forward.7} parent=1 // loop_exit
      _
    %431 = vsyncpa [#allocation5], 1
    %s432 = scalar_lea.sflag [#allocation5], 1
    %433 = vsyncpa %s432, 1

// kernel: bilstm_forward.8
$region0: #{bilstm_forward.8}
  #allocation0 [shape = 'u32[]', space=smem, size = 0x4, offset = 0x4, fixed_abs, tag = 'smem constant byte address 0x4 - core index']
  #allocation1 [shape = 'u32[72,128]{1,0:T(1,128)}', space=vmem, size = 0x9000, scoped, tag = 'internal scratch']
  #allocation2 [shape = 'f32[2,32]{1,0:T(2,128)}', space=vmem, size = 0x400, scoped, tag = 'scratch operand']
  #allocation3 [shape = 'f32[2,32]{1,0:T(2,128)}', space=vmem, size = 0x400, scoped, tag = 'scratch operand']
  %s0 = inlined_call_operand.vmem [shape: f32[8,2,264], index: 0, kind: input, shape index: {}]
  %s1 = inlined_call_operand.hbm [shape: f32[264,128], index: 1, kind: input, shape index: {}]
  %s2 = inlined_call_operand.vmem [shape: f32[32,128], index: 2, kind: input, shape index: {}]
  %s3 = inlined_call_operand.vmem [shape: f32[1,128], index: 3, kind: input, shape index: {}]
  %s4 = inlined_call_operand.vmem [shape: f32[8,2,32], index: 4, kind: output, shape index: {}]
  %s5 = sld [smem:[#allocation0]]
  $region57: #{bilstm_forward.8} parent=0
    _
  %s7 = ssub.s32 1, %s5
  %s8 = scalar_select 0, %s7, %s5
  $region1: #{bilstm_forward.8} parent=0
    #allocation4 [shape = 'u8[135168]{0}', space=vmem, size = 0x21000, scoped, tag = 'input window, operand 1, single buffered']
    #allocation5 [shape = 's32[2]{0}', space=sflag, size = 0x8, scoped, tag = 'scoped memory for bilstm_forward.8']
    %9 = vsyncpa [#allocation5], 0
    loop: start=0, step=1, limit=10
    $region2: #{bilstm_forward.8} parent=1 // loop_pre_header
      _
    $region3: #{bilstm_forward.8} parent=1 // loop_header
      %s11 = sphi 0, %s15
      %p12 = scmp.ge.s32.totalorder %s11, 10
      %s23 = sphi 0, %s25
      %s26 = sphi 0, %s23
      %s27 = sphi 0, %s26
      %s43 = sphi 0, %s27
      %s47 = sphi 0, %s47
      %s49 = sphi 0, %s47
      %s50 = sphi 0, %s49
      %s64 = sphi 0, %s50
      %s68 = sphi 0, %s68
      %s70 = sphi 0, %s68
      %s71 = sphi 0, %s70
      %s85 = sphi 0, %s71
      %s89 = sphi 0, %s89
      %s91 = sphi 0, %s89
      %s92 = sphi 0, %s91
      %s106 = sphi 0, %s92
      %s114 = sphi 0, %s116
      %s117 = sphi 0, %s114
      %s118 = sphi 0, %s117
      %s134 = sphi 0, %s118
    $region4: #{bilstm_forward.8} parent=1 // loop_header_branch
      %14 = sbr.rel (%p12) target = $region8
    $region5: #{bilstm_forward.8} parent=1 // loop_body
      %s16 = ssub.s32 %s11, 1
      %s17 = ssub.s32 %s11, 2
      %s18 = sadd.s32 %s11, 1
      %s19 = ssub.s32 7, %s11
      %s20 = ssub.s32 7, %s18
      %s21 = ssub.s32 %s19, %s20
      %p22 = scmp.eq.s32.totalorder %s21, 0
      %s24 = sadd.s32 %s23, 1
      %s25 = scalar_select %p22, %s23, %s24
      %p28 = pneg %p22
      %p29 = scmp.eq.s32.totalorder %s11, 7
      %p30 = por %p28, %p29
      %p31 = scmp.ne.s32.totalorder %s23, %s26
      %p32 = scmp.eq.s32.totalorder %s11, 0
      %p33 = por %p31, %p32
      %p34 = scmp.ne.s32.totalorder %s23, %s26
      %p35 = scmp.eq.s32.totalorder %s16, 7
      %p36 = por %p34, %p35
      %p37 = scmp.ne.s32.totalorder %s26, %s27
      %p38 = scmp.eq.s32.totalorder %s16, 0
      %p39 = por %p37, %p38
      %p40 = scmp.ne.s32.totalorder %s26, %s27
      %p41 = scmp.eq.s32.totalorder %s17, 7
      %p42 = por %p40, %p41
      %p44 = scmp.ne.s32.totalorder %s27, %s43
      %p45 = scmp.eq.s32.totalorder %s17, 0
      %p46 = por %p44, %p45
      %s48 = sadd.s32 %s47, 1
      %p51 = scmp.eq.s32.totalorder %s11, 7
      %p52 = scmp.ne.s32.totalorder %s47, %s49
      %p53 = scmp.eq.s32.totalorder %s11, 0
      %p54 = por %p52, %p53
      %p55 = scmp.ne.s32.totalorder %s47, %s49
      %p56 = scmp.eq.s32.totalorder %s16, 7
      %p57 = por %p55, %p56
      %p58 = scmp.ne.s32.totalorder %s49, %s50
      %p59 = scmp.eq.s32.totalorder %s16, 0
      %p60 = por %p58, %p59
      %p61 = scmp.ne.s32.totalorder %s49, %s50
      %p62 = scmp.eq.s32.totalorder %s17, 7
      %p63 = por %p61, %p62
      %p65 = scmp.ne.s32.totalorder %s50, %s64
      %p66 = scmp.eq.s32.totalorder %s17, 0
      %p67 = por %p65, %p66
      %s69 = sadd.s32 %s68, 1
      %p72 = scmp.eq.s32.totalorder %s11, 7
      %p73 = scmp.ne.s32.totalorder %s68, %s70
      %p74 = scmp.eq.s32.totalorder %s11, 0
      %p75 = por %p73, %p74
      %p76 = scmp.ne.s32.totalorder %s68, %s70
      %p77 = scmp.eq.s32.totalorder %s16, 7
      %p78 = por %p76, %p77
      %p79 = scmp.ne.s32.totalorder %s70, %s71
      %p80 = scmp.eq.s32.totalorder %s16, 0
      %p81 = por %p79, %p80
      %p82 = scmp.ne.s32.totalorder %s70, %s71
      %p83 = scmp.eq.s32.totalorder %s17, 7
      %p84 = por %p82, %p83
      %p86 = scmp.ne.s32.totalorder %s71, %s85
      %p87 = scmp.eq.s32.totalorder %s17, 0
      %p88 = por %p86, %p87
      %s90 = sadd.s32 %s89, 1
      %p93 = scmp.eq.s32.totalorder %s11, 7
      %p94 = scmp.ne.s32.totalorder %s89, %s91
      %p95 = scmp.eq.s32.totalorder %s11, 0
      %p96 = por %p94, %p95
      %p97 = scmp.ne.s32.totalorder %s89, %s91
      %p98 = scmp.eq.s32.totalorder %s16, 7
      %p99 = por %p97, %p98
      %p100 = scmp.ne.s32.totalorder %s91, %s92
      %p101 = scmp.eq.s32.totalorder %s16, 0
      %p102 = por %p100, %p101
      %p103 = scmp.ne.s32.totalorder %s91, %s92
      %p104 = scmp.eq.s32.totalorder %s17, 7
      %p105 = por %p103, %p104
      %p107 = scmp.ne.s32.totalorder %s92, %s106
      %p108 = scmp.eq.s32.totalorder %s17, 0
      %p109 = por %p107, %p108
      %s110 = ssub.s32 7, %s11
      %s111 = ssub.s32 7, %s18
      %s112 = ssub.s32 %s110, %s111
      %p113 = scmp.eq.s32.totalorder %s112, 0
      %s115 = sadd.s32 %s114, 1
      %s116 = scalar_select %p113, %s114, %s115
      %p119 = pneg %p113
      %p120 = scmp.eq.s32.totalorder %s11, 7
      %p121 = por %p119, %p120
      %p122 = scmp.ne.s32.totalorder %s114, %s117
      %p123 = scmp.eq.s32.totalorder %s11, 0
      %p124 = por %p122, %p123
      %p125 = scmp.ne.s32.totalorder %s114, %s117
      %p126 = scmp.eq.s32.totalorder %s16, 7
      %p127 = por %p125, %p126
      %p128 = scmp.ne.s32.totalorder %s117, %s118
      %p129 = scmp.eq.s32.totalorder %s16, 0
      %p130 = por %p128, %p129
      %p131 = scmp.ne.s32.totalorder %s117, %s118
      %p132 = scmp.eq.s32.totalorder %s17, 7
      %p133 = por %p131, %p132
      %p135 = scmp.ne.s32.totalorder %s118, %s134
      %p136 = scmp.eq.s32.totalorder %s17, 0
      %p137 = por %p135, %p136
      %p138 = scmp.le.s32.totalorder 1, %s11
      %p139 = scmp.lt.s32.totalorder %s11, 9
      %p140 = pnand %p138, %p139
      %p141 = pneg %p140
      // Predicated region
      $region9: #{bilstm_forward.8} parent=5 // pred_check
        _
      $region10: #{bilstm_forward.8} parent=5 // pred_check_branch
        %143 = sbr.rel (%p140) target = $region12
      $region11: #{bilstm_forward.8} parent=5 // pred_region
        %s144 = ssub.s32 %s11, 1
        // Predicated region
        $region13: #{bilstm_forward.8} parent=11 // pred_check
          %p145 = pneg %p60
        $region14: #{bilstm_forward.8} parent=11 // pred_check_branch
          %147 = sbr.rel (%p145) target = $region16
        $region15: #{bilstm_forward.8} parent=11 // pred_region
          %149 = vsyncadd [#allocation5], 0
          %s150 = sshll.u32 %s1, 4
          %s151 = int_to_ptr.hbm [resolvable:$true] %s150
          %s152 = sshll.u32 [#allocation4], 4
          %s153 = int_to_ptr.vmem [resolvable:$true] %s152
          %158 = dma.hbm_to_vmem [thread:$0]  %s151, 4224, %s153, [#allocation5], 128, 128, 8
        $region16: #{bilstm_forward.8} parent=11 // pred_fallthru
          _
        // Predicated region
        $region17: #{bilstm_forward.8} parent=11 // pred_check
          %p159 = pneg %p81
        $region18: #{bilstm_forward.8} parent=11 // pred_check_branch
          %161 = sbr.rel (%p159) target = $region20
        $region19: #{bilstm_forward.8} parent=11 // pred_region
          _
        $region20: #{bilstm_forward.8} parent=11 // pred_fallthru
          _
        // Predicated region
        $region21: #{bilstm_forward.8} parent=11 // pred_check
          %p162 = pneg %p102
        $region22: #{bilstm_forward.8} parent=11 // pred_check_branch
          %164 = sbr.rel (%p162) target = $region24
        $region23: #{bilstm_forward.8} parent=11 // pred_region
          _
        $region24: #{bilstm_forward.8} parent=11 // pred_fallthru
          _
      $region12: #{bilstm_forward.8} parent=5 // pred_fallthru
        _
      %p165 = scmp.lt.s32.totalorder %s11, 8
      // Predicated region
      $region25: #{bilstm_forward.8} parent=5 // pred_check
        %p166 = pneg %p165
      $region26: #{bilstm_forward.8} parent=5 // pred_check_branch
        %168 = sbr.rel (%p166) target = $region28
      $region27: #{bilstm_forward.8} parent=5 // pred_region
        // Predicated region
        $region29: #{bilstm_forward.8} parent=27 // pred_check
          %p169 = pneg %p33
        $region30: #{bilstm_forward.8} parent=27 // pred_check_branch
          %171 = sbr.rel (%p169) target = $region32
        $region31: #{bilstm_forward.8} parent=27 // pred_region
          %s172 = ssub.s32 7, %s11
          %p173 = scmp.lt.s32.totalorder %s172, 7
          %s174 = scalar_select %p173, %s172, 7
          %s175 = smul.addr %s174, 3
          %s176 = smul.addr %s175, 2
          %s177 = scalar_lea.vmem %s0, %s176
          %s178 = ssub.s32 7, %s11
        $region32: #{bilstm_forward.8} parent=27 // pred_fallthru
          _
      $region28: #{bilstm_forward.8} parent=5 // pred_fallthru
        _
      %p179 = scmp.le.s32.totalorder 1, %s11
      %p180 = scmp.lt.s32.totalorder %s11, 9
      %p181 = pnand %p179, %p180
      %p182 = pneg %p181
      // Predicated region
      $region33: #{bilstm_forward.8} parent=5 // pred_check
        _
      $region34: #{bilstm_forward.8} parent=5 // pred_check_branch
        %184 = sbr.rel (%p181) target = $region36
      $region35: #{bilstm_forward.8} parent=5 // pred_region
        %s185 = ssub.s32 %s11, 1
        // Predicated region
        $region37: #{bilstm_forward.8} parent=35 // pred_check
          %p186 = pneg %p60
        $region38: #{bilstm_forward.8} parent=35 // pred_check_branch
          %188 = sbr.rel (%p186) target = $region40
        $region39: #{bilstm_forward.8} parent=35 // pred_region
          %190 = dma.done [#allocation5], 4224
        $region40: #{bilstm_forward.8} parent=35 // pred_fallthru
          _
        %s191 = ssub.s32 7, %s16
        %p192 = scmp.lt.s32.totalorder %s191, 7
        %s193 = scalar_select %p192, %s191, 7
        %s194 = smul.addr %s193, 3
        %s195 = smul.addr %s194, 2
        %s196 = scalar_lea.vmem %s0, %s195
        %p197 = pneg %p39
        %p198 = pneg %p36
        %p199 = pneg %p60
        %p200 = pneg %p57
        %p201 = pneg %p81
        %p202 = pneg %p78
        %p203 = pneg %p102
        %p204 = pneg %p99
        %p205 = pneg %p130
        %p206 = pneg %p127
        %s207 = ssub.s32 7, %s16
        %p208 = scmp.lt.s32.totalorder %s207, 7
        %s209 = scalar_select %p208, %s207, 7
        %s210 = smul.addr %s209, 2
        %s211 = scalar_lea.vmem %s4, %s210
        %s212 = ssub.s32 7, %s16
        %p213 = scmp.lt.s32.totalorder %s212, 7
        %s214 = scalar_select %p213, %s212, 7
        %s215 = smul.addr %s214, 3
        %s216 = smul.addr %s215, 2
        %s217 = scalar_lea.vmem %s0, %s216
        %s218 = ssub.s32 7, %s16
        %s219 = ssub.s32 7, %s16
        %p220 = scmp.lt.s32.totalorder %s219, 7
        %s221 = scalar_select %p220, %s219, 7
        %s222 = smul.addr %s221, 2
        %s223 = scalar_lea.vmem %s4, %s222
        %s224 = ssub.s32 7, %s16
        %p225 = scmp.eq.s32.totalorder %s16, 0
        // Predicated region
        $region41: #{bilstm_forward.8} parent=35 // pred_check
          %p226 = pneg %p225
        $region42: #{bilstm_forward.8} parent=35 // pred_check_branch
          %228 = sbr.rel (%p226) target = $region44
        $region43: #{bilstm_forward.8} parent=35 // pred_region
          %vm229 = vcmask 254976
          %230 = vst.msk [vmem:[#allocation2] sm:$0x3] %vm229, 0.0
          %231 = vst.msk [vmem:[#allocation3] sm:$0x3] %vm229, 0.0
        $region44: #{bilstm_forward.8} parent=35 // pred_fallthru
          _
        %v232 = vld [vmem:[%s217] sm:$0x3f]
        %v233 = vld [vmem:[#allocation4] sm:$0xff]
        %v234 = vld [vmem:[#allocation4 + $0x8] sm:$0xff]
        %v235 = vld [vmem:[#allocation4 + $0x10] sm:$0xff]
        %v236 = vld [vmem:[#allocation4 + $0x18] sm:$0xff]
        %v237 = vld [vmem:[#allocation4 + $0x20] sm:$0xff]
        %v238 = vld [vmem:[#allocation4 + $0x28] sm:$0xff]
        %v239 = vld [vmem:[#allocation4 + $0x30] sm:$0xff]
        %v240 = vld [vmem:[#allocation4 + $0x38] sm:$0xff]
        %v241 = vld [vmem:[#allocation4 + $0x40] sm:$0xff]
        %v242 = vld [vmem:[#allocation4 + $0x48] sm:$0xff]
        %v243 = vld [vmem:[#allocation4 + $0x50] sm:$0xff]
        %v244 = vld [vmem:[#allocation4 + $0x58] sm:$0xff]
        %v245 = vld [vmem:[#allocation4 + $0x60] sm:$0xff]
        %v246 = vld [vmem:[#allocation4 + $0x68] sm:$0xff]
        %v247 = vld [vmem:[#allocation4 + $0x70] sm:$0xff]
        %v248 = vld [vmem:[#allocation4 + $0x78] sm:$0xff]
        %v249 = vld [vmem:[#allocation4 + $0x80] sm:$0xff]
        %v250 = vld [vmem:[#allocation4 + $0x88] sm:$0xff]
        %v251 = vld [vmem:[#allocation4 + $0x90] sm:$0xff]
        %v252 = vld [vmem:[#allocation4 + $0x98] sm:$0xff]
        %v253 = vld [vmem:[#allocation4 + $0xa0] sm:$0xff]
        %v254 = vld [vmem:[#allocation4 + $0xa8] sm:$0xff]
        %v255 = vld [vmem:[#allocation4 + $0xb0] sm:$0xff]
        %v256 = vld [vmem:[#allocation4 + $0xb8] sm:$0xff]
        %v257 = vld [vmem:[#allocation4 + $0xc0] sm:$0xff]
        %v258 = vld [vmem:[#allocation4 + $0xc8] sm:$0xff]
        %v259 = vld [vmem:[#allocation4 + $0xd0] sm:$0xff]
        %v260 = vld [vmem:[#allocation4 + $0xd8] sm:$0xff]
        %v261 = vld [vmem:[#allocation4 + $0xe0] sm:$0xff]
        %v262 = vld [vmem:[#allocation4 + $0xe8] sm:$0xff]
        %v263 = vld [vmem:[#allocation4 + $0xf0] sm:$0xff]
        %v264 = vld [vmem:[#allocation4 + $0xf8] sm:$0xff]
        %v265 = vld [vmem:[#allocation4 + $0x100] sm:$0xff]
        %v266 = vld [vmem:[#allocation2] sm:$0x3]
        %v267 = vld [vmem:[%s2] sm:$0xff]
        %v268 = vld [vmem:[%s2 + $0x8] sm:$0xff]
        %v269 = vld [vmem:[%s2 + $0x10] sm:$0xff]
        %v270 = vld [vmem:[%s2 + $0x18] sm:$0xff]
        %vm271 = vcmask 261120
        %v273 = vsel %vm271, %v266, 0
        %275 = vmatpush.msra.mxu0 0.0
        %276 = vmatpush.msra.mxu0 0.0
        %277 = vmatpush.msra.mxu0 0.0
        %278 = vmatpush.msra.mxu0 0.0
        %279 = vmatpush.msra.mxu0 0.0
        %280 = vmatpush.msra.mxu0 0.0
        %281 = vmatpush.msra.mxu0 0.0
        %282 = vmatpush.msra.mxu0 0.0
        %283 = vmatpush.msra.mxu0 0.0
        %284 = vmatpush.msra.mxu0 0.0
        %285 = vmatpush.msra.mxu0 0.0
        %286 = vmatpush.msra.mxu0 0.0
        %287 = vmatpush.msra.mxu0 %v270
        %288 = vmatpush.msra.mxu0 %v269
        %289 = vmatpush.msra.mxu0 %v268
        %290 = vmatpush.msra.mxu0 %v267
        %291 = vmatmul.f32.gmra.mxu0 %v273
        %v292 = vpop.f32.mrf.mxu0
        %v293 = vadd.f32 0.0, %v292
        %294 = vdwg.mxu0
        %296 = vst [vmem:[#allocation1] ss:$4 sm:$0xff] %v232
        %v297 = vld.sshfl [vmem:[#allocation1] sm:$0xff pattern:$0x73625140]
        %v298 = vld.sshfl [vmem:[#allocation1 + $0x8] sm:$0xff pattern:$0x73625140]
        %v299 = vld.sshfl [vmem:[#allocation1 + $0x10] sm:$0xff pattern:$0x73625140]
        %vm302 = vcmask 64512
        %v303 = vsel %vm302, %v299, 0
        %305 = vmatpush.msra.mxu0 %v248
        %306 = vmatpush.msra.mxu0 %v247
        %307 = vmatpush.msra.mxu0 %v246
        %308 = vmatpush.msra.mxu0 %v245
        %309 = vmatpush.msra.mxu0 %v244
        %310 = vmatpush.msra.mxu0 %v243
        %311 = vmatpush.msra.mxu0 %v242
        %312 = vmatpush.msra.mxu0 %v241
        %313 = vmatpush.msra.mxu0 %v240
        %314 = vmatpush.msra.mxu0 %v239
        %315 = vmatpush.msra.mxu0 %v238
        %316 = vmatpush.msra.mxu0 %v237
        %317 = vmatpush.msra.mxu0 %v236
        %318 = vmatpush.msra.mxu0 %v235
        %319 = vmatpush.msra.mxu0 %v234
        %320 = vmatpush.msra.mxu0 %v233
        %321 = vmatmul.f32.gmra.mxu0 %v297
        %v322 = vpop.f32.mrf.mxu0
        %v323 = vadd.f32 %v293, %v322
        %324 = vdwg.mxu0
        %325 = vmatpush.msra.mxu0 %v264
        %326 = vmatpush.msra.mxu0 %v263
        %327 = vmatpush.msra.mxu0 %v262
        %328 = vmatpush.msra.mxu0 %v261
        %329 = vmatpush.msra.mxu0 %v260
        %330 = vmatpush.msra.mxu0 %v259
        %331 = vmatpush.msra.mxu0 %v258
        %332 = vmatpush.msra.mxu0 %v257
        %333 = vmatpush.msra.mxu0 %v256
        %334 = vmatpush.msra.mxu0 %v255
        %335 = vmatpush.msra.mxu0 %v254
        %336 = vmatpush.msra.mxu0 %v253
        %337 = vmatpush.msra.mxu0 %v252
        %338 = vmatpush.msra.mxu0 %v251
        %339 = vmatpush.msra.mxu0 %v250
        %340 = vmatpush.msra.mxu0 %v249
        %341 = vmatmul.f32.gmra.mxu0 %v298
        %v342 = vpop.f32.mrf.mxu0
        %v343 = vadd.f32 %v323, %v342
        %344 = vdwg.mxu0
        %345 = vmatpush.msra.mxu0 0.0
        %346 = vmatpush.msra.mxu0 0.0
        %347 = vmatpush.msra.mxu0 0.0
        %348 = vmatpush.msra.mxu0 0.0
        %349 = vmatpush.msra.mxu0 0.0
        %350 = vmatpush.msra.mxu0 0.0
        %351 = vmatpush.msra.mxu0 0.0
        %352 = vmatpush.msra.mxu0 0.0
        %353 = vmatpush.msra.mxu0 0.0
        %354 = vmatpush.msra.mxu0 0.0
        %355 = vmatpush.msra.mxu0 0.0
        %356 = vmatpush.msra.mxu0 0.0
        %357 = vmatpush.msra.mxu0 0.0
        %358 = vmatpush.msra.mxu0 0.0
        %359 = vmatpush.msra.mxu0 0.0
        %360 = vmatpush.msra.mxu0 %v265
        %361 = vmatmul.f32.gmra.mxu0 %v303
        %v362 = vpop.f32.mrf.mxu0
        %v363 = vadd.f32 %v343, %v362
        %364 = vdwg.mxu0
        %v365 = vld [vmem:[%s3] sm:$0x1]
        %v367 = vperm.slane %v365, 0
        %v369 = vadd.f32 %v363, %v367
        %v370 = vsub.f32 0.0, %v369
        %v371 = vmul.f32 %v370, 1.442695
        %v372 = vpow.pop %v371
        %v373 = vadd.f32 %v372, 1.0
        %v374 = vrcp.pop %v373
        %v375 = vmul.f32 %v373, %v374
        %v376 = vsub.f32 1.0, %v375
        %v377 = vmul.f32 %v374, %v376
        %v378 = vadd.f32 %v374, %v377
        %vm379 = vweird.f32 %v373
        %vm380 = vweird.f32 %v374
        %vm381 = vmor %vm379, %vm380
        %v382 = vsel %vm381, %v374, %v378
        %v383 = vand.u32 2147483647, %v373
        %vm384 = vcmp.eq.f32.partialorder %v383, 8.507059e+37
        %v385 = vand.u32 %v373, 2147483648
        %v386 = vor.u32 1.1754944e-38, %v385
        %v387 = vsel %vm384, %v386, %v382
        %v388 = vmul.f32 1.0, %v387
        %v389 = vtanh.pop %v369
        %v390 = vld [vmem:[#allocation3] sm:$0x3]
        %392 = vrot.lane.b32.xlu0 %v390, 32
        %v393 = vpop.permute.xlu0 %392
        %v395 = vmul.f32 %v388, %v393
        %397 = vrot.lane.b32.xlu0 %v389, 64
        %v398 = vpop.permute.xlu0 %397
        %v400 = vmul.f32 %v388, %v398
        %402 = vrot.lane.b32.xlu0 %v400, 32
        %v403 = vpop.permute.xlu0 %402
        %v405 = vadd.f32 %v395, %v403
        %v406 = vtanh.pop %v405
        %408 = vrot.lane.b32.xlu0 %v406, 64
        %v409 = vpop.permute.xlu0 %408
        %v411 = vmul.f32 %v388, %v409
        %413 = vrot.lane.b32.xlu0 %v405, 96
        %v414 = vpop.permute.xlu0 %413
        %vm416 = vcmask 254976
        %417 = vst.msk [vmem:[#allocation3] sm:$0x3] %vm416, %v414
        %419 = vrot.lane.b32.xlu0 %v411, 32
        %v420 = vpop.permute.xlu0 %419
        %422 = vst.msk [vmem:[#allocation2] sm:$0x3] %vm416, %v420
        %423 = vst.msk [vmem:[%s223] sm:$0x3] %vm416, %v420
        %s424 = ssub.s32 7, %s16
        %p425 = scmp.lt.s32.totalorder %s424, 7
        %s426 = scalar_select %p425, %s424, 7
        %s427 = smul.addr %s426, 2
        %s428 = scalar_lea.vmem %s4, %s427
        // Predicated region
        $region45: #{bilstm_forward.8} parent=35 // pred_check
          %p429 = pneg %p127
        $region46: #{bilstm_forward.8} parent=35 // pred_check_branch
          %431 = sbr.rel (%p429) target = $region48
        $region47: #{bilstm_forward.8} parent=35 // pred_region
          %s432 = ssub.s32 7, %s16
        $region48: #{bilstm_forward.8} parent=35 // pred_fallthru
          _
      $region36: #{bilstm_forward.8} parent=5 // pred_fallthru
        _
      %p433 = scmp.le.s32.totalorder 2, %s11
      // Predicated region
      $region49: #{bilstm_forward.8} parent=5 // pred_check
        %p434 = pneg %p433
      $region50: #{bilstm_forward.8} parent=5 // pred_check_branch
        %436 = sbr.rel (%p434) target = $region52
      $region51: #{bilstm_forward.8} parent=5 // pred_region
        %s437 = ssub.s32 %s11, 2
        // Predicated region
        $region53: #{bilstm_forward.8} parent=51 // pred_check
          %p438 = pneg %p133
        $region54: #{bilstm_forward.8} parent=51 // pred_check_branch
          %440 = sbr.rel (%p438) target = $region56
        $region55: #{bilstm_forward.8} parent=51 // pred_region
          %s441 = ssub.s32 7, %s17
          %p442 = scmp.lt.s32.totalorder %s441, 7
          %s443 = scalar_select %p442, %s441, 7
          %s444 = smul.addr %s443, 2
          %s445 = scalar_lea.vmem %s4, %s444
        $region56: #{bilstm_forward.8} parent=51 // pred_fallthru
          _
      $region52: #{bilstm_forward.8} parent=5 // pred_fallthru
        _
    $region6: #{bilstm_forward.8} parent=1 // loop_footer
      %s15 = sadd.s32 1, %s11
    $region7: #{bilstm_forward.8} parent=1 // loop_footer_branch
      %10 = sbr.rel target = $region3
    $region8: #{bilstm_forward.8} parent=1 // loop_exit
      _
    %446 = vsyncpa [#allocation5], 1
    %s447 = scalar_lea.sflag [#allocation5], 1
    %448 = vsyncpa %s447, 1

// kernel: bilstm_forward.10
$region0: #{bilstm_forward.10}
  #allocation0 [shape = 'u32[]', space=smem, size = 0x4, offset = 0x4, fixed_abs, tag = 'smem constant byte address 0x4 - core index']
  #allocation1 [shape = 'u32[72,128]{1,0:T(1,128)}', space=vmem, size = 0x9000, scoped, tag = 'internal scratch']
  #allocation2 [shape = 'f32[2,32]{1,0:T(2,128)}', space=vmem, size = 0x400, scoped, tag = 'scratch operand']
  #allocation3 [shape = 'f32[2,32]{1,0:T(2,128)}', space=vmem, size = 0x400, scoped, tag = 'scratch operand']
  %s0 = inlined_call_operand.vmem [shape: f32[8,2,64], index: 0, kind: input, shape index: {}]
  %s1 = inlined_call_operand.vmem [shape: f32[64,128], index: 1, kind: input, shape index: {}]
  %s2 = inlined_call_operand.hbm [shape: f32[32,128], index: 2, kind: input, shape index: {}]
  %s3 = inlined_call_operand.vmem [shape: f32[1,128], index: 3, kind: input, shape index: {}]
  %s4 = inlined_call_operand.vmem [shape: f32[8,2,32], index: 4, kind: output, shape index: {}]
  %s5 = sld [smem:[#allocation0]]
  $region57: #{bilstm_forward.10} parent=0
    _
  %s7 = ssub.s32 1, %s5
  %s8 = scalar_select 0, %s7, %s5
  $region1: #{bilstm_forward.10} parent=0
    #allocation4 [shape = 'u8[16384]{0}', space=vmem, size = 0x4000, scoped, tag = 'input window, operand 2, single buffered']
    #allocation5 [shape = 's32[2]{0}', space=sflag, size = 0x8, scoped, tag = 'scoped memory for bilstm_forward.10']
    %9 = vsyncpa [#allocation5], 0
    loop: start=0, step=1, limit=10
    $region2: #{bilstm_forward.10} parent=1 // loop_pre_header
      _
    $region3: #{bilstm_forward.10} parent=1 // loop_header
      %s11 = sphi 0, %s15
      %p12 = scmp.ge.s32.totalorder %s11, 10
      %s23 = sphi 0, %s25
      %s26 = sphi 0, %s23
      %s27 = sphi 0, %s26
      %s43 = sphi 0, %s27
      %s47 = sphi 0, %s47
      %s49 = sphi 0, %s47
      %s50 = sphi 0, %s49
      %s64 = sphi 0, %s50
      %s68 = sphi 0, %s68
      %s70 = sphi 0, %s68
      %s71 = sphi 0, %s70
      %s85 = sphi 0, %s71
      %s89 = sphi 0, %s89
      %s91 = sphi 0, %s89
      %s92 = sphi 0, %s91
      %s106 = sphi 0, %s92
      %s114 = sphi 0, %s116
      %s117 = sphi 0, %s114
      %s118 = sphi 0, %s117
      %s134 = sphi 0, %s118
    $region4: #{bilstm_forward.10} parent=1 // loop_header_branch
      %14 = sbr.rel (%p12) target = $region8
    $region5: #{bilstm_forward.10} parent=1 // loop_body
      %s16 = ssub.s32 %s11, 1
      %s17 = ssub.s32 %s11, 2
      %s18 = sadd.s32 %s11, 1
      %s19 = ssub.s32 7, %s11
      %s20 = ssub.s32 7, %s18
      %s21 = ssub.s32 %s19, %s20
      %p22 = scmp.eq.s32.totalorder %s21, 0
      %s24 = sadd.s32 %s23, 1
      %s25 = scalar_select %p22, %s23, %s24
      %p28 = pneg %p22
      %p29 = scmp.eq.s32.totalorder %s11, 7
      %p30 = por %p28, %p29
      %p31 = scmp.ne.s32.totalorder %s23, %s26
      %p32 = scmp.eq.s32.totalorder %s11, 0
      %p33 = por %p31, %p32
      %p34 = scmp.ne.s32.totalorder %s23, %s26
      %p35 = scmp.eq.s32.totalorder %s16, 7
      %p36 = por %p34, %p35
      %p37 = scmp.ne.s32.totalorder %s26, %s27
      %p38 = scmp.eq.s32.totalorder %s16, 0
      %p39 = por %p37, %p38
      %p40 = scmp.ne.s32.totalorder %s26, %s27
      %p41 = scmp.eq.s32.totalorder %s17, 7
      %p42 = por %p40, %p41
      %p44 = scmp.ne.s32.totalorder %s27, %s43
      %p45 = scmp.eq.s32.totalorder %s17, 0
      %p46 = por %p44, %p45
      %s48 = sadd.s32 %s47, 1
      %p51 = scmp.eq.s32.totalorder %s11, 7
      %p52 = scmp.ne.s32.totalorder %s47, %s49
      %p53 = scmp.eq.s32.totalorder %s11, 0
      %p54 = por %p52, %p53
      %p55 = scmp.ne.s32.totalorder %s47, %s49
      %p56 = scmp.eq.s32.totalorder %s16, 7
      %p57 = por %p55, %p56
      %p58 = scmp.ne.s32.totalorder %s49, %s50
      %p59 = scmp.eq.s32.totalorder %s16, 0
      %p60 = por %p58, %p59
      %p61 = scmp.ne.s32.totalorder %s49, %s50
      %p62 = scmp.eq.s32.totalorder %s17, 7
      %p63 = por %p61, %p62
      %p65 = scmp.ne.s32.totalorder %s50, %s64
      %p66 = scmp.eq.s32.totalorder %s17, 0
      %p67 = por %p65, %p66
      %s69 = sadd.s32 %s68, 1
      %p72 = scmp.eq.s32.totalorder %s11, 7
      %p73 = scmp.ne.s32.totalorder %s68, %s70
      %p74 = scmp.eq.s32.totalorder %s11, 0
      %p75 = por %p73, %p74
      %p76 = scmp.ne.s32.totalorder %s68, %s70
      %p77 = scmp.eq.s32.totalorder %s16, 7
      %p78 = por %p76, %p77
      %p79 = scmp.ne.s32.totalorder %s70, %s71
      %p80 = scmp.eq.s32.totalorder %s16, 0
      %p81 = por %p79, %p80
      %p82 = scmp.ne.s32.totalorder %s70, %s71
      %p83 = scmp.eq.s32.totalorder %s17, 7
      %p84 = por %p82, %p83
      %p86 = scmp.ne.s32.totalorder %s71, %s85
      %p87 = scmp.eq.s32.totalorder %s17, 0
      %p88 = por %p86, %p87
      %s90 = sadd.s32 %s89, 1
      %p93 = scmp.eq.s32.totalorder %s11, 7
      %p94 = scmp.ne.s32.totalorder %s89, %s91
      %p95 = scmp.eq.s32.totalorder %s11, 0
      %p96 = por %p94, %p95
      %p97 = scmp.ne.s32.totalorder %s89, %s91
      %p98 = scmp.eq.s32.totalorder %s16, 7
      %p99 = por %p97, %p98
      %p100 = scmp.ne.s32.totalorder %s91, %s92
      %p101 = scmp.eq.s32.totalorder %s16, 0
      %p102 = por %p100, %p101
      %p103 = scmp.ne.s32.totalorder %s91, %s92
      %p104 = scmp.eq.s32.totalorder %s17, 7
      %p105 = por %p103, %p104
      %p107 = scmp.ne.s32.totalorder %s92, %s106
      %p108 = scmp.eq.s32.totalorder %s17, 0
      %p109 = por %p107, %p108
      %s110 = ssub.s32 7, %s11
      %s111 = ssub.s32 7, %s18
      %s112 = ssub.s32 %s110, %s111
      %p113 = scmp.eq.s32.totalorder %s112, 0
      %s115 = sadd.s32 %s114, 1
      %s116 = scalar_select %p113, %s114, %s115
      %p119 = pneg %p113
      %p120 = scmp.eq.s32.totalorder %s11, 7
      %p121 = por %p119, %p120
      %p122 = scmp.ne.s32.totalorder %s114, %s117
      %p123 = scmp.eq.s32.totalorder %s11, 0
      %p124 = por %p122, %p123
      %p125 = scmp.ne.s32.totalorder %s114, %s117
      %p126 = scmp.eq.s32.totalorder %s16, 7
      %p127 = por %p125, %p126
      %p128 = scmp.ne.s32.totalorder %s117, %s118
      %p129 = scmp.eq.s32.totalorder %s16, 0
      %p130 = por %p128, %p129
      %p131 = scmp.ne.s32.totalorder %s117, %s118
      %p132 = scmp.eq.s32.totalorder %s17, 7
      %p133 = por %p131, %p132
      %p135 = scmp.ne.s32.totalorder %s118, %s134
      %p136 = scmp.eq.s32.totalorder %s17, 0
      %p137 = por %p135, %p136
      %p138 = scmp.le.s32.totalorder 1, %s11
      %p139 = scmp.lt.s32.totalorder %s11, 9
      %p140 = pnand %p138, %p139
      %p141 = pneg %p140
      // Predicated region
      $region9: #{bilstm_forward.10} parent=5 // pred_check
        _
      $region10: #{bilstm_forward.10} parent=5 // pred_check_branch
        %143 = sbr.rel (%p140) target = $region12
      $region11: #{bilstm_forward.10} parent=5 // pred_region
        %s144 = ssub.s32 %s11, 1
        // Predicated region
        $region13: #{bilstm_forward.10} parent=11 // pred_check
          %p145 = pneg %p60
        $region14: #{bilstm_forward.10} parent=11 // pred_check_branch
          %147 = sbr.rel (%p145) target = $region16
        $region15: #{bilstm_forward.10} parent=11 // pred_region
          _
        $region16: #{bilstm_forward.10} parent=11 // pred_fallthru
          _
        // Predicated region
        $region17: #{bilstm_forward.10} parent=11 // pred_check
          %p148 = pneg %p81
        $region18: #{bilstm_forward.10} parent=11 // pred_check_branch
          %150 = sbr.rel (%p148) target = $region20
        $region19: #{bilstm_forward.10} parent=11 // pred_region
          %152 = vsyncadd [#allocation5], 0
          %s153 = sshll.u32 %s2, 4
          %s154 = int_to_ptr.hbm [resolvable:$true] %s153
          %s155 = sshll.u32 [#allocation4], 4
          %s156 = int_to_ptr.vmem [resolvable:$true] %s155
          %161 = dma.hbm_to_vmem [thread:$0]  %s154, 512, %s156, [#allocation5], 128, 128, 8
        $region20: #{bilstm_forward.10} parent=11 // pred_fallthru
          _
        // Predicated region
        $region21: #{bilstm_forward.10} parent=11 // pred_check
          %p162 = pneg %p102
        $region22: #{bilstm_forward.10} parent=11 // pred_check_branch
          %164 = sbr.rel (%p162) target = $region24
        $region23: #{bilstm_forward.10} parent=11 // pred_region
          _
        $region24: #{bilstm_forward.10} parent=11 // pred_fallthru
          _
      $region12: #{bilstm_forward.10} parent=5 // pred_fallthru
        _
      %p165 = scmp.lt.s32.totalorder %s11, 8
      // Predicated region
      $region25: #{bilstm_forward.10} parent=5 // pred_check
        %p166 = pneg %p165
      $region26: #{bilstm_forward.10} parent=5 // pred_check_branch
        %168 = sbr.rel (%p166) target = $region28
      $region27: #{bilstm_forward.10} parent=5 // pred_region
        // Predicated region
        $region29: #{bilstm_forward.10} parent=27 // pred_check
          %p169 = pneg %p33
        $region30: #{bilstm_forward.10} parent=27 // pred_check_branch
          %171 = sbr.rel (%p169) target = $region32
        $region31: #{bilstm_forward.10} parent=27 // pred_region
          %s172 = ssub.s32 7, %s11
          %p173 = scmp.lt.s32.totalorder %s172, 7
          %s174 = scalar_select %p173, %s172, 7
          %s175 = smul.addr %s174, 2
          %s176 = scalar_lea.vmem %s0, %s175
          %s177 = ssub.s32 7, %s11
        $region32: #{bilstm_forward.10} parent=27 // pred_fallthru
          _
      $region28: #{bilstm_forward.10} parent=5 // pred_fallthru
        _
      %p178 = scmp.le.s32.totalorder 1, %s11
      %p179 = scmp.lt.s32.totalorder %s11, 9
      %p180 = pnand %p178, %p179
      %p181 = pneg %p180
      // Predicated region
      $region33: #{bilstm_forward.10} parent=5 // pred_check
        _
      $region34: #{bilstm_forward.10} parent=5 // pred_check_branch
        %183 = sbr.rel (%p180) target = $region36
      $region35: #{bilstm_forward.10} parent=5 // pred_region
        %s184 = ssub.s32 %s11, 1
        // Predicated region
        $region37: #{bilstm_forward.10} parent=35 // pred_check
          %p185 = pneg %p81
        $region38: #{bilstm_forward.10} parent=35 // pred_check_branch
          %187 = sbr.rel (%p185) target = $region40
        $region39: #{bilstm_forward.10} parent=35 // pred_region
          %189 = dma.done [#allocation5], 512
        $region40: #{bilstm_forward.10} parent=35 // pred_fallthru
          _
        %s190 = ssub.s32 7, %s16
        %p191 = scmp.lt.s32.totalorder %s190, 7
        %s192 = scalar_select %p191, %s190, 7
        %s193 = smul.addr %s192, 2
        %s194 = scalar_lea.vmem %s0, %s193
        %p195 = pneg %p39
        %p196 = pneg %p36
        %p197 = pneg %p60
        %p198 = pneg %p57
        %p199 = pneg %p81
        %p200 = pneg %p78
        %p201 = pneg %p102
        %p202 = pneg %p99
        %p203 = pneg %p130
        %p204 = pneg %p127
        %s205 = ssub.s32 7, %s16
        %p206 = scmp.lt.s32.totalorder %s205, 7
        %s207 = scalar_select %p206, %s205, 7
        %s208 = smul.addr %s207, 2
        %s209 = scalar_lea.vmem %s4, %s208
        %s210 = ssub.s32 7, %s16
        %p211 = scmp.lt.s32.totalorder %s210, 7
        %s212 = scalar_select %p211, %s210, 7
        %s213 = smul.addr %s212, 2
        %s214 = scalar_lea.vmem %s0, %s213
        %s215 = ssub.s32 7, %s16
        %s216 = ssub.s32 7, %s16
        %p217 = scmp.lt.s32.totalorder %s216, 7
        %s218 = scalar_select %p217, %s216, 7
        %s219 = smul.addr %s218, 2
        %s220 = scalar_lea.vmem %s4, %s219
        %s221 = ssub.s32 7, %s16
        %p222 = scmp.eq.s32.totalorder %s16, 0
        // Predicated region
        $region41: #{bilstm_forward.10} parent=35 // pred_check
          %p223 = pneg %p222
        $region42: #{bilstm_forward.10} parent=35 // pred_check_branch
          %225 = sbr.rel (%p223) target = $region44
        $region43: #{bilstm_forward.10} parent=35 // pred_region
          %vm226 = vcmask 254976
          %227 = vst.msk [vmem:[#allocation2] sm:$0x3] %vm226, 0.0
          %228 = vst.msk [vmem:[#allocation3] sm:$0x3] %vm226, 0.0
        $region44: #{bilstm_forward.10} parent=35 // pred_fallthru
          _
        %v229 = vld [vmem:[%s214] sm:$0x3]
        %v230 = vld [vmem:[%s1] sm:$0xff]
        %v231 = vld [vmem:[%s1 + $0x8] sm:$0xff]
        %v232 = vld [vmem:[%s1 + $0x10] sm:$0xff]
        %v233 = vld [vmem:[%s1 + $0x18] sm:$0xff]
        %v234 = vld [vmem:[%s1 + $0x20] sm:$0xff]
        %v235 = vld [vmem:[%s1 + $0x28] sm:$0xff]
        %v236 = vld [vmem:[%s1 + $0x30] sm:$0xff]
        %v237 = vld [vmem:[%s1 + $0x38] sm:$0xff]
        %v238 = vld [vmem:[#allocation2] sm:$0x3]
        %v239 = vld [vmem:[#allocation4] sm:$0xff]
        %v240 = vld [vmem:[#allocation4 + $0x8] sm:$0xff]
        %v241 = vld [vmem:[#allocation4 + $0x10] sm:$0xff]
        %v242 = vld [vmem:[#allocation4 + $0x18] sm:$0xff]
        %vm243 = vcmask 261120
        %v245 = vsel %vm243, %v238, 0
        %247 = vmatpush.msra.mxu0 0.0
        %248 = vmatpush.msra.mxu0 0.0
        %249 = vmatpush.msra.mxu0 0.0
        %250 = vmatpush.msra.mxu0 0.0
        %251 = vmatpush.msra.mxu0 0.0
        %252 = vmatpush.msra.mxu0 0.0
        %253 = vmatpush.msra.mxu0 0.0
        %254 = vmatpush.msra.mxu0 0.0
        %255 = vmatpush.msra.mxu0 0.0
        %256 = vmatpush.msra.mxu0 0.0
        %257 = vmatpush.msra.mxu0 0.0
        %258 = vmatpush.msra.mxu0 0.0
        %259 = vmatpush.msra.mxu0 %v242
        %260 = vmatpush.msra.mxu0 %v241
        %261 = vmatpush.msra.mxu0 %v240
        %262 = vmatpush.msra.mxu0 %v239
        %263 = vmatmul.f32.gmra.mxu0 %v245
        %v264 = vpop.f32.mrf.mxu0
        %v265 = vadd.f32 0.0, %v264
        %266 = vdwg.mxu0
        %vm267 = vcmask 523264
        %v269 = vsel %vm267, %v229, 0
        %271 = vmatpush.msra.mxu0 0.0
        %272 = vmatpush.msra.mxu0 0.0
        %273 = vmatpush.msra.mxu0 0.0
        %274 = vmatpush.msra.mxu0 0.0
        %275 = vmatpush.msra.mxu0 0.0
        %276 = vmatpush.msra.mxu0 0.0
        %277 = vmatpush.msra.mxu0 0.0
        %278 = vmatpush.msra.mxu0 0.0
        %279 = vmatpush.msra.mxu0 %v237
        %280 = vmatpush.msra.mxu0 %v236
        %281 = vmatpush.msra.mxu0 %v235
        %282 = vmatpush.msra.mxu0 %v234
        %283 = vmatpush.msra.mxu0 %v233
        %284 = vmatpush.msra.mxu0 %v232
        %285 = vmatpush.msra.mxu0 %v231
        %286 = vmatpush.msra.mxu0 %v230
        %287 = vmatmul.f32.gmra.mxu0 %v269
        %v288 = vpop.f32.mrf.mxu0
        %v289 = vadd.f32 %v265, %v288
        %290 = vdwg.mxu0
        %v291 = vld [vmem:[%s3] sm:$0x1]
        %v293 = vperm.slane %v291, 0
        %v295 = vadd.f32 %v289, %v293
        %v296 = vsub.f32 0.0, %v295
        %v297 = vmul.f32 %v296, 1.442695
        %v298 = vpow.pop %v297
        %v299 = vadd.f32 %v298, 1.0
        %v300 = vrcp.pop %v299
        %v301 = vmul.f32 %v299, %v300
        %v302 = vsub.f32 1.0, %v301
        %v303 = vmul.f32 %v300, %v302
        %v304 = vadd.f32 %v300, %v303
        %vm305 = vweird.f32 %v299
        %vm306 = vweird.f32 %v300
        %vm307 = vmor %vm305, %vm306
        %v308 = vsel %vm307, %v300, %v304
        %v309 = vand.u32 2147483647, %v299
        %vm310 = vcmp.eq.f32.partialorder %v309, 8.507059e+37
        %v311 = vand.u32 %v299, 2147483648
        %v312 = vor.u32 1.1754944e-38, %v311
        %v313 = vsel %vm310, %v312, %v308
        %v314 = vmul.f32 1.0, %v313
        %v315 = vtanh.pop %v295
        %v316 = vld [vmem:[#allocation3] sm:$0x3]
        %318 = vrot.lane.b32.xlu0 %v316, 32
        %v319 = vpop.permute.xlu0 %318
        %v321 = vmul.f32 %v314, %v319
        %323 = vrot.lane.b32.xlu0 %v315, 64
        %v324 = vpop.permute.xlu0 %323
        %v326 = vmul.f32 %v314, %v324
        %328 = vrot.lane.b32.xlu0 %v326, 32
        %v329 = vpop.permute.xlu0 %328
        %v331 = vadd.f32 %v321, %v329
        %v332 = vtanh.pop %v331
        %334 = vrot.lane.b32.xlu0 %v332, 64
        %v335 = vpop.permute.xlu0 %334
        %v337 = vmul.f32 %v314, %v335
        %339 = vrot.lane.b32.xlu0 %v331, 96
        %v340 = vpop.permute.xlu0 %339
        %vm342 = vcmask 254976
        %343 = vst.msk [vmem:[#allocation3] sm:$0x3] %vm342, %v340
        %345 = vrot.lane.b32.xlu0 %v337, 32
        %v346 = vpop.permute.xlu0 %345
        %348 = vst.msk [vmem:[#allocation2] sm:$0x3] %vm342, %v346
        %349 = vst.msk [vmem:[%s220] sm:$0x3] %vm342, %v346
        %s350 = ssub.s32 7, %s16
        %p351 = scmp.lt.s32.totalorder %s350, 7
        %s352 = scalar_select %p351, %s350, 7
        %s353 = smul.addr %s352, 2
        %s354 = scalar_lea.vmem %s4, %s353
        // Predicated region
        $region45: #{bilstm_forward.10} parent=35 // pred_check
          %p355 = pneg %p127
        $region46: #{bilstm_forward.10} parent=35 // pred_check_branch
          %357 = sbr.rel (%p355) target = $region48
        $region47: #{bilstm_forward.10} parent=35 // pred_region
          %s358 = ssub.s32 7, %s16
        $region48: #{bilstm_forward.10} parent=35 // pred_fallthru
          _
      $region36: #{bilstm_forward.10} parent=5 // pred_fallthru
        _
      %p359 = scmp.le.s32.totalorder 2, %s11
      // Predicated region
      $region49: #{bilstm_forward.10} parent=5 // pred_check
        %p360 = pneg %p359
      $region50: #{bilstm_forward.10} parent=5 // pred_check_branch
        %362 = sbr.rel (%p360) target = $region52
      $region51: #{bilstm_forward.10} parent=5 // pred_region
        %s363 = ssub.s32 %s11, 2
        // Predicated region
        $region53: #{bilstm_forward.10} parent=51 // pred_check
          %p364 = pneg %p133
        $region54: #{bilstm_forward.10} parent=51 // pred_check_branch
          %366 = sbr.rel (%p364) target = $region56
        $region55: #{bilstm_forward.10} parent=51 // pred_region
          %s367 = ssub.s32 7, %s17
          %p368 = scmp.lt.s32.totalorder %s367, 7
          %s369 = scalar_select %p368, %s367, 7
          %s370 = smul.addr %s369, 2
          %s371 = scalar_lea.vmem %s4, %s370
        $region56: #{bilstm_forward.10} parent=51 // pred_fallthru
          _
      $region52: #{bilstm_forward.10} parent=5 // pred_fallthru
        _
    $region6: #{bilstm_forward.10} parent=1 // loop_footer
      %s15 = sadd.s32 1, %s11
    $region7: #{bilstm_forward.10} parent=1 // loop_footer_branch
      %10 = sbr.rel target = $region3
    $region8: #{bilstm_forward.10} parent=1 // loop_exit
      _
    %372 = vsyncpa [#allocation5], 1
    %s373 = scalar_lea.sflag [#allocation5], 1
    %374 = vsyncpa %s373, 1

// kernel: bilstm_forward.9
$region0: #{bilstm_forward.9}
  #allocation0 [shape = 'u32[]', space=smem, size = 0x4, offset = 0x4, fixed_abs, tag = 'smem constant byte address 0x4 - core index']
  #allocation1 [shape = 'u32[72,128]{1,0:T(1,128)}', space=vmem, size = 0x9000, scoped, tag = 'internal scratch']
  #allocation2 [shape = 'f32[2,32]{1,0:T(2,128)}', space=vmem, size = 0x400, scoped, tag = 'scratch operand']
  #allocation3 [shape = 'f32[2,32]{1,0:T(2,128)}', space=vmem, size = 0x400, scoped, tag = 'scratch operand']
  %s0 = inlined_call_operand.vmem [shape: f32[8,2,64], index: 0, kind: input, shape index: {}]
  %s1 = inlined_call_operand.vmem [shape: f32[64,128], index: 1, kind: input, shape index: {}]
  %s2 = inlined_call_operand.hbm [shape: f32[32,128], index: 2, kind: input, shape index: {}]
  %s3 = inlined_call_operand.vmem [shape: f32[1,128], index: 3, kind: input, shape index: {}]
  %s4 = inlined_call_operand.vmem [shape: f32[8,2,32], index: 4, kind: output, shape index: {}]
  %s5 = sld [smem:[#allocation0]]
  $region57: #{bilstm_forward.9} parent=0
    _
  %s7 = ssub.s32 1, %s5
  %s8 = scalar_select 0, %s7, %s5
  $region1: #{bilstm_forward.9} parent=0
    #allocation4 [shape = 'u8[16384]{0}', space=vmem, size = 0x4000, scoped, tag = 'input window, operand 2, single buffered']
    #allocation5 [shape = 's32[2]{0}', space=sflag, size = 0x8, scoped, tag = 'scoped memory for bilstm_forward.9']
    %9 = vsyncpa [#allocation5], 0
    loop: start=0, step=1, limit=10
    $region2: #{bilstm_forward.9} parent=1 // loop_pre_header
      _
    $region3: #{bilstm_forward.9} parent=1 // loop_header
      %s11 = sphi 0, %s15
      %p12 = scmp.ge.s32.totalorder %s11, 10
      %s21 = sphi 0, %s23
      %s24 = sphi 0, %s21
      %s25 = sphi 0, %s24
      %s41 = sphi 0, %s25
      %s45 = sphi 0, %s45
      %s47 = sphi 0, %s45
      %s48 = sphi 0, %s47
      %s62 = sphi 0, %s48
      %s66 = sphi 0, %s66
      %s68 = sphi 0, %s66
      %s69 = sphi 0, %s68
      %s83 = sphi 0, %s69
      %s87 = sphi 0, %s87
      %s89 = sphi 0, %s87
      %s90 = sphi 0, %s89
      %s104 = sphi 0, %s90
      %s110 = sphi 0, %s112
      %s113 = sphi 0, %s110
      %s114 = sphi 0, %s113
      %s130 = sphi 0, %s114
    $region4: #{bilstm_forward.9} parent=1 // loop_header_branch
      %14 = sbr.rel (%p12) target = $region8
    $region5: #{bilstm_forward.9} parent=1 // loop_body
      %s16 = ssub.s32 %s11, 1
      %s17 = ssub.s32 %s11, 2
      %s18 = sadd.s32 %s11, 1
      %s19 = ssub.s32 %s11, %s18
      %p20 = scmp.eq.s32.totalorder %s19, 0
      %s22 = sadd.s32 %s21, 1
      %s23 = scalar_select %p20, %s21, %s22
      %p26 = pneg %p20
      %p27 = scmp.eq.s32.totalorder %s11, 7
      %p28 = por %p26, %p27
      %p29 = scmp.ne.s32.totalorder %s21, %s24
      %p30 = scmp.eq.s32.totalorder %s11, 0
      %p31 = por %p29, %p30
      %p32 = scmp.ne.s32.totalorder %s21, %s24
      %p33 = scmp.eq.s32.totalorder %s16, 7
      %p34 = por %p32, %p33
      %p35 = scmp.ne.s32.totalorder %s24, %s25
      %p36 = scmp.eq.s32.totalorder %s16, 0
      %p37 = por %p35, %p36
      %p38 = scmp.ne.s32.totalorder %s24, %s25
      %p39 = scmp.eq.s32.totalorder %s17, 7
      %p40 = por %p38, %p39
      %p42 = scmp.ne.s32.totalorder %s25, %s41
      %p43 = scmp.eq.s32.totalorder %s17, 0
      %p44 = por %p42, %p43
      %s46 = sadd.s32 %s45, 1
      %p49 = scmp.eq.s32.totalorder %s11, 7
      %p50 = scmp.ne.s32.totalorder %s45, %s47
      %p51 = scmp.eq.s32.totalorder %s11, 0
      %p52 = por %p50, %p51
      %p53 = scmp.ne.s32.totalorder %s45, %s47
      %p54 = scmp.eq.s32.totalorder %s16, 7
      %p55 = por %p53, %p54
      %p56 = scmp.ne.s32.totalorder %s47, %s48
      %p57 = scmp.eq.s32.totalorder %s16, 0
      %p58 = por %p56, %p57
      %p59 = scmp.ne.s32.totalorder %s47, %s48
      %p60 = scmp.eq.s32.totalorder %s17, 7
      %p61 = por %p59, %p60
      %p63 = scmp.ne.s32.totalorder %s48, %s62
      %p64 = scmp.eq.s32.totalorder %s17, 0
      %p65 = por %p63, %p64
      %s67 = sadd.s32 %s66, 1
      %p70 = scmp.eq.s32.totalorder %s11, 7
      %p71 = scmp.ne.s32.totalorder %s66, %s68
      %p72 = scmp.eq.s32.totalorder %s11, 0
      %p73 = por %p71, %p72
      %p74 = scmp.ne.s32.totalorder %s66, %s68
      %p75 = scmp.eq.s32.totalorder %s16, 7
      %p76 = por %p74, %p75
      %p77 = scmp.ne.s32.totalorder %s68, %s69
      %p78 = scmp.eq.s32.totalorder %s16, 0
      %p79 = por %p77, %p78
      %p80 = scmp.ne.s32.totalorder %s68, %s69
      %p81 = scmp.eq.s32.totalorder %s17, 7
      %p82 = por %p80, %p81
      %p84 = scmp.ne.s32.totalorder %s69, %s83
      %p85 = scmp.eq.s32.totalorder %s17, 0
      %p86 = por %p84, %p85
      %s88 = sadd.s32 %s87, 1
      %p91 = scmp.eq.s32.totalorder %s11, 7
      %p92 = scmp.ne.s32.totalorder %s87, %s89
      %p93 = scmp.eq.s32.totalorder %s11, 0
      %p94 = por %p92, %p93
      %p95 = scmp.ne.s32.totalorder %s87, %s89
      %p96 = scmp.eq.s32.totalorder %s16, 7
      %p97 = por %p95, %p96
      %p98 = scmp.ne.s32.totalorder %s89, %s90
      %p99 = scmp.eq.s32.totalorder %s16, 0
      %p100 = por %p98, %p99
      %p101 = scmp.ne.s32.totalorder %s89, %s90
      %p102 = scmp.eq.s32.totalorder %s17, 7
      %p103 = por %p101, %p102
      %p105 = scmp.ne.s32.totalorder %s90, %s104
      %p106 = scmp.eq.s32.totalorder %s17, 0
      %p107 = por %p105, %p106
      %s108 = ssub.s32 %s11, %s18
      %p109 = scmp.eq.s32.totalorder %s108, 0
      %s111 = sadd.s32 %s110, 1
      %s112 = scalar_select %p109, %s110, %s111
      %p115 = pneg %p109
      %p116 = scmp.eq.s32.totalorder %s11, 7
      %p117 = por %p115, %p116
      %p118 = scmp.ne.s32.totalorder %s110, %s113
      %p119 = scmp.eq.s32.totalorder %s11, 0
      %p120 = por %p118, %p119
      %p121 = scmp.ne.s32.totalorder %s110, %s113
      %p122 = scmp.eq.s32.totalorder %s16, 7
      %p123 = por %p121, %p122
      %p124 = scmp.ne.s32.totalorder %s113, %s114
      %p125 = scmp.eq.s32.totalorder %s16, 0
      %p126 = por %p124, %p125
      %p127 = scmp.ne.s32.totalorder %s113, %s114
      %p128 = scmp.eq.s32.totalorder %s17, 7
      %p129 = por %p127, %p128
      %p131 = scmp.ne.s32.totalorder %s114, %s130
      %p132 = scmp.eq.s32.totalorder %s17, 0
      %p133 = por %p131, %p132
      %p134 = scmp.le.s32.totalorder 1, %s11
      %p135 = scmp.lt.s32.totalorder %s11, 9
      %p136 = pnand %p134, %p135
      %p137 = pneg %p136
      // Predicated region
      $region9: #{bilstm_forward.9} parent=5 // pred_check
        _
      $region10: #{bilstm_forward.9} parent=5 // pred_check_branch
        %139 = sbr.rel (%p136) target = $region12
      $region11: #{bilstm_forward.9} parent=5 // pred_region
        %s140 = ssub.s32 %s11, 1
        // Predicated region
        $region13: #{bilstm_forward.9} parent=11 // pred_check
          %p141 = pneg %p58
        $region14: #{bilstm_forward.9} parent=11 // pred_check_branch
          %143 = sbr.rel (%p141) target = $region16
        $region15: #{bilstm_forward.9} parent=11 // pred_region
          _
        $region16: #{bilstm_forward.9} parent=11 // pred_fallthru
          _
        // Predicated region
        $region17: #{bilstm_forward.9} parent=11 // pred_check
          %p144 = pneg %p79
        $region18: #{bilstm_forward.9} parent=11 // pred_check_branch
          %146 = sbr.rel (%p144) target = $region20
        $region19: #{bilstm_forward.9} parent=11 // pred_region
          %148 = vsyncadd [#allocation5], 0
          %s149 = sshll.u32 %s2, 4
          %s150 = int_to_ptr.hbm [resolvable:$true] %s149
          %s151 = sshll.u32 [#allocation4], 4
          %s152 = int_to_ptr.vmem [resolvable:$true] %s151
          %157 = dma.hbm_to_vmem [thread:$0]  %s150, 512, %s152, [#allocation5], 128, 128, 8
        $region20: #{bilstm_forward.9} parent=11 // pred_fallthru
          _
        // Predicated region
        $region21: #{bilstm_forward.9} parent=11 // pred_check
          %p158 = pneg %p100
        $region22: #{bilstm_forward.9} parent=11 // pred_check_branch
          %160 = sbr.rel (%p158) target = $region24
        $region23: #{bilstm_forward.9} parent=11 // pred_region
          _
        $region24: #{bilstm_forward.9} parent=11 // pred_fallthru
          _
      $region12: #{bilstm_forward.9} parent=5 // pred_fallthru
        _
      %p161 = scmp.lt.s32.totalorder %s11, 8
      // Predicated region
      $region25: #{bilstm_forward.9} parent=5 // pred_check
        %p162 = pneg %p161
      $region26: #{bilstm_forward.9} parent=5 // pred_check_branch
        %164 = sbr.rel (%p162) target = $region28
      $region27: #{bilstm_forward.9} parent=5 // pred_region
        // Predicated region
        $region29: #{bilstm_forward.9} parent=27 // pred_check
          %p165 = pneg %p31
        $region30: #{bilstm_forward.9} parent=27 // pred_check_branch
          %167 = sbr.rel (%p165) target = $region32
        $region31: #{bilstm_forward.9} parent=27 // pred_region
          %p168 = scmp.lt.s32.totalorder %s11, 7
          %s169 = scalar_select %p168, %s11, 7
          %s170 = smul.addr %s169, 2
          %s171 = scalar_lea.vmem %s0, %s170
        $region32: #{bilstm_forward.9} parent=27 // pred_fallthru
          _
      $region28: #{bilstm_forward.9} parent=5 // pred_fallthru
        _
      %p172 = scmp.le.s32.totalorder 1, %s11
      %p173 = scmp.lt.s32.totalorder %s11, 9
      %p174 = pnand %p172, %p173
      %p175 = pneg %p174
      // Predicated region
      $region33: #{bilstm_forward.9} parent=5 // pred_check
        _
      $region34: #{bilstm_forward.9} parent=5 // pred_check_branch
        %177 = sbr.rel (%p174) target = $region36
      $region35: #{bilstm_forward.9} parent=5 // pred_region
        %s178 = ssub.s32 %s11, 1
        // Predicated region
        $region37: #{bilstm_forward.9} parent=35 // pred_check
          %p179 = pneg %p79
        $region38: #{bilstm_forward.9} parent=35 // pred_check_branch
          %181 = sbr.rel (%p179) target = $region40
        $region39: #{bilstm_forward.9} parent=35 // pred_region
          %183 = dma.done [#allocation5], 512
        $region40: #{bilstm_forward.9} parent=35 // pred_fallthru
          _
        %p184 = scmp.lt.s32.totalorder %s16, 7
        %s185 = scalar_select %p184, %s16, 7
        %s186 = smul.addr %s185, 2
        %s187 = scalar_lea.vmem %s0, %s186
        %p188 = pneg %p37
        %p189 = pneg %p34
        %p190 = pneg %p58
        %p191 = pneg %p55
        %p192 = pneg %p79
        %p193 = pneg %p76
        %p194 = pneg %p100
        %p195 = pneg %p97
        %p196 = pneg %p126
        %p197 = pneg %p123
        %p198 = scmp.lt.s32.totalorder %s16, 7
        %s199 = scalar_select %p198, %s16, 7
        %s200 = smul.addr %s199, 2
        %s201 = scalar_lea.vmem %s4, %s200
        %p202 = scmp.lt.s32.totalorder %s16, 7
        %s203 = scalar_select %p202, %s16, 7
        %s204 = smul.addr %s203, 2
        %s205 = scalar_lea.vmem %s0, %s204
        %p206 = scmp.lt.s32.totalorder %s16, 7
        %s207 = scalar_select %p206, %s16, 7
        %s208 = smul.addr %s207, 2
        %s209 = scalar_lea.vmem %s4, %s208
        %p210 = scmp.eq.s32.totalorder %s16, 0
        // Predicated region
        $region41: #{bilstm_forward.9} parent=35 // pred_check
          %p211 = pneg %p210
        $region42: #{bilstm_forward.9} parent=35 // pred_check_branch
          %213 = sbr.rel (%p211) target = $region44
        $region43: #{bilstm_forward.9} parent=35 // pred_region
          %vm214 = vcmask 254976
          %215 = vst.msk [vmem:[#allocation2] sm:$0x3] %vm214, 0.0
          %216 = vst.msk [vmem:[#allocation3] sm:$0x3] %vm214, 0.0
        $region44: #{bilstm_forward.9} parent=35 // pred_fallthru
          _
        %v217 = vld [vmem:[%s205] sm:$0x3]
        %v218 = vld [vmem:[%s1] sm:$0xff]
        %v219 = vld [vmem:[%s1 + $0x8] sm:$0xff]
        %v220 = vld [vmem:[%s1 + $0x10] sm:$0xff]
        %v221 = vld [vmem:[%s1 + $0x18] sm:$0xff]
        %v222 = vld [vmem:[%s1 + $0x20] sm:$0xff]
        %v223 = vld [vmem:[%s1 + $0x28] sm:$0xff]
        %v224 = vld [vmem:[%s1 + $0x30] sm:$0xff]
        %v225 = vld [vmem:[%s1 + $0x38] sm:$0xff]
        %v226 = vld [vmem:[#allocation2] sm:$0x3]
        %v227 = vld [vmem:[#allocation4] sm:$0xff]
        %v228 = vld [vmem:[#allocation4 + $0x8] sm:$0xff]
        %v229 = vld [vmem:[#allocation4 + $0x10] sm:$0xff]
        %v230 = vld [vmem:[#allocation4 + $0x18] sm:$0xff]
        %vm231 = vcmask 261120
        %v233 = vsel %vm231, %v226, 0
        %235 = vmatpush.msra.mxu0 0.0
        %236 = vmatpush.msra.mxu0 0.0
        %237 = vmatpush.msra.mxu0 0.0
        %238 = vmatpush.msra.mxu0 0.0
        %239 = vmatpush.msra.mxu0 0.0
        %240 = vmatpush.msra.mxu0 0.0
        %241 = vmatpush.msra.mxu0 0.0
        %242 = vmatpush.msra.mxu0 0.0
        %243 = vmatpush.msra.mxu0 0.0
        %244 = vmatpush.msra.mxu0 0.0
        %245 = vmatpush.msra.mxu0 0.0
        %246 = vmatpush.msra.mxu0 0.0
        %247 = vmatpush.msra.mxu0 %v230
        %248 = vmatpush.msra.mxu0 %v229
        %249 = vmatpush.msra.mxu0 %v228
        %250 = vmatpush.msra.mxu0 %v227
        %251 = vmatmul.f32.gmra.mxu0 %v233
        %v252 = vpop.f32.mrf.mxu0
        %v253 = vadd.f32 0.0, %v252
        %254 = vdwg.mxu0
        %vm255 = vcmask 523264
        %v257 = vsel %vm255, %v217, 0
        %259 = vmatpush.msra.mxu0 0.0
        %260 = vmatpush.msra.mxu0 0.0
        %261 = vmatpush.msra.mxu0 0.0
        %262 = vmatpush.msra.mxu0 0.0
        %263 = vmatpush.msra.mxu0 0.0
        %264 = vmatpush.msra.mxu0 0.0
        %265 = vmatpush.msra.mxu0 0.0
        %266 = vmatpush.msra.mxu0 0.0
        %267 = vmatpush.msra.mxu0 %v225
        %268 = vmatpush.msra.mxu0 %v224
        %269 = vmatpush.msra.mxu0 %v223
        %270 = vmatpush.msra.mxu0 %v222
        %271 = vmatpush.msra.mxu0 %v221
        %272 = vmatpush.msra.mxu0 %v220
        %273 = vmatpush.msra.mxu0 %v219
        %274 = vmatpush.msra.mxu0 %v218
        %275 = vmatmul.f32.gmra.mxu0 %v257
        %v276 = vpop.f32.mrf.mxu0
        %v277 = vadd.f32 %v253, %v276
        %278 = vdwg.mxu0
        %v279 = vld [vmem:[%s3] sm:$0x1]
        %v281 = vperm.slane %v279, 0
        %v283 = vadd.f32 %v277, %v281
        %v284 = vsub.f32 0.0, %v283
        %v285 = vmul.f32 %v284, 1.442695
        %v286 = vpow.pop %v285
        %v287 = vadd.f32 %v286, 1.0
        %v288 = vrcp.pop %v287
        %v289 = vmul.f32 %v287, %v288
        %v290 = vsub.f32 1.0, %v289
        %v291 = vmul.f32 %v288, %v290
        %v292 = vadd.f32 %v288, %v291
        %vm293 = vweird.f32 %v287
        %vm294 = vweird.f32 %v288
        %vm295 = vmor %vm293, %vm294
        %v296 = vsel %vm295, %v288, %v292
        %v297 = vand.u32 2147483647, %v287
        %vm298 = vcmp.eq.f32.partialorder %v297, 8.507059e+37
        %v299 = vand.u32 %v287, 2147483648
        %v300 = vor.u32 1.1754944e-38, %v299
        %v301 = vsel %vm298, %v300, %v296
        %v302 = vmul.f32 1.0, %v301
        %v303 = vtanh.pop %v283
        %v304 = vld [vmem:[#allocation3] sm:$0x3]
        %306 = vrot.lane.b32.xlu0 %v304, 32
        %v307 = vpop.permute.xlu0 %306
        %v309 = vmul.f32 %v302, %v307
        %311 = vrot.lane.b32.xlu0 %v303, 64
        %v312 = vpop.permute.xlu0 %311
        %v314 = vmul.f32 %v302, %v312
        %316 = vrot.lane.b32.xlu0 %v314, 32
        %v317 = vpop.permute.xlu0 %316
        %v319 = vadd.f32 %v309, %v317
        %v320 = vtanh.pop %v319
        %322 = vrot.lane.b32.xlu0 %v320, 64
        %v323 = vpop.permute.xlu0 %322
        %v325 = vmul.f32 %v302, %v323
        %327 = vrot.lane.b32.xlu0 %v319, 96
        %v328 = vpop.permute.xlu0 %327
        %vm330 = vcmask 254976
        %331 = vst.msk [vmem:[#allocation3] sm:$0x3] %vm330, %v328
        %333 = vrot.lane.b32.xlu0 %v325, 32
        %v334 = vpop.permute.xlu0 %333
        %336 = vst.msk [vmem:[#allocation2] sm:$0x3] %vm330, %v334
        %337 = vst.msk [vmem:[%s209] sm:$0x3] %vm330, %v334
        %p338 = scmp.lt.s32.totalorder %s16, 7
        %s339 = scalar_select %p338, %s16, 7
        %s340 = smul.addr %s339, 2
        %s341 = scalar_lea.vmem %s4, %s340
        // Predicated region
        $region45: #{bilstm_forward.9} parent=35 // pred_check
          %p342 = pneg %p123
        $region46: #{bilstm_forward.9} parent=35 // pred_check_branch
          %344 = sbr.rel (%p342) target = $region48
        $region47: #{bilstm_forward.9} parent=35 // pred_region
          _
        $region48: #{bilstm_forward.9} parent=35 // pred_fallthru
          _
      $region36: #{bilstm_forward.9} parent=5 // pred_fallthru
        _
      %p345 = scmp.le.s32.totalorder 2, %s11
      // Predicated region
      $region49: #{bilstm_forward.9} parent=5 // pred_check
        %p346 = pneg %p345
      $region50: #{bilstm_forward.9} parent=5 // pred_check_branch
        %348 = sbr.rel (%p346) target = $region52
      $region51: #{bilstm_forward.9} parent=5 // pred_region
        %s349 = ssub.s32 %s11, 2
        // Predicated region
        $region53: #{bilstm_forward.9} parent=51 // pred_check
          %p350 = pneg %p129
        $region54: #{bilstm_forward.9} parent=51 // pred_check_branch
          %352 = sbr.rel (%p350) target = $region56
        $region55: #{bilstm_forward.9} parent=51 // pred_region
          %p353 = scmp.lt.s32.totalorder %s17, 7
          %s354 = scalar_select %p353, %s17, 7
          %s355 = smul.addr %s354, 2
          %s356 = scalar_lea.vmem %s4, %s355
        $region56: #{bilstm_forward.9} parent=51 // pred_fallthru
          _
      $region52: #{bilstm_forward.9} parent=5 // pred_fallthru
        _
    $region6: #{bilstm_forward.9} parent=1 // loop_footer
      %s15 = sadd.s32 1, %s11
    $region7: #{bilstm_forward.9} parent=1 // loop_footer_branch
      %10 = sbr.rel target = $region3
    $region8: #{bilstm_forward.9} parent=1 // loop_exit
      _
    %357 = vsyncpa [#allocation5], 1
    %s358 = scalar_lea.sflag [#allocation5], 1
    %359 = vsyncpa %s358, 1

// kernel: bilstm_forward.11
$region0: #{bilstm_forward.11}
  #allocation0 [shape = 'u32[]', space=smem, size = 0x4, offset = 0x4, fixed_abs, tag = 'smem constant byte address 0x4 - core index']
  #allocation1 [shape = 'u32[72,128]{1,0:T(1,128)}', space=vmem, size = 0x9000, scoped, tag = 'internal scratch']
  #allocation2 [shape = 'f32[1,1]{1,0:T(1,128)S(1)}', space=vmem, size = 0x200, scoped, tag = 'scoped memory for bilstm_forward.11']
  %s0 = inlined_call_operand.vmem [shape: f32[16,64], index: 0, kind: input, shape index: {}]
  %s1 = inlined_call_operand.vmem [shape: f32[64,256], index: 1, kind: input, shape index: {}]
  %s2 = inlined_call_operand.vmem [shape: f32[1,256], index: 2, kind: input, shape index: {}]
  %s3 = inlined_call_operand.hbm [shape: f32[256,128], index: 3, kind: input, shape index: {}]
  %s4 = inlined_call_operand.vmem [shape: f32[1,128], index: 4, kind: input, shape index: {}]
  %s5 = inlined_call_operand.vmem [shape: f32[128,64], index: 5, kind: input, shape index: {}]
  %s6 = inlined_call_operand.vmem [shape: f32[1,64], index: 6, kind: input, shape index: {}]
  %s7 = inlined_call_operand.vmem [shape: f32[64,1], index: 7, kind: input, shape index: {}]
  %s8 = inlined_call_operand.<no memory space> [shape: f32[1,1], index: 8, kind: input, shape index: {}]
  %s9 = inlined_call_operand.vmem [shape: f32[16,1], index: 9, kind: output, shape index: {}]
  %s10 = sld [smem:[#allocation0]]
  $region50: #{bilstm_forward.11} parent=0
    _
  %s12 = ssub.s32 1, %s10
  %s13 = scalar_select 0, %s12, %s10
  %v14 = vstv %s8
  %15 = vst [vmem:[#allocation2] sm:$0x1] %v14
  $region1: #{bilstm_forward.11} parent=0
    #allocation3 [shape = 'u8[131072]{0}', space=vmem, size = 0x20000, scoped, tag = 'input window, operand 3, single buffered']
    #allocation4 [shape = 's32[1]{0}', space=sflag, size = 0x4, scoped, tag = 'scoped memory for bilstm_forward.11']
    %16 = vsyncpa [#allocation4], 0
    // Predicated region
    $region2: #{bilstm_forward.11} parent=1 // pred_check
      _
    $region3: #{bilstm_forward.11} parent=1 // pred_check_branch
      %18 = sbr.rel (0) target = $region5
    $region4: #{bilstm_forward.11} parent=1 // pred_region
      _
    $region5: #{bilstm_forward.11} parent=1 // pred_fallthru
      _
    // Predicated region
    $region6: #{bilstm_forward.11} parent=1 // pred_check
      _
    $region7: #{bilstm_forward.11} parent=1 // pred_check_branch
      %20 = sbr.rel (0) target = $region9
    $region8: #{bilstm_forward.11} parent=1 // pred_region
      _
    $region9: #{bilstm_forward.11} parent=1 // pred_fallthru
      _
    // Predicated region
    $region10: #{bilstm_forward.11} parent=1 // pred_check
      _
    $region11: #{bilstm_forward.11} parent=1 // pred_check_branch
      %22 = sbr.rel (0) target = $region13
    $region12: #{bilstm_forward.11} parent=1 // pred_region
      _
    $region13: #{bilstm_forward.11} parent=1 // pred_fallthru
      _
    // Predicated region
    $region14: #{bilstm_forward.11} parent=1 // pred_check
      _
    $region15: #{bilstm_forward.11} parent=1 // pred_check_branch
      %24 = sbr.rel (0) target = $region17
    $region16: #{bilstm_forward.11} parent=1 // pred_region
      %26 = vsyncadd [#allocation4], 0
      %s27 = sshll.u32 %s3, 4
      %s28 = int_to_ptr.hbm [resolvable:$true] %s27
      %s29 = sshll.u32 [#allocation3], 4
      %s30 = int_to_ptr.vmem [resolvable:$true] %s29
      %35 = dma.hbm_to_vmem [thread:$0]  %s28, 4096, %s30, [#allocation4], 128, 128, 8
    $region17: #{bilstm_forward.11} parent=1 // pred_fallthru
      _
    // Predicated region
    $region18: #{bilstm_forward.11} parent=1 // pred_check
      _
    $region19: #{bilstm_forward.11} parent=1 // pred_check_branch
      %37 = sbr.rel (0) target = $region21
    $region20: #{bilstm_forward.11} parent=1 // pred_region
      _
    $region21: #{bilstm_forward.11} parent=1 // pred_fallthru
      _
    // Predicated region
    $region22: #{bilstm_forward.11} parent=1 // pred_check
      _
    $region23: #{bilstm_forward.11} parent=1 // pred_check_branch
      %39 = sbr.rel (0) target = $region25
    $region24: #{bilstm_forward.11} parent=1 // pred_region
      _
    $region25: #{bilstm_forward.11} parent=1 // pred_fallthru
      _
    // Predicated region
    $region26: #{bilstm_forward.11} parent=1 // pred_check
      _
    $region27: #{bilstm_forward.11} parent=1 // pred_check_branch
      %41 = sbr.rel (0) target = $region29
    $region28: #{bilstm_forward.11} parent=1 // pred_region
      _
    $region29: #{bilstm_forward.11} parent=1 // pred_fallthru
      _
    // Predicated region
    $region30: #{bilstm_forward.11} parent=1 // pred_check
      _
    $region31: #{bilstm_forward.11} parent=1 // pred_check_branch
      %43 = sbr.rel (0) target = $region33
    $region32: #{bilstm_forward.11} parent=1 // pred_region
      _
    $region33: #{bilstm_forward.11} parent=1 // pred_fallthru
      _
    // Predicated region
    $region34: #{bilstm_forward.11} parent=1 // pred_check
      _
    $region35: #{bilstm_forward.11} parent=1 // pred_check_branch
      %45 = sbr.rel (0) target = $region37
    $region36: #{bilstm_forward.11} parent=1 // pred_region
      _
    $region37: #{bilstm_forward.11} parent=1 // pred_fallthru
      _
    // Predicated region
    $region38: #{bilstm_forward.11} parent=1 // pred_check
      _
    $region39: #{bilstm_forward.11} parent=1 // pred_check_branch
      %47 = sbr.rel (0) target = $region41
    $region40: #{bilstm_forward.11} parent=1 // pred_region
      %49 = dma.done [#allocation4], 4096
    $region41: #{bilstm_forward.11} parent=1 // pred_fallthru
      _
    %v50 = vld [vmem:[%s0] sm:$0xff]
    %v51 = vld [vmem:[%s0 + $0x8] sm:$0xff]
    %v52 = vld [vmem:[%s1] sm:$0xff]
    %v53 = vld [vmem:[%s1 + $0x8] sm:$0xff]
    %v54 = vld [vmem:[%s1 + $0x10] sm:$0xff]
    %v55 = vld [vmem:[%s1 + $0x18] sm:$0xff]
    %v56 = vld [vmem:[%s1 + $0x20] sm:$0xff]
    %v57 = vld [vmem:[%s1 + $0x28] sm:$0xff]
    %v58 = vld [vmem:[%s1 + $0x30] sm:$0xff]
    %v59 = vld [vmem:[%s1 + $0x38] sm:$0xff]
    %v60 = vld [vmem:[%s1 + $0x40] sm:$0xff]
    %v61 = vld [vmem:[%s1 + $0x48] sm:$0xff]
    %v62 = vld [vmem:[%s1 + $0x50] sm:$0xff]
    %v63 = vld [vmem:[%s1 + $0x58] sm:$0xff]
    %v64 = vld [vmem:[%s1 + $0x60] sm:$0xff]
    %v65 = vld [vmem:[%s1 + $0x68] sm:$0xff]
    %v66 = vld [vmem:[%s1 + $0x70] sm:$0xff]
    %v67 = vld [vmem:[%s1 + $0x78] sm:$0xff]
    %v68 = vld [vmem:[%s2] sm:$0x3]
    %v70 = vperm.slane %v68, 0
    %v71 = vperm.slane %v68, 1
    %vm74 = vcmask 523264
    %v76 = vsel %vm74, %v50, 0
    %v79 = vsel %vm74, %v51, 0
    %81 = vmatpush.msra.mxu0 0.0
    %82 = vmatpush.msra.mxu0 0.0
    %83 = vmatpush.msra.mxu0 0.0
    %84 = vmatpush.msra.mxu0 0.0
    %85 = vmatpush.msra.mxu0 0.0
    %86 = vmatpush.msra.mxu0 0.0
    %87 = vmatpush.msra.mxu0 0.0
    %88 = vmatpush.msra.mxu0 0.0
    %89 = vmatpush.msra.mxu0 %v66
    %90 = vmatpush.msra.mxu0 %v64
    %91 = vmatpush.msra.mxu0 %v62
    %92 = vmatpush.msra.mxu0 %v60
    %93 = vmatpush.msra.mxu0 %v58
    %94 = vmatpush.msra.mxu0 %v56
    %95 = vmatpush.msra.mxu0 %v54
    %96 = vmatpush.msra.mxu0 %v52
    %97 = vmatmul.f32.gmra.mxu0 %v76
    %v98 = vpop.f32.mrf.mxu0
    %v99 = vadd.f32 %v70, %v98
    %100 = vmatmul.f32.gmra.mxu0 %v79
    %v101 = vpop.f32.mrf.mxu0
    %v102 = vadd.f32 %v70, %v101
    %103 = vdwg.mxu0
    %104 = vmatpush.msra.mxu0 0.0
    %105 = vmatpush.msra.mxu0 0.0
    %106 = vmatpush.msra.mxu0 0.0
    %107 = vmatpush.msra.mxu0 0.0
    %108 = vmatpush.msra.mxu0 0.0
    %109 = vmatpush.msra.mxu0 0.0
    %110 = vmatpush.msra.mxu0 0.0
    %111 = vmatpush.msra.mxu0 0.0
    %112 = vmatpush.msra.mxu0 %v67
    %113 = vmatpush.msra.mxu0 %v65
    %114 = vmatpush.msra.mxu0 %v63
    %115 = vmatpush.msra.mxu0 %v61
    %116 = vmatpush.msra.mxu0 %v59
    %117 = vmatpush.msra.mxu0 %v57
    %118 = vmatpush.msra.mxu0 %v55
    %119 = vmatpush.msra.mxu0 %v53
    %120 = vmatmul.f32.gmra.mxu0 %v76
    %v121 = vpop.f32.mrf.mxu0
    %v122 = vadd.f32 %v71, %v121
    %123 = vmatmul.f32.gmra.mxu0 %v79
    %v124 = vpop.f32.mrf.mxu0
    %v125 = vadd.f32 %v71, %v124
    %126 = vdwg.mxu0
    %v127 = vmax.f32 %v99, 0.0
    %v128 = vmax.f32 %v122, 0.0
    %v129 = vmax.f32 %v102, 0.0
    %v130 = vmax.f32 %v125, 0.0
    %v131 = vld [vmem:[#allocation3] sm:$0xff]
    %v132 = vld [vmem:[#allocation3 + $0x8] sm:$0xff]
    %v133 = vld [vmem:[#allocation3 + $0x10] sm:$0xff]
    %v134 = vld [vmem:[#allocation3 + $0x18] sm:$0xff]
    %v135 = vld [vmem:[#allocation3 + $0x20] sm:$0xff]
    %v136 = vld [vmem:[#allocation3 + $0x28] sm:$0xff]
    %v137 = vld [vmem:[#allocation3 + $0x30] sm:$0xff]
    %v138 = vld [vmem:[#allocation3 + $0x38] sm:$0xff]
    %v139 = vld [vmem:[#allocation3 + $0x40] sm:$0xff]
    %v140 = vld [vmem:[#allocation3 + $0x48] sm:$0xff]
    %v141 = vld [vmem:[#allocation3 + $0x50] sm:$0xff]
    %v142 = vld [vmem:[#allocation3 + $0x58] sm:$0xff]
    %v143 = vld [vmem:[#allocation3 + $0x60] sm:$0xff]
    %v144 = vld [vmem:[#allocation3 + $0x68] sm:$0xff]
    %v145 = vld [vmem:[#allocation3 + $0x70] sm:$0xff]
    %v146 = vld [vmem:[#allocation3 + $0x78] sm:$0xff]
    %v147 = vld [vmem:[#allocation3 + $0x80] sm:$0xff]
    %v148 = vld [vmem:[#allocation3 + $0x88] sm:$0xff]
    %v149 = vld [vmem:[#allocation3 + $0x90] sm:$0xff]
    %v150 = vld [vmem:[#allocation3 + $0x98] sm:$0xff]
    %v151 = vld [vmem:[#allocation3 + $0xa0] sm:$0xff]
    %v152 = vld [vmem:[#allocation3 + $0xa8] sm:$0xff]
    %v153 = vld [vmem:[#allocation3 + $0xb0] sm:$0xff]
    %v154 = vld [vmem:[#allocation3 + $0xb8] sm:$0xff]
    %v155 = vld [vmem:[#allocation3 + $0xc0] sm:$0xff]
    %v156 = vld [vmem:[#allocation3 + $0xc8] sm:$0xff]
    %v157 = vld [vmem:[#allocation3 + $0xd0] sm:$0xff]
    %v158 = vld [vmem:[#allocation3 + $0xd8] sm:$0xff]
    %v159 = vld [vmem:[#allocation3 + $0xe0] sm:$0xff]
    %v160 = vld [vmem:[#allocation3 + $0xe8] sm:$0xff]
    %v161 = vld [vmem:[#allocation3 + $0xf0] sm:$0xff]
    %v162 = vld [vmem:[#allocation3 + $0xf8] sm:$0xff]
    %v163 = vld [vmem:[%s4] sm:$0x1]
    %v165 = vperm.slane %v163, 0
    %167 = vmatpush.msra.mxu0 %v146
    %168 = vmatpush.msra.mxu0 %v145
    %169 = vmatpush.msra.mxu0 %v144
    %170 = vmatpush.msra.mxu0 %v143
    %171 = vmatpush.msra.mxu0 %v142
    %172 = vmatpush.msra.mxu0 %v141
    %173 = vmatpush.msra.mxu0 %v140
    %174 = vmatpush.msra.mxu0 %v139
    %175 = vmatpush.msra.mxu0 %v138
    %176 = vmatpush.msra.mxu0 %v137
    %177 = vmatpush.msra.mxu0 %v136
    %178 = vmatpush.msra.mxu0 %v135
    %179 = vmatpush.msra.mxu0 %v134
    %180 = vmatpush.msra.mxu0 %v133
    %181 = vmatpush.msra.mxu0 %v132
    %182 = vmatpush.msra.mxu0 %v131
    %183 = vmatmul.f32.gmra.mxu0 %v127
    %v184 = vpop.f32.mrf.mxu0
    %v185 = vadd.f32 %v165, %v184
    %186 = vmatmul.f32.gmra.mxu0 %v129
    %v187 = vpop.f32.mrf.mxu0
    %v188 = vadd.f32 %v165, %v187
    %189 = vdwg.mxu0
    %190 = vmatpush.msra.mxu0 %v162
    %191 = vmatpush.msra.mxu0 %v161
    %192 = vmatpush.msra.mxu0 %v160
    %193 = vmatpush.msra.mxu0 %v159
    %194 = vmatpush.msra.mxu0 %v158
    %195 = vmatpush.msra.mxu0 %v157
    %196 = vmatpush.msra.mxu0 %v156
    %197 = vmatpush.msra.mxu0 %v155
    %198 = vmatpush.msra.mxu0 %v154
    %199 = vmatpush.msra.mxu0 %v153
    %200 = vmatpush.msra.mxu0 %v152
    %201 = vmatpush.msra.mxu0 %v151
    %202 = vmatpush.msra.mxu0 %v150
    %203 = vmatpush.msra.mxu0 %v149
    %204 = vmatpush.msra.mxu0 %v148
    %205 = vmatpush.msra.mxu0 %v147
    %206 = vmatmul.f32.gmra.mxu0 %v128
    %v207 = vpop.f32.mrf.mxu0
    %v208 = vadd.f32 %v185, %v207
    %209 = vmatmul.f32.gmra.mxu0 %v130
    %v210 = vpop.f32.mrf.mxu0
    %v211 = vadd.f32 %v188, %v210
    %212 = vdwg.mxu0
    %v213 = vmax.f32 %v208, 0.0
    %v214 = vmax.f32 %v211, 0.0
    %v215 = vld [vmem:[%s5] sm:$0xff]
    %v216 = vld [vmem:[%s5 + $0x8] sm:$0xff]
    %v217 = vld [vmem:[%s5 + $0x10] sm:$0xff]
    %v218 = vld [vmem:[%s5 + $0x18] sm:$0xff]
    %v219 = vld [vmem:[%s5 + $0x20] sm:$0xff]
    %v220 = vld [vmem:[%s5 + $0x28] sm:$0xff]
    %v221 = vld [vmem:[%s5 + $0x30] sm:$0xff]
    %v222 = vld [vmem:[%s5 + $0x38] sm:$0xff]
    %v223 = vld [vmem:[%s5 + $0x40] sm:$0xff]
    %v224 = vld [vmem:[%s5 + $0x48] sm:$0xff]
    %v225 = vld [vmem:[%s5 + $0x50] sm:$0xff]
    %v226 = vld [vmem:[%s5 + $0x58] sm:$0xff]
    %v227 = vld [vmem:[%s5 + $0x60] sm:$0xff]
    %v228 = vld [vmem:[%s5 + $0x68] sm:$0xff]
    %v229 = vld [vmem:[%s5 + $0x70] sm:$0xff]
    %v230 = vld [vmem:[%s5 + $0x78] sm:$0xff]
    %v231 = vld [vmem:[%s6] sm:$0x1]
    %v233 = vperm.slane %v231, 0
    %235 = vmatpush.msra.mxu0 %v230
    %236 = vmatpush.msra.mxu0 %v229
    %237 = vmatpush.msra.mxu0 %v228
    %238 = vmatpush.msra.mxu0 %v227
    %239 = vmatpush.msra.mxu0 %v226
    %240 = vmatpush.msra.mxu0 %v225
    %241 = vmatpush.msra.mxu0 %v224
    %242 = vmatpush.msra.mxu0 %v223
    %243 = vmatpush.msra.mxu0 %v222
    %244 = vmatpush.msra.mxu0 %v221
    %245 = vmatpush.msra.mxu0 %v220
    %246 = vmatpush.msra.mxu0 %v219
    %247 = vmatpush.msra.mxu0 %v218
    %248 = vmatpush.msra.mxu0 %v217
    %249 = vmatpush.msra.mxu0 %v216
    %250 = vmatpush.msra.mxu0 %v215
    %251 = vmatmul.f32.gmra.mxu0 %v213
    %v252 = vpop.f32.mrf.mxu0
    %v253 = vadd.f32 %v233, %v252
    %254 = vmatmul.f32.gmra.mxu0 %v214
    %v255 = vpop.f32.mrf.mxu0
    %v256 = vadd.f32 %v233, %v255
    %257 = vdwg.mxu0
    %v258 = vmax.f32 %v253, 0.0
    %v259 = vmax.f32 %v256, 0.0
    %v260 = vld [vmem:[%s7] sm:$0xff]
    %v261 = vld [vmem:[%s7 + $0x8] sm:$0xff]
    %v262 = vld [vmem:[%s7 + $0x10] sm:$0xff]
    %v263 = vld [vmem:[%s7 + $0x18] sm:$0xff]
    %v264 = vld [vmem:[%s7 + $0x20] sm:$0xff]
    %v265 = vld [vmem:[%s7 + $0x28] sm:$0xff]
    %v266 = vld [vmem:[%s7 + $0x30] sm:$0xff]
    %v267 = vld [vmem:[%s7 + $0x38] sm:$0xff]
    %v268 = vld [vmem:[#allocation2] sm:$0x1]
    %v270 = vperm.slane %v268, 0
    %v273 = vsel %vm74, %v258, 0
    %v276 = vsel %vm74, %v259, 0
    %278 = vmatpush.msra.mxu0 0.0
    %279 = vmatpush.msra.mxu0 0.0
    %280 = vmatpush.msra.mxu0 0.0
    %281 = vmatpush.msra.mxu0 0.0
    %282 = vmatpush.msra.mxu0 0.0
    %283 = vmatpush.msra.mxu0 0.0
    %284 = vmatpush.msra.mxu0 0.0
    %285 = vmatpush.msra.mxu0 0.0
    %286 = vmatpush.msra.mxu0 %v267
    %287 = vmatpush.msra.mxu0 %v266
    %288 = vmatpush.msra.mxu0 %v265
    %289 = vmatpush.msra.mxu0 %v264
    %290 = vmatpush.msra.mxu0 %v263
    %291 = vmatpush.msra.mxu0 %v262
    %292 = vmatpush.msra.mxu0 %v261
    %293 = vmatpush.msra.mxu0 %v260
    %294 = vmatmul.f32.gmra.mxu0 %v273
    %v295 = vpop.f32.mrf.mxu0
    %v296 = vadd.f32 %v270, %v295
    %297 = vmatmul.f32.gmra.mxu0 %v276
    %v298 = vpop.f32.mrf.mxu0
    %v299 = vadd.f32 %v270, %v298
    %300 = vdwg.mxu0
    %v301 = vmax.f32 %v296, 0.0
    %v302 = vmax.f32 %v299, 0.0
    %vm303 = vcmask 7168
    %304 = vst.msk [vmem:[%s9] sm:$0xff] %vm303, %v301
    %305 = vst.msk [vmem:[%s9 + $0x8] sm:$0xff] %vm303, %v302
    // Predicated region
    $region42: #{bilstm_forward.11} parent=1 // pred_check
      _
    $region43: #{bilstm_forward.11} parent=1 // pred_check_branch
      %307 = sbr.rel (0) target = $region45
    $region44: #{bilstm_forward.11} parent=1 // pred_region
      _
    $region45: #{bilstm_forward.11} parent=1 // pred_fallthru
      _
    // Predicated region
    $region46: #{bilstm_forward.11} parent=1 // pred_check
      _
    $region47: #{bilstm_forward.11} parent=1 // pred_check_branch
      %309 = sbr.rel (0) target = $region49
    $region48: #{bilstm_forward.11} parent=1 // pred_region
      _
    $region49: #{bilstm_forward.11} parent=1 // pred_fallthru
      _
    %310 = vsyncpa [#allocation4], 1

</llo_original>
